<compile_context>
chip_gen: v5e
topology: v5e:2x2
jax: 0.10.0
libtpu: 0.0.40
codegen_flags: <defaults>
</compile_context>

<pallas_src>
import math
import jax
import jax.numpy as jnp
from jax.experimental import pallas as pl
from jax.experimental.pallas import tpu as pltpu

# ---------------- small, ViT-consistent config ----------------
B = 2            # batch
IN_CH = 1        # in_channels
IMG = 16         # img_size (cubic)
PATCH = 8        # patch_size (cubic)
HID = 32         # hidden_size
MLP = 64         # mlp_dim
LAYERS = 2       # num_layers
HEADS = 4        # num_heads
HD = HID // HEADS
N_PER_AXIS = IMG // PATCH
N_PATCH = N_PER_AXIS ** 3                  # 8 tokens
PATCH_DIM = IN_CH * PATCH ** 3             # 512
EPS = 1e-5
SCALE = HD ** -0.5
NVEC = 8                                   # rows of the packed per-layer vector slab


# ---------------- in-kernel helpers ----------------
def _layernorm(x, g, b):
    mu = jnp.mean(x, axis=-1, keepdims=True)
    var = jnp.mean((x - mu) ** 2, axis=-1, keepdims=True)
    return (x - mu) * jax.lax.rsqrt(var + EPS) * g + b


def _erf(x):
    # Abramowitz & Stegun 7.1.26 (max abs err ~1.5e-7) -> exact-erf GELU
    # (torch nn.GELU default) without needing an erf lowering.
    a1, a2, a3, a4, a5 = 0.254829592, -0.284496736, 1.421413741, -1.453152027, 1.061405429
    p = 0.3275911
    sgn = jnp.where(x < 0.0, -1.0, 1.0)
    ax = jnp.abs(x)
    t = 1.0 / (1.0 + p * ax)
    poly = ((((a5 * t + a4) * t + a3) * t + a2) * t + a1) * t
    return sgn * (1.0 - poly * jnp.exp(-ax * ax))


def _gelu(x):
    return 0.5 * x * (1.0 + _erf(x * (1.0 / math.sqrt(2.0))))


def _two_tensorcores():
    # v7x (and megacore v4/v5p) expose 2 TensorCores per device: keep the
    # per-batch parallel grid there.  Single-TC v5e/v6e -> merge the batch.
    try:
        kind = jax.devices()[0].device_kind.lower()
    except Exception:
        return False
    return ("v7" in kind) or ("v4" in kind) or ("v5p" in kind)


# ---------------- the single fused Pallas kernel (batch block = bb) ----------------
def _make_vit_kernel(bb):
    bn = bb * N_PATCH   # token rows processed per grid step

    def vit_kernel(p_ref, wpe_ref, posb_ref, wqkv_ref, wo_ref, w1_ref, w2_ref,
                   vec_ref, hs_ref):
        # ---- patch embedding: Conv3d(kernel==stride) as one matmul + pos emb ----
        x = jnp.dot(p_ref[...].reshape(bn, PATCH_DIM), wpe_ref[...],
                    preferred_element_type=jnp.float32)
        x = x + posb_ref[...].reshape(bn, HID)                      # (bn, HID)

        for l in range(LAYERS):   # static unroll; stacked weights stay VMEM-resident
            vl = vec_ref[l]                                         # (NVEC, MLP)
            ln1g = vl[0:1, :HID]
            ln1b = vl[1:2, :HID]
            bo = vl[2:3, :HID]
            ln2g = vl[3:4, :HID]
            ln2b = vl[4:5, :HID]
            b1 = vl[5:6, :]
            b2 = vl[6:7, :HID]

            # ---------------- attention ----------------
            xn = _layernorm(x, ln1g, ln1b)
            # ONE fused qkv projection (bn, HID) @ (HID, 3*HID); the attention
            # scale is pre-folded into the q columns of wqkv.
            qkv = jnp.dot(xn, wqkv_ref[l],
                          preferred_element_type=jnp.float32)       # (bn, 3*HID)

            o_rows = []
            for b_i in range(bb):                                   # static loops
                r0, r1 = b_i * N_PATCH, (b_i + 1) * N_PATCH
                o_heads = []
                for h in range(HEADS):
                    q = qkv[r0:r1, h * HD:(h + 1) * HD]             # (N, HD), pre-scaled
                    k = qkv[r0:r1, HID + h * HD:HID + (h + 1) * HD]
                    v = qkv[r0:r1, 2 * HID + h * HD:2 * HID + (h + 1) * HD]
                    # q @ k^T (contract head_dim of both; no explicit transpose)
                    s = jax.lax.dot_general(
                        q, k, (((1,), (1,)), ((), ())),
                        preferred_element_type=jnp.float32)         # (N, N)
                    s = s - jnp.max(s, axis=-1, keepdims=True)
                    e = jnp.exp(s)
                    attn = e * pl.reciprocal(
                        jnp.sum(e, axis=-1, keepdims=True), approx=False)
                    o_heads.append(jnp.dot(attn, v,
                                           preferred_element_type=jnp.float32))
                # 'b h l d -> b l (h d)': concat heads along lanes
                o_rows.append(jnp.concatenate(o_heads, axis=1))     # (N, HID)
            o2d = jnp.concatenate(o_rows, axis=0) if bb > 1 else o_rows[0]  # (bn, HID)

            # fused out-projection + head-sum: ONE K=HID matmul
            x = x + jnp.dot(o2d, wo_ref[l],
                            preferred_element_type=jnp.float32) + bo          # residual 1

            # ---------------- MLP ----------------
            xn2 = _layernorm(x, ln2g, ln2b)
            hmid = jnp.dot(xn2, w1_ref[l], preferred_element_type=jnp.float32) + b1
            x = x + jnp.dot(_gelu(hmid), w2_ref[l],
                            preferred_element_type=jnp.float32) + b2          # residual 2

            hs_ref[l] = x.reshape(bb, N_PATCH, HID)     # hidden_states_out entry

        vfin = vec_ref[LAYERS]
        hs_ref[LAYERS] = _layernorm(
            x, vfin[0:1, :HID], vfin[1:2, :HID]).reshape(bb, N_PATCH, HID)   # final LN

    return vit_kernel


# ---------------- pallas_call wrapper ----------------
def vit_forward(x_img, params):
    patches = patchify(x_img)                                  # (B, N, PATCH_DIM)

    bb = 1 if _two_tensorcores() else B                        # batch block per grid step
    grid = (B // bb,)
    kernel = _make_vit_kernel(bb)

    hs = pl.pallas_call(
        kernel,
        grid=grid,
        in_specs=[
            pl.BlockSpec((bb, N_PATCH, PATCH_DIM), lambda b: (b, 0, 0)),      # patches
            pl.BlockSpec((PATCH_DIM, HID), lambda b: (0, 0)),                 # wpe^T
            pl.BlockSpec((bb, N_PATCH, HID), lambda b: (b, 0, 0)),            # pos emb + conv bias
            pl.BlockSpec((LAYERS, HID, 3 * HID), lambda b: (0, 0, 0)),        # wqkv (scale folded)
            pl.BlockSpec((LAYERS, HID, HID), lambda b: (0, 0, 0)),            # wo^T
            pl.BlockSpec((LAYERS, HID, MLP), lambda b: (0, 0, 0)),            # w1^T
            pl.BlockSpec((LAYERS, MLP, HID), lambda b: (0, 0, 0)),            # w2^T
            pl.BlockSpec((LAYERS + 1, NVEC, MLP), lambda b: (0, 0, 0)),       # packed vectors
        ],
        out_specs=pl.BlockSpec((LAYERS + 1, bb, N_PATCH, HID), lambda b: (0, b, 0, 0)),
        out_shape=jax.ShapeDtypeStruct((LAYERS + 1, B, N_PATCH, HID), jnp.float32),
        compiler_params=pltpu.CompilerParams(dimension_semantics=("parallel",)),
    )(patches, params["wpe_t"], params["posb"], params["wqkv"], params["wo"],
      params["w1"], params["w2"], params["vecs"])

    # same structure as the PyTorch forward: [raw input, block_1, ..., block_L, final LN]
    hidden_states_out = [x_img]
    for l in range(LAYERS):
        hidden_states_out.append(hs[l])
    hidden_states_out.append(hs[LAYERS])
    return hidden_states_out


# ---------------- parameters (deterministic, synthetic, kernel-ready layout) --
def make_params(key):
    keys = jax.random.split(key, 4 + LAYERS * 8)
    ki = iter(range(len(keys)))

    def nrm(shape, scale=0.02):
        return scale * jax.random.normal(keys[next(ki)], shape, jnp.float32)

    params = {}
    # patch embedding: Conv3d(IN_CH, HID, kernel=stride=PATCH) -> matmul form
    conv_w = nrm((HID, IN_CH, PATCH, PATCH, PATCH))
    conv_b = nrm((HID,))
    pos_emb = nrm((1, N_PATCH, HID))
    params["wpe_t"] = conv_w.reshape(HID, PATCH_DIM).T                  # (PD, HID)
    # fold conv bias into the (batch-tiled) positional term
    params["posb"] = jnp.tile(pos_emb + conv_b[None, None, :], (B, 1, 1))  # (B, N, HID)

    wqkv_l, wo_l, w1_l, w2_l, vec_l = [], [], [], [], []
    for _ in range(LAYERS):
        Wqkv = nrm((3 * HID, HID))          # nn.Linear(HID, 3*HID, bias=False).weight
        Wo = nrm((HID, HID))                # out_proj.weight
        bo = nrm((HID,))                    # out_proj.bias
        W1 = nrm((MLP, HID))
        b1 = nrm((MLP,))
        W2 = nrm((HID, MLP))
        b2 = nrm((HID,))

        # x @ Wqkv.T has columns ordered (qkv, head, d) exactly per the
        # Rearrange('b h (qkv l d) -> qkv b l h d'); fold SCALE into q columns.
        wqkv_t = Wqkv.T                                             # (HID, 3*HID)
        wqkv_t = wqkv_t.at[:, :HID].multiply(SCALE)
        wqkv_l.append(wqkv_t)
        wo_l.append(Wo.T)                                           # rows are (h d)-ordered
        w1_l.append(W1.T)                                           # (HID, MLP)
        w2_l.append(W2.T)                                           # (MLP, HID)

        vec = jnp.zeros((NVEC, MLP), jnp.float32)
        vec = vec.at[0, :HID].set(1.0)      # ln1 gamma
        # row 1: ln1 beta = 0
        vec = vec.at[2, :HID].set(bo)       # out_proj bias
        vec = vec.at[3, :HID].set(1.0)      # ln2 gamma
        # row 4: ln2 beta = 0
        vec = vec.at[5, :].set(b1)          # fc1 bias (MLP wide)
        vec = vec.at[6, :HID].set(b2)       # fc2 bias
        vec_l.append(vec)

    # final LayerNorm gamma/beta in the last slab entry
    vfin = jnp.zeros((NVEC, MLP), jnp.float32).at[0, :HID].set(1.0)
    vec_l.append(vfin)

    params["wqkv"] = jnp.stack(wqkv_l)          # (LAYERS, HID, 3*HID)
    params["wo"] = jnp.stack(wo_l)              # (LAYERS, HID, HID)
    params["w1"] = jnp.stack(w1_l)              # (LAYERS, HID, MLP)
    params["w2"] = jnp.stack(w2_l)              # (LAYERS, MLP, HID)
    params["vecs"] = jnp.stack(vec_l)           # (LAYERS+1, NVEC, MLP)
    return params


# ---------------- glue: patchify (== Conv3d with kernel==stride) ----------------
def patchify(x):
    # x: (B, C, D, H, W) NCDHW -> (B, N_patches, C*P^3), patch vec ordered (c, pd, ph, pw)
    n = N_PER_AXIS
    xp = x.reshape(B, IN_CH, n, PATCH, n, PATCH, n, PATCH)
    xp = xp.transpose(0, 2, 4, 6, 1, 3, 5, 7)
    return xp.reshape(B, n ** 3, PATCH_DIM)


if __name__ == "__main__":
    key = jax.random.PRNGKey(0)
    kx, kp = jax.random.split(key)
    x = jax.random.normal(kx, (B, IN_CH, IMG, IMG, IMG), jnp.float32)   # NCDHW
    params = make_params(kp)

    outs = vit_forward(x, params)
    outs = jax.block_until_ready(outs)

    assert len(outs) == LAYERS + 2
    assert outs[0].shape == (B, IN_CH, IMG, IMG, IMG)
    assert outs[1].shape == (B, N_PATCH, HID)
    assert outs[-1].shape == (B, N_PATCH, HID)
    print("KERNEL_OK")
</pallas_src>

<mosaic_0001>
module attributes {stable_mosaic.version = 11 : i64} {
  func.func @vit_kernel(%arg0: i32, %arg1: memref<2x8x512xf32, #tpu.memory_space<vmem>>, %arg2: memref<512x32xf32, #tpu.memory_space<vmem>>, %arg3: memref<2x8x32xf32, #tpu.memory_space<vmem>>, %arg4: memref<2x32x96xf32, #tpu.memory_space<vmem>>, %arg5: memref<2x32x32xf32, #tpu.memory_space<vmem>>, %arg6: memref<2x32x64xf32, #tpu.memory_space<vmem>>, %arg7: memref<2x64x32xf32, #tpu.memory_space<vmem>>, %arg8: memref<3x8x64xf32, #tpu.memory_space<vmem>>, %arg9: memref<3x2x8x32xf32, #tpu.memory_space<vmem>>) attributes {dimension_semantics = [#tpu.dimension_semantics<parallel>], iteration_bounds = array<i64: 1>, scalar_prefetch = 0 : i64, scratch_operands = 0 : i64, tpu.core_type = #tpu.core_type<tc>, window_params = [{transform_indices = @transform_0, window_bounds = array<i64: 2, 8, 512>}, {pipeline_mode = #tpu.pipeline_mode<synchronous>, transform_indices = @transform_1, window_bounds = array<i64: 512, 32>}, {transform_indices = @transform_2, window_bounds = array<i64: 2, 8, 32>}, {pipeline_mode = #tpu.pipeline_mode<synchronous>, transform_indices = @transform_3, window_bounds = array<i64: 2, 32, 96>}, {pipeline_mode = #tpu.pipeline_mode<synchronous>, transform_indices = @transform_4, window_bounds = array<i64: 2, 32, 32>}, {pipeline_mode = #tpu.pipeline_mode<synchronous>, transform_indices = @transform_5, window_bounds = array<i64: 2, 32, 64>}, {pipeline_mode = #tpu.pipeline_mode<synchronous>, transform_indices = @transform_6, window_bounds = array<i64: 2, 64, 32>}, {pipeline_mode = #tpu.pipeline_mode<synchronous>, transform_indices = @transform_7, window_bounds = array<i64: 3, 8, 64>}, {transform_indices = @transform_8, window_bounds = array<i64: 3, 2, 8, 32>}]} {
    %c0 = arith.constant 0 : index
    %c0_0 = arith.constant 0 : index
    %c0_1 = arith.constant 0 : index
    %0 = vector.load %arg1[%c0, %c0_0, %c0_1] : memref<2x8x512xf32, #tpu.memory_space<vmem>>, vector<2x8x512xf32>
    %1 = vector.shape_cast %0 : vector<2x8x512xf32> to vector<16x512xf32>
    %c0_2 = arith.constant 0 : index
    %c0_3 = arith.constant 0 : index
    %2 = vector.load %arg2[%c0_2, %c0_3] : memref<512x32xf32, #tpu.memory_space<vmem>>, vector<512x32xf32>
    %cst = arith.constant dense<0.000000e+00> : vector<16x32xf32>
    %3 = tpu.matmul %1, %2, %cst {dimension_numbers = #tpu.dot_dimension_numbers<[1], [0], [0], [1], [0, 0, 1, 1], [], []>} : vector<16x512xf32>, vector<512x32xf32>, vector<16x32xf32> -> vector<16x32xf32>
    %c0_4 = arith.constant 0 : index
    %c0_5 = arith.constant 0 : index
    %c0_6 = arith.constant 0 : index
    %4 = vector.load %arg3[%c0_4, %c0_5, %c0_6] : memref<2x8x32xf32, #tpu.memory_space<vmem>>, vector<2x8x32xf32>
    %5 = vector.shape_cast %4 : vector<2x8x32xf32> to vector<16x32xf32>
    %6 = arith.addf %3, %5 : vector<16x32xf32>
    %c0_7 = arith.constant 0 : index
    %c0_8 = arith.constant 0 : index
    %c0_9 = arith.constant 0 : index
    %7 = vector.load %arg8[%c0_7, %c0_8, %c0_9] : memref<3x8x64xf32, #tpu.memory_space<vmem>>, vector<1x8x64xf32>
    %8 = vector.shape_cast %7 : vector<1x8x64xf32> to vector<8x64xf32>
    %9 = vector.extract_strided_slice %8 {offsets = [0, 0], sizes = [1, 32], strides = [1, 1]} : vector<8x64xf32> to vector<1x32xf32>
    %10 = vector.extract_strided_slice %8 {offsets = [1, 0], sizes = [1, 32], strides = [1, 1]} : vector<8x64xf32> to vector<1x32xf32>
    %11 = vector.extract_strided_slice %8 {offsets = [2, 0], sizes = [1, 32], strides = [1, 1]} : vector<8x64xf32> to vector<1x32xf32>
    %12 = vector.extract_strided_slice %8 {offsets = [3, 0], sizes = [1, 32], strides = [1, 1]} : vector<8x64xf32> to vector<1x32xf32>
    %13 = vector.extract_strided_slice %8 {offsets = [4, 0], sizes = [1, 32], strides = [1, 1]} : vector<8x64xf32> to vector<1x32xf32>
    %14 = vector.extract_strided_slice %8 {offsets = [5, 0], sizes = [1, 64], strides = [1, 1]} : vector<8x64xf32> to vector<1x64xf32>
    %15 = vector.extract_strided_slice %8 {offsets = [6, 0], sizes = [1, 32], strides = [1, 1]} : vector<8x64xf32> to vector<1x32xf32>
    %cst_10 = arith.constant dense<0.000000e+00> : vector<16xf32>
    %16 = vector.multi_reduction <add>, %6, %cst_10 [1] : vector<16x32xf32> to vector<16xf32>
    %17 = vector.shape_cast %16 : vector<16xf32> to vector<16x1xf32>
    %cst_11 = arith.constant 3.200000e+01 : f32
    %18 = vector.broadcast %cst_11 : f32 to vector<16x1xf32>
    %19 = arith.divf %17, %18 : vector<16x1xf32>
    %20 = vector.broadcast %19 : vector<16x1xf32> to vector<16x32xf32>
    %21 = arith.subf %6, %20 : vector<16x32xf32>
    %22 = arith.mulf %21, %21 : vector<16x32xf32>
    %cst_12 = arith.constant dense<0.000000e+00> : vector<16xf32>
    %23 = vector.multi_reduction <add>, %22, %cst_12 [1] : vector<16x32xf32> to vector<16xf32>
    %24 = vector.shape_cast %23 : vector<16xf32> to vector<16x1xf32>
    %cst_13 = arith.constant 3.200000e+01 : f32
    %25 = vector.broadcast %cst_13 : f32 to vector<16x1xf32>
    %26 = arith.divf %24, %25 : vector<16x1xf32>
    %27 = vector.broadcast %19 : vector<16x1xf32> to vector<16x32xf32>
    %28 = arith.subf %6, %27 : vector<16x32xf32>
    %cst_14 = arith.constant 9.99999974E-6 : f32
    %29 = vector.broadcast %cst_14 : f32 to vector<16x1xf32>
    %30 = arith.addf %26, %29 : vector<16x1xf32>
    %31 = math.rsqrt %30 : vector<16x1xf32>
    %32 = vector.broadcast %31 : vector<16x1xf32> to vector<16x32xf32>
    %33 = arith.mulf %28, %32 : vector<16x32xf32>
    %34 = vector.broadcast %9 : vector<1x32xf32> to vector<16x32xf32>
    %35 = arith.mulf %33, %34 : vector<16x32xf32>
    %36 = vector.broadcast %10 : vector<1x32xf32> to vector<16x32xf32>
    %37 = arith.addf %35, %36 : vector<16x32xf32>
    %c0_15 = arith.constant 0 : index
    %c0_16 = arith.constant 0 : index
    %c0_17 = arith.constant 0 : index
    %38 = vector.load %arg4[%c0_15, %c0_16, %c0_17] : memref<2x32x96xf32, #tpu.memory_space<vmem>>, vector<1x32x96xf32>
    %39 = vector.shape_cast %38 : vector<1x32x96xf32> to vector<32x96xf32>
    %cst_18 = arith.constant dense<0.000000e+00> : vector<16x96xf32>
    %40 = tpu.matmul %37, %39, %cst_18 {dimension_numbers = #tpu.dot_dimension_numbers<[1], [0], [0], [1], [0, 0, 1, 1], [], []>} : vector<16x32xf32>, vector<32x96xf32>, vector<16x96xf32> -> vector<16x96xf32>
    %41 = vector.extract_strided_slice %40 {offsets = [0, 0], sizes = [8, 8], strides = [1, 1]} : vector<16x96xf32> to vector<8x8xf32>
    %42 = vector.extract_strided_slice %40 {offsets = [0, 32], sizes = [8, 8], strides = [1, 1]} : vector<16x96xf32> to vector<8x8xf32>
    %43 = vector.extract_strided_slice %40 {offsets = [0, 64], sizes = [8, 8], strides = [1, 1]} : vector<16x96xf32> to vector<8x8xf32>
    %cst_19 = arith.constant dense<0.000000e+00> : vector<8x8xf32>
    %44 = tpu.matmul %41, %42, %cst_19 {dimension_numbers = #tpu.dot_dimension_numbers<[1], [1], [0], [0], [0, 0, 1, 0], [], []>} : vector<8x8xf32>, vector<8x8xf32>, vector<8x8xf32> -> vector<8x8xf32>
    %cst_20 = arith.constant dense<0xFF800000> : vector<8xf32>
    %45 = vector.multi_reduction <maximumf>, %44, %cst_20 [1] : vector<8x8xf32> to vector<8xf32>
    %46 = vector.shape_cast %45 : vector<8xf32> to vector<8x1xf32>
    %47 = vector.broadcast %46 : vector<8x1xf32> to vector<8x8xf32>
    %48 = arith.subf %44, %47 : vector<8x8xf32>
    %49 = math.exp %48 : vector<8x8xf32>
    %cst_21 = arith.constant dense<0.000000e+00> : vector<8xf32>
    %50 = vector.multi_reduction <add>, %49, %cst_21 [1] : vector<8x8xf32> to vector<8xf32>
    %51 = vector.shape_cast %50 : vector<8xf32> to vector<8x1xf32>
    %52 = tpu.reciprocal %51 : vector<8x1xf32> -> vector<8x1xf32>
    %53 = vector.broadcast %52 : vector<8x1xf32> to vector<8x8xf32>
    %54 = arith.mulf %49, %53 : vector<8x8xf32>
    %cst_22 = arith.constant dense<0.000000e+00> : vector<8x8xf32>
    %55 = tpu.matmul %54, %43, %cst_22 {dimension_numbers = #tpu.dot_dimension_numbers<[1], [0], [0], [1], [0, 0, 1, 1], [], []>} : vector<8x8xf32>, vector<8x8xf32>, vector<8x8xf32> -> vector<8x8xf32>
    %56 = vector.extract_strided_slice %40 {offsets = [0, 8], sizes = [8, 8], strides = [1, 1]} : vector<16x96xf32> to vector<8x8xf32>
    %57 = vector.extract_strided_slice %40 {offsets = [0, 40], sizes = [8, 8], strides = [1, 1]} : vector<16x96xf32> to vector<8x8xf32>
    %58 = vector.extract_strided_slice %40 {offsets = [0, 72], sizes = [8, 8], strides = [1, 1]} : vector<16x96xf32> to vector<8x8xf32>
    %cst_23 = arith.constant dense<0.000000e+00> : vector<8x8xf32>
    %59 = tpu.matmul %56, %57, %cst_23 {dimension_numbers = #tpu.dot_dimension_numbers<[1], [1], [0], [0], [0, 0, 1, 0], [], []>} : vector<8x8xf32>, vector<8x8xf32>, vector<8x8xf32> -> vector<8x8xf32>
    %cst_24 = arith.constant dense<0xFF800000> : vector<8xf32>
    %60 = vector.multi_reduction <maximumf>, %59, %cst_24 [1] : vector<8x8xf32> to vector<8xf32>
    %61 = vector.shape_cast %60 : vector<8xf32> to vector<8x1xf32>
    %62 = vector.broadcast %61 : vector<8x1xf32> to vector<8x8xf32>
    %63 = arith.subf %59, %62 : vector<8x8xf32>
    %64 = math.exp %63 : vector<8x8xf32>
    %cst_25 = arith.constant dense<0.000000e+00> : vector<8xf32>
    %65 = vector.multi_reduction <add>, %64, %cst_25 [1] : vector<8x8xf32> to vector<8xf32>
    %66 = vector.shape_cast %65 : vector<8xf32> to vector<8x1xf32>
    %67 = tpu.reciprocal %66 : vector<8x1xf32> -> vector<8x1xf32>
    %68 = vector.broadcast %67 : vector<8x1xf32> to vector<8x8xf32>
    %69 = arith.mulf %64, %68 : vector<8x8xf32>
    %cst_26 = arith.constant dense<0.000000e+00> : vector<8x8xf32>
    %70 = tpu.matmul %69, %58, %cst_26 {dimension_numbers = #tpu.dot_dimension_numbers<[1], [0], [0], [1], [0, 0, 1, 1], [], []>} : vector<8x8xf32>, vector<8x8xf32>, vector<8x8xf32> -> vector<8x8xf32>
    %71 = vector.extract_strided_slice %40 {offsets = [0, 16], sizes = [8, 8], strides = [1, 1]} : vector<16x96xf32> to vector<8x8xf32>
    %72 = vector.extract_strided_slice %40 {offsets = [0, 48], sizes = [8, 8], strides = [1, 1]} : vector<16x96xf32> to vector<8x8xf32>
    %73 = vector.extract_strided_slice %40 {offsets = [0, 80], sizes = [8, 8], strides = [1, 1]} : vector<16x96xf32> to vector<8x8xf32>
    %cst_27 = arith.constant dense<0.000000e+00> : vector<8x8xf32>
    %74 = tpu.matmul %71, %72, %cst_27 {dimension_numbers = #tpu.dot_dimension_numbers<[1], [1], [0], [0], [0, 0, 1, 0], [], []>} : vector<8x8xf32>, vector<8x8xf32>, vector<8x8xf32> -> vector<8x8xf32>
    %cst_28 = arith.constant dense<0xFF800000> : vector<8xf32>
    %75 = vector.multi_reduction <maximumf>, %74, %cst_28 [1] : vector<8x8xf32> to vector<8xf32>
    %76 = vector.shape_cast %75 : vector<8xf32> to vector<8x1xf32>
    %77 = vector.broadcast %76 : vector<8x1xf32> to vector<8x8xf32>
    %78 = arith.subf %74, %77 : vector<8x8xf32>
    %79 = math.exp %78 : vector<8x8xf32>
    %cst_29 = arith.constant dense<0.000000e+00> : vector<8xf32>
    %80 = vector.multi_reduction <add>, %79, %cst_29 [1] : vector<8x8xf32> to vector<8xf32>
    %81 = vector.shape_cast %80 : vector<8xf32> to vector<8x1xf32>
    %82 = tpu.reciprocal %81 : vector<8x1xf32> -> vector<8x1xf32>
    %83 = vector.broadcast %82 : vector<8x1xf32> to vector<8x8xf32>
    %84 = arith.mulf %79, %83 : vector<8x8xf32>
    %cst_30 = arith.constant dense<0.000000e+00> : vector<8x8xf32>
    %85 = tpu.matmul %84, %73, %cst_30 {dimension_numbers = #tpu.dot_dimension_numbers<[1], [0], [0], [1], [0, 0, 1, 1], [], []>} : vector<8x8xf32>, vector<8x8xf32>, vector<8x8xf32> -> vector<8x8xf32>
    %86 = vector.extract_strided_slice %40 {offsets = [0, 24], sizes = [8, 8], strides = [1, 1]} : vector<16x96xf32> to vector<8x8xf32>
    %87 = vector.extract_strided_slice %40 {offsets = [0, 56], sizes = [8, 8], strides = [1, 1]} : vector<16x96xf32> to vector<8x8xf32>
    %88 = vector.extract_strided_slice %40 {offsets = [0, 88], sizes = [8, 8], strides = [1, 1]} : vector<16x96xf32> to vector<8x8xf32>
    %cst_31 = arith.constant dense<0.000000e+00> : vector<8x8xf32>
    %89 = tpu.matmul %86, %87, %cst_31 {dimension_numbers = #tpu.dot_dimension_numbers<[1], [1], [0], [0], [0, 0, 1, 0], [], []>} : vector<8x8xf32>, vector<8x8xf32>, vector<8x8xf32> -> vector<8x8xf32>
    %cst_32 = arith.constant dense<0xFF800000> : vector<8xf32>
    %90 = vector.multi_reduction <maximumf>, %89, %cst_32 [1] : vector<8x8xf32> to vector<8xf32>
    %91 = vector.shape_cast %90 : vector<8xf32> to vector<8x1xf32>
    %92 = vector.broadcast %91 : vector<8x1xf32> to vector<8x8xf32>
    %93 = arith.subf %89, %92 : vector<8x8xf32>
    %94 = math.exp %93 : vector<8x8xf32>
    %cst_33 = arith.constant dense<0.000000e+00> : vector<8xf32>
    %95 = vector.multi_reduction <add>, %94, %cst_33 [1] : vector<8x8xf32> to vector<8xf32>
    %96 = vector.shape_cast %95 : vector<8xf32> to vector<8x1xf32>
    %97 = tpu.reciprocal %96 : vector<8x1xf32> -> vector<8x1xf32>
    %98 = vector.broadcast %97 : vector<8x1xf32> to vector<8x8xf32>
    %99 = arith.mulf %94, %98 : vector<8x8xf32>
    %cst_34 = arith.constant dense<0.000000e+00> : vector<8x8xf32>
    %100 = tpu.matmul %99, %88, %cst_34 {dimension_numbers = #tpu.dot_dimension_numbers<[1], [0], [0], [1], [0, 0, 1, 1], [], []>} : vector<8x8xf32>, vector<8x8xf32>, vector<8x8xf32> -> vector<8x8xf32>
    %101 = tpu.concatenate %55, %70, %85, %100 in 1 : vector<8x8xf32>, vector<8x8xf32>, vector<8x8xf32>, vector<8x8xf32> -> vector<8x32xf32>
    %102 = vector.extract_strided_slice %40 {offsets = [8, 0], sizes = [8, 8], strides = [1, 1]} : vector<16x96xf32> to vector<8x8xf32>
    %103 = vector.extract_strided_slice %40 {offsets = [8, 32], sizes = [8, 8], strides = [1, 1]} : vector<16x96xf32> to vector<8x8xf32>
    %104 = vector.extract_strided_slice %40 {offsets = [8, 64], sizes = [8, 8], strides = [1, 1]} : vector<16x96xf32> to vector<8x8xf32>
    %cst_35 = arith.constant dense<0.000000e+00> : vector<8x8xf32>
    %105 = tpu.matmul %102, %103, %cst_35 {dimension_numbers = #tpu.dot_dimension_numbers<[1], [1], [0], [0], [0, 0, 1, 0], [], []>} : vector<8x8xf32>, vector<8x8xf32>, vector<8x8xf32> -> vector<8x8xf32>
    %cst_36 = arith.constant dense<0xFF800000> : vector<8xf32>
    %106 = vector.multi_reduction <maximumf>, %105, %cst_36 [1] : vector<8x8xf32> to vector<8xf32>
    %107 = vector.shape_cast %106 : vector<8xf32> to vector<8x1xf32>
    %108 = vector.broadcast %107 : vector<8x1xf32> to vector<8x8xf32>
    %109 = arith.subf %105, %108 : vector<8x8xf32>
    %110 = math.exp %109 : vector<8x8xf32>
    %cst_37 = arith.constant dense<0.000000e+00> : vector<8xf32>
    %111 = vector.multi_reduction <add>, %110, %cst_37 [1] : vector<8x8xf32> to vector<8xf32>
    %112 = vector.shape_cast %111 : vector<8xf32> to vector<8x1xf32>
    %113 = tpu.reciprocal %112 : vector<8x1xf32> -> vector<8x1xf32>
    %114 = vector.broadcast %113 : vector<8x1xf32> to vector<8x8xf32>
    %115 = arith.mulf %110, %114 : vector<8x8xf32>
    %cst_38 = arith.constant dense<0.000000e+00> : vector<8x8xf32>
    %116 = tpu.matmul %115, %104, %cst_38 {dimension_numbers = #tpu.dot_dimension_numbers<[1], [0], [0], [1], [0, 0, 1, 1], [], []>} : vector<8x8xf32>, vector<8x8xf32>, vector<8x8xf32> -> vector<8x8xf32>
    %117 = vector.extract_strided_slice %40 {offsets = [8, 8], sizes = [8, 8], strides = [1, 1]} : vector<16x96xf32> to vector<8x8xf32>
    %118 = vector.extract_strided_slice %40 {offsets = [8, 40], sizes = [8, 8], strides = [1, 1]} : vector<16x96xf32> to vector<8x8xf32>
    %119 = vector.extract_strided_slice %40 {offsets = [8, 72], sizes = [8, 8], strides = [1, 1]} : vector<16x96xf32> to vector<8x8xf32>
    %cst_39 = arith.constant dense<0.000000e+00> : vector<8x8xf32>
    %120 = tpu.matmul %117, %118, %cst_39 {dimension_numbers = #tpu.dot_dimension_numbers<[1], [1], [0], [0], [0, 0, 1, 0], [], []>} : vector<8x8xf32>, vector<8x8xf32>, vector<8x8xf32> -> vector<8x8xf32>
    %cst_40 = arith.constant dense<0xFF800000> : vector<8xf32>
    %121 = vector.multi_reduction <maximumf>, %120, %cst_40 [1] : vector<8x8xf32> to vector<8xf32>
    %122 = vector.shape_cast %121 : vector<8xf32> to vector<8x1xf32>
    %123 = vector.broadcast %122 : vector<8x1xf32> to vector<8x8xf32>
    %124 = arith.subf %120, %123 : vector<8x8xf32>
    %125 = math.exp %124 : vector<8x8xf32>
    %cst_41 = arith.constant dense<0.000000e+00> : vector<8xf32>
    %126 = vector.multi_reduction <add>, %125, %cst_41 [1] : vector<8x8xf32> to vector<8xf32>
    %127 = vector.shape_cast %126 : vector<8xf32> to vector<8x1xf32>
    %128 = tpu.reciprocal %127 : vector<8x1xf32> -> vector<8x1xf32>
    %129 = vector.broadcast %128 : vector<8x1xf32> to vector<8x8xf32>
    %130 = arith.mulf %125, %129 : vector<8x8xf32>
    %cst_42 = arith.constant dense<0.000000e+00> : vector<8x8xf32>
    %131 = tpu.matmul %130, %119, %cst_42 {dimension_numbers = #tpu.dot_dimension_numbers<[1], [0], [0], [1], [0, 0, 1, 1], [], []>} : vector<8x8xf32>, vector<8x8xf32>, vector<8x8xf32> -> vector<8x8xf32>
    %132 = vector.extract_strided_slice %40 {offsets = [8, 16], sizes = [8, 8], strides = [1, 1]} : vector<16x96xf32> to vector<8x8xf32>
    %133 = vector.extract_strided_slice %40 {offsets = [8, 48], sizes = [8, 8], strides = [1, 1]} : vector<16x96xf32> to vector<8x8xf32>
    %134 = vector.extract_strided_slice %40 {offsets = [8, 80], sizes = [8, 8], strides = [1, 1]} : vector<16x96xf32> to vector<8x8xf32>
    %cst_43 = arith.constant dense<0.000000e+00> : vector<8x8xf32>
    %135 = tpu.matmul %132, %133, %cst_43 {dimension_numbers = #tpu.dot_dimension_numbers<[1], [1], [0], [0], [0, 0, 1, 0], [], []>} : vector<8x8xf32>, vector<8x8xf32>, vector<8x8xf32> -> vector<8x8xf32>
    %cst_44 = arith.constant dense<0xFF800000> : vector<8xf32>
    %136 = vector.multi_reduction <maximumf>, %135, %cst_44 [1] : vector<8x8xf32> to vector<8xf32>
    %137 = vector.shape_cast %136 : vector<8xf32> to vector<8x1xf32>
    %138 = vector.broadcast %137 : vector<8x1xf32> to vector<8x8xf32>
    %139 = arith.subf %135, %138 : vector<8x8xf32>
    %140 = math.exp %139 : vector<8x8xf32>
    %cst_45 = arith.constant dense<0.000000e+00> : vector<8xf32>
    %141 = vector.multi_reduction <add>, %140, %cst_45 [1] : vector<8x8xf32> to vector<8xf32>
    %142 = vector.shape_cast %141 : vector<8xf32> to vector<8x1xf32>
    %143 = tpu.reciprocal %142 : vector<8x1xf32> -> vector<8x1xf32>
    %144 = vector.broadcast %143 : vector<8x1xf32> to vector<8x8xf32>
    %145 = arith.mulf %140, %144 : vector<8x8xf32>
    %cst_46 = arith.constant dense<0.000000e+00> : vector<8x8xf32>
    %146 = tpu.matmul %145, %134, %cst_46 {dimension_numbers = #tpu.dot_dimension_numbers<[1], [0], [0], [1], [0, 0, 1, 1], [], []>} : vector<8x8xf32>, vector<8x8xf32>, vector<8x8xf32> -> vector<8x8xf32>
    %147 = vector.extract_strided_slice %40 {offsets = [8, 24], sizes = [8, 8], strides = [1, 1]} : vector<16x96xf32> to vector<8x8xf32>
    %148 = vector.extract_strided_slice %40 {offsets = [8, 56], sizes = [8, 8], strides = [1, 1]} : vector<16x96xf32> to vector<8x8xf32>
    %149 = vector.extract_strided_slice %40 {offsets = [8, 88], sizes = [8, 8], strides = [1, 1]} : vector<16x96xf32> to vector<8x8xf32>
    %cst_47 = arith.constant dense<0.000000e+00> : vector<8x8xf32>
    %150 = tpu.matmul %147, %148, %cst_47 {dimension_numbers = #tpu.dot_dimension_numbers<[1], [1], [0], [0], [0, 0, 1, 0], [], []>} : vector<8x8xf32>, vector<8x8xf32>, vector<8x8xf32> -> vector<8x8xf32>
    %cst_48 = arith.constant dense<0xFF800000> : vector<8xf32>
    %151 = vector.multi_reduction <maximumf>, %150, %cst_48 [1] : vector<8x8xf32> to vector<8xf32>
    %152 = vector.shape_cast %151 : vector<8xf32> to vector<8x1xf32>
    %153 = vector.broadcast %152 : vector<8x1xf32> to vector<8x8xf32>
    %154 = arith.subf %150, %153 : vector<8x8xf32>
    %155 = math.exp %154 : vector<8x8xf32>
    %cst_49 = arith.constant dense<0.000000e+00> : vector<8xf32>
    %156 = vector.multi_reduction <add>, %155, %cst_49 [1] : vector<8x8xf32> to vector<8xf32>
    %157 = vector.shape_cast %156 : vector<8xf32> to vector<8x1xf32>
    %158 = tpu.reciprocal %157 : vector<8x1xf32> -> vector<8x1xf32>
    %159 = vector.broadcast %158 : vector<8x1xf32> to vector<8x8xf32>
    %160 = arith.mulf %155, %159 : vector<8x8xf32>
    %cst_50 = arith.constant dense<0.000000e+00> : vector<8x8xf32>
    %161 = tpu.matmul %160, %149, %cst_50 {dimension_numbers = #tpu.dot_dimension_numbers<[1], [0], [0], [1], [0, 0, 1, 1], [], []>} : vector<8x8xf32>, vector<8x8xf32>, vector<8x8xf32> -> vector<8x8xf32>
    %162 = tpu.concatenate %116, %131, %146, %161 in 1 : vector<8x8xf32>, vector<8x8xf32>, vector<8x8xf32>, vector<8x8xf32> -> vector<8x32xf32>
    %163 = tpu.concatenate %101, %162 in 0 : vector<8x32xf32>, vector<8x32xf32> -> vector<16x32xf32>
    %c0_51 = arith.constant 0 : index
    %c0_52 = arith.constant 0 : index
    %c0_53 = arith.constant 0 : index
    %164 = vector.load %arg5[%c0_51, %c0_52, %c0_53] : memref<2x32x32xf32, #tpu.memory_space<vmem>>, vector<1x32x32xf32>
    %165 = vector.shape_cast %164 : vector<1x32x32xf32> to vector<32x32xf32>
    %cst_54 = arith.constant dense<0.000000e+00> : vector<16x32xf32>
    %166 = tpu.matmul %163, %165, %cst_54 {dimension_numbers = #tpu.dot_dimension_numbers<[1], [0], [0], [1], [0, 0, 1, 1], [], []>} : vector<16x32xf32>, vector<32x32xf32>, vector<16x32xf32> -> vector<16x32xf32>
    %167 = arith.addf %6, %166 : vector<16x32xf32>
    %168 = vector.broadcast %11 : vector<1x32xf32> to vector<16x32xf32>
    %169 = arith.addf %167, %168 : vector<16x32xf32>
    %cst_55 = arith.constant dense<0.000000e+00> : vector<16xf32>
    %170 = vector.multi_reduction <add>, %169, %cst_55 [1] : vector<16x32xf32> to vector<16xf32>
    %171 = vector.shape_cast %170 : vector<16xf32> to vector<16x1xf32>
    %cst_56 = arith.constant 3.200000e+01 : f32
    %172 = vector.broadcast %cst_56 : f32 to vector<16x1xf32>
    %173 = arith.divf %171, %172 : vector<16x1xf32>
    %174 = vector.broadcast %173 : vector<16x1xf32> to vector<16x32xf32>
    %175 = arith.subf %169, %174 : vector<16x32xf32>
    %176 = arith.mulf %175, %175 : vector<16x32xf32>
    %cst_57 = arith.constant dense<0.000000e+00> : vector<16xf32>
    %177 = vector.multi_reduction <add>, %176, %cst_57 [1] : vector<16x32xf32> to vector<16xf32>
    %178 = vector.shape_cast %177 : vector<16xf32> to vector<16x1xf32>
    %cst_58 = arith.constant 3.200000e+01 : f32
    %179 = vector.broadcast %cst_58 : f32 to vector<16x1xf32>
    %180 = arith.divf %178, %179 : vector<16x1xf32>
    %181 = vector.broadcast %173 : vector<16x1xf32> to vector<16x32xf32>
    %182 = arith.subf %169, %181 : vector<16x32xf32>
    %cst_59 = arith.constant 9.99999974E-6 : f32
    %183 = vector.broadcast %cst_59 : f32 to vector<16x1xf32>
    %184 = arith.addf %180, %183 : vector<16x1xf32>
    %185 = math.rsqrt %184 : vector<16x1xf32>
    %186 = vector.broadcast %185 : vector<16x1xf32> to vector<16x32xf32>
    %187 = arith.mulf %182, %186 : vector<16x32xf32>
    %188 = vector.broadcast %12 : vector<1x32xf32> to vector<16x32xf32>
    %189 = arith.mulf %187, %188 : vector<16x32xf32>
    %190 = vector.broadcast %13 : vector<1x32xf32> to vector<16x32xf32>
    %191 = arith.addf %189, %190 : vector<16x32xf32>
    %c0_60 = arith.constant 0 : index
    %c0_61 = arith.constant 0 : index
    %c0_62 = arith.constant 0 : index
    %192 = vector.load %arg6[%c0_60, %c0_61, %c0_62] : memref<2x32x64xf32, #tpu.memory_space<vmem>>, vector<1x32x64xf32>
    %193 = vector.shape_cast %192 : vector<1x32x64xf32> to vector<32x64xf32>
    %cst_63 = arith.constant dense<0.000000e+00> : vector<16x64xf32>
    %194 = tpu.matmul %191, %193, %cst_63 {dimension_numbers = #tpu.dot_dimension_numbers<[1], [0], [0], [1], [0, 0, 1, 1], [], []>} : vector<16x32xf32>, vector<32x64xf32>, vector<16x64xf32> -> vector<16x64xf32>
    %195 = vector.broadcast %14 : vector<1x64xf32> to vector<16x64xf32>
    %196 = arith.addf %194, %195 : vector<16x64xf32>
    %cst_64 = arith.constant 5.000000e-01 : f32
    %197 = vector.broadcast %cst_64 : f32 to vector<16x64xf32>
    %198 = arith.mulf %197, %196 : vector<16x64xf32>
    %cst_65 = arith.constant 0.707106769 : f32
    %199 = vector.broadcast %cst_65 : f32 to vector<16x64xf32>
    %200 = arith.mulf %196, %199 : vector<16x64xf32>
    %cst_66 = arith.constant 0.000000e+00 : f32
    %201 = vector.broadcast %cst_66 : f32 to vector<16x64xf32>
    %202 = arith.cmpf olt, %200, %201 : vector<16x64xf32>
    %cst_67 = arith.constant -1.000000e+00 : f32
    %cst_68 = arith.constant 1.000000e+00 : f32
    %203 = vector.broadcast %cst_67 : f32 to vector<16x64xf32>
    %204 = vector.broadcast %cst_68 : f32 to vector<16x64xf32>
    %205 = arith.select %202, %203, %204 : vector<16x64xi1>, vector<16x64xf32>
    %206 = math.absf %200 : vector<16x64xf32>
    %cst_69 = arith.constant 0.327591091 : f32
    %207 = vector.broadcast %cst_69 : f32 to vector<16x64xf32>
    %208 = arith.mulf %207, %206 : vector<16x64xf32>
    %cst_70 = arith.constant 1.000000e+00 : f32
    %209 = vector.broadcast %cst_70 : f32 to vector<16x64xf32>
    %210 = arith.addf %209, %208 : vector<16x64xf32>
    %cst_71 = arith.constant 1.000000e+00 : f32
    %211 = vector.broadcast %cst_71 : f32 to vector<16x64xf32>
    %212 = arith.divf %211, %210 : vector<16x64xf32>
    %cst_72 = arith.constant 1.06140542 : f32
    %213 = vector.broadcast %cst_72 : f32 to vector<16x64xf32>
    %214 = arith.mulf %213, %212 : vector<16x64xf32>
    %cst_73 = arith.constant -1.45315206 : f32
    %215 = vector.broadcast %cst_73 : f32 to vector<16x64xf32>
    %216 = arith.addf %214, %215 : vector<16x64xf32>
    %217 = arith.mulf %216, %212 : vector<16x64xf32>
    %cst_74 = arith.constant 1.42141378 : f32
    %218 = vector.broadcast %cst_74 : f32 to vector<16x64xf32>
    %219 = arith.addf %217, %218 : vector<16x64xf32>
    %220 = arith.mulf %219, %212 : vector<16x64xf32>
    %cst_75 = arith.constant -0.284496725 : f32
    %221 = vector.broadcast %cst_75 : f32 to vector<16x64xf32>
    %222 = arith.addf %220, %221 : vector<16x64xf32>
    %223 = arith.mulf %222, %212 : vector<16x64xf32>
    %cst_76 = arith.constant 0.254829586 : f32
    %224 = vector.broadcast %cst_76 : f32 to vector<16x64xf32>
    %225 = arith.addf %223, %224 : vector<16x64xf32>
    %226 = arith.mulf %225, %212 : vector<16x64xf32>
    %cst_77 = arith.constant 0.000000e+00 : f32
    %227 = vector.broadcast %cst_77 : f32 to vector<16x64xf32>
    %228 = arith.subf %227, %206 : vector<16x64xf32>
    %229 = arith.mulf %228, %206 : vector<16x64xf32>
    %230 = math.exp %229 : vector<16x64xf32>
    %231 = arith.mulf %226, %230 : vector<16x64xf32>
    %cst_78 = arith.constant 1.000000e+00 : f32
    %232 = vector.broadcast %cst_78 : f32 to vector<16x64xf32>
    %233 = arith.subf %232, %231 : vector<16x64xf32>
    %234 = arith.mulf %205, %233 : vector<16x64xf32>
    %cst_79 = arith.constant 1.000000e+00 : f32
    %235 = vector.broadcast %cst_79 : f32 to vector<16x64xf32>
    %236 = arith.addf %235, %234 : vector<16x64xf32>
    %237 = arith.mulf %198, %236 : vector<16x64xf32>
    %c0_80 = arith.constant 0 : index
    %c0_81 = arith.constant 0 : index
    %c0_82 = arith.constant 0 : index
    %238 = vector.load %arg7[%c0_80, %c0_81, %c0_82] : memref<2x64x32xf32, #tpu.memory_space<vmem>>, vector<1x64x32xf32>
    %239 = vector.shape_cast %238 : vector<1x64x32xf32> to vector<64x32xf32>
    %cst_83 = arith.constant dense<0.000000e+00> : vector<16x32xf32>
    %240 = tpu.matmul %237, %239, %cst_83 {dimension_numbers = #tpu.dot_dimension_numbers<[1], [0], [0], [1], [0, 0, 1, 1], [], []>} : vector<16x64xf32>, vector<64x32xf32>, vector<16x32xf32> -> vector<16x32xf32>
    %241 = arith.addf %169, %240 : vector<16x32xf32>
    %242 = vector.broadcast %15 : vector<1x32xf32> to vector<16x32xf32>
    %243 = arith.addf %241, %242 : vector<16x32xf32>
    %244 = vector.shape_cast %243 : vector<16x32xf32> to vector<2x8x32xf32>
    %c0_84 = arith.constant 0 : index
    %c0_85 = arith.constant 0 : index
    %c0_86 = arith.constant 0 : index
    %c0_87 = arith.constant 0 : index
    %245 = vector.load %arg9[%c0_84, %c0_85, %c0_86, %c0_87] : memref<3x2x8x32xf32, #tpu.memory_space<vmem>>, vector<1x2x8x32xf32>
    %246 = vector.shape_cast %245 : vector<1x2x8x32xf32> to vector<2x8x32xf32>
    %247 = vector.shape_cast %244 : vector<2x8x32xf32> to vector<1x2x8x32xf32>
    tpu.vector_store %arg9[%c0_84, %c0_85, %c0_86, %c0_87], %247 {strides = array<i32>} : memref<3x2x8x32xf32, #tpu.memory_space<vmem>>, vector<1x2x8x32xf32>,
    %c1 = arith.constant 1 : index
    %c0_88 = arith.constant 0 : index
    %c0_89 = arith.constant 0 : index
    %248 = vector.load %arg8[%c1, %c0_88, %c0_89] : memref<3x8x64xf32, #tpu.memory_space<vmem>>, vector<1x8x64xf32>
    %249 = vector.shape_cast %248 : vector<1x8x64xf32> to vector<8x64xf32>
    %250 = vector.extract_strided_slice %249 {offsets = [0, 0], sizes = [1, 32], strides = [1, 1]} : vector<8x64xf32> to vector<1x32xf32>
    %251 = vector.extract_strided_slice %249 {offsets = [1, 0], sizes = [1, 32], strides = [1, 1]} : vector<8x64xf32> to vector<1x32xf32>
    %252 = vector.extract_strided_slice %249 {offsets = [2, 0], sizes = [1, 32], strides = [1, 1]} : vector<8x64xf32> to vector<1x32xf32>
    %253 = vector.extract_strided_slice %249 {offsets = [3, 0], sizes = [1, 32], strides = [1, 1]} : vector<8x64xf32> to vector<1x32xf32>
    %254 = vector.extract_strided_slice %249 {offsets = [4, 0], sizes = [1, 32], strides = [1, 1]} : vector<8x64xf32> to vector<1x32xf32>
    %255 = vector.extract_strided_slice %249 {offsets = [5, 0], sizes = [1, 64], strides = [1, 1]} : vector<8x64xf32> to vector<1x64xf32>
    %256 = vector.extract_strided_slice %249 {offsets = [6, 0], sizes = [1, 32], strides = [1, 1]} : vector<8x64xf32> to vector<1x32xf32>
    %cst_90 = arith.constant dense<0.000000e+00> : vector<16xf32>
    %257 = vector.multi_reduction <add>, %243, %cst_90 [1] : vector<16x32xf32> to vector<16xf32>
    %258 = vector.shape_cast %257 : vector<16xf32> to vector<16x1xf32>
    %cst_91 = arith.constant 3.200000e+01 : f32
    %259 = vector.broadcast %cst_91 : f32 to vector<16x1xf32>
    %260 = arith.divf %258, %259 : vector<16x1xf32>
    %261 = vector.broadcast %260 : vector<16x1xf32> to vector<16x32xf32>
    %262 = arith.subf %243, %261 : vector<16x32xf32>
    %263 = arith.mulf %262, %262 : vector<16x32xf32>
    %cst_92 = arith.constant dense<0.000000e+00> : vector<16xf32>
    %264 = vector.multi_reduction <add>, %263, %cst_92 [1] : vector<16x32xf32> to vector<16xf32>
    %265 = vector.shape_cast %264 : vector<16xf32> to vector<16x1xf32>
    %cst_93 = arith.constant 3.200000e+01 : f32
    %266 = vector.broadcast %cst_93 : f32 to vector<16x1xf32>
    %267 = arith.divf %265, %266 : vector<16x1xf32>
    %268 = vector.broadcast %260 : vector<16x1xf32> to vector<16x32xf32>
    %269 = arith.subf %243, %268 : vector<16x32xf32>
    %cst_94 = arith.constant 9.99999974E-6 : f32
    %270 = vector.broadcast %cst_94 : f32 to vector<16x1xf32>
    %271 = arith.addf %267, %270 : vector<16x1xf32>
    %272 = math.rsqrt %271 : vector<16x1xf32>
    %273 = vector.broadcast %272 : vector<16x1xf32> to vector<16x32xf32>
    %274 = arith.mulf %269, %273 : vector<16x32xf32>
    %275 = vector.broadcast %250 : vector<1x32xf32> to vector<16x32xf32>
    %276 = arith.mulf %274, %275 : vector<16x32xf32>
    %277 = vector.broadcast %251 : vector<1x32xf32> to vector<16x32xf32>
    %278 = arith.addf %276, %277 : vector<16x32xf32>
    %c1_95 = arith.constant 1 : index
    %c0_96 = arith.constant 0 : index
    %c0_97 = arith.constant 0 : index
    %279 = vector.load %arg4[%c1_95, %c0_96, %c0_97] : memref<2x32x96xf32, #tpu.memory_space<vmem>>, vector<1x32x96xf32>
    %280 = vector.shape_cast %279 : vector<1x32x96xf32> to vector<32x96xf32>
    %cst_98 = arith.constant dense<0.000000e+00> : vector<16x96xf32>
    %281 = tpu.matmul %278, %280, %cst_98 {dimension_numbers = #tpu.dot_dimension_numbers<[1], [0], [0], [1], [0, 0, 1, 1], [], []>} : vector<16x32xf32>, vector<32x96xf32>, vector<16x96xf32> -> vector<16x96xf32>
    %282 = vector.extract_strided_slice %281 {offsets = [0, 0], sizes = [8, 8], strides = [1, 1]} : vector<16x96xf32> to vector<8x8xf32>
    %283 = vector.extract_strided_slice %281 {offsets = [0, 32], sizes = [8, 8], strides = [1, 1]} : vector<16x96xf32> to vector<8x8xf32>
    %284 = vector.extract_strided_slice %281 {offsets = [0, 64], sizes = [8, 8], strides = [1, 1]} : vector<16x96xf32> to vector<8x8xf32>
    %cst_99 = arith.constant dense<0.000000e+00> : vector<8x8xf32>
    %285 = tpu.matmul %282, %283, %cst_99 {dimension_numbers = #tpu.dot_dimension_numbers<[1], [1], [0], [0], [0, 0, 1, 0], [], []>} : vector<8x8xf32>, vector<8x8xf32>, vector<8x8xf32> -> vector<8x8xf32>
    %cst_100 = arith.constant dense<0xFF800000> : vector<8xf32>
    %286 = vector.multi_reduction <maximumf>, %285, %cst_100 [1] : vector<8x8xf32> to vector<8xf32>
    %287 = vector.shape_cast %286 : vector<8xf32> to vector<8x1xf32>
    %288 = vector.broadcast %287 : vector<8x1xf32> to vector<8x8xf32>
    %289 = arith.subf %285, %288 : vector<8x8xf32>
    %290 = math.exp %289 : vector<8x8xf32>
    %cst_101 = arith.constant dense<0.000000e+00> : vector<8xf32>
    %291 = vector.multi_reduction <add>, %290, %cst_101 [1] : vector<8x8xf32> to vector<8xf32>
    %292 = vector.shape_cast %291 : vector<8xf32> to vector<8x1xf32>
    %293 = tpu.reciprocal %292 : vector<8x1xf32> -> vector<8x1xf32>
    %294 = vector.broadcast %293 : vector<8x1xf32> to vector<8x8xf32>
    %295 = arith.mulf %290, %294 : vector<8x8xf32>
    %cst_102 = arith.constant dense<0.000000e+00> : vector<8x8xf32>
    %296 = tpu.matmul %295, %284, %cst_102 {dimension_numbers = #tpu.dot_dimension_numbers<[1], [0], [0], [1], [0, 0, 1, 1], [], []>} : vector<8x8xf32>, vector<8x8xf32>, vector<8x8xf32> -> vector<8x8xf32>
    %297 = vector.extract_strided_slice %281 {offsets = [0, 8], sizes = [8, 8], strides = [1, 1]} : vector<16x96xf32> to vector<8x8xf32>
    %298 = vector.extract_strided_slice %281 {offsets = [0, 40], sizes = [8, 8], strides = [1, 1]} : vector<16x96xf32> to vector<8x8xf32>
    %299 = vector.extract_strided_slice %281 {offsets = [0, 72], sizes = [8, 8], strides = [1, 1]} : vector<16x96xf32> to vector<8x8xf32>
    %cst_103 = arith.constant dense<0.000000e+00> : vector<8x8xf32>
    %300 = tpu.matmul %297, %298, %cst_103 {dimension_numbers = #tpu.dot_dimension_numbers<[1], [1], [0], [0], [0, 0, 1, 0], [], []>} : vector<8x8xf32>, vector<8x8xf32>, vector<8x8xf32> -> vector<8x8xf32>
    %cst_104 = arith.constant dense<0xFF800000> : vector<8xf32>
    %301 = vector.multi_reduction <maximumf>, %300, %cst_104 [1] : vector<8x8xf32> to vector<8xf32>
    %302 = vector.shape_cast %301 : vector<8xf32> to vector<8x1xf32>
    %303 = vector.broadcast %302 : vector<8x1xf32> to vector<8x8xf32>
    %304 = arith.subf %300, %303 : vector<8x8xf32>
    %305 = math.exp %304 : vector<8x8xf32>
    %cst_105 = arith.constant dense<0.000000e+00> : vector<8xf32>
    %306 = vector.multi_reduction <add>, %305, %cst_105 [1] : vector<8x8xf32> to vector<8xf32>
    %307 = vector.shape_cast %306 : vector<8xf32> to vector<8x1xf32>
    %308 = tpu.reciprocal %307 : vector<8x1xf32> -> vector<8x1xf32>
    %309 = vector.broadcast %308 : vector<8x1xf32> to vector<8x8xf32>
    %310 = arith.mulf %305, %309 : vector<8x8xf32>
    %cst_106 = arith.constant dense<0.000000e+00> : vector<8x8xf32>
    %311 = tpu.matmul %310, %299, %cst_106 {dimension_numbers = #tpu.dot_dimension_numbers<[1], [0], [0], [1], [0, 0, 1, 1], [], []>} : vector<8x8xf32>, vector<8x8xf32>, vector<8x8xf32> -> vector<8x8xf32>
    %312 = vector.extract_strided_slice %281 {offsets = [0, 16], sizes = [8, 8], strides = [1, 1]} : vector<16x96xf32> to vector<8x8xf32>
    %313 = vector.extract_strided_slice %281 {offsets = [0, 48], sizes = [8, 8], strides = [1, 1]} : vector<16x96xf32> to vector<8x8xf32>
    %314 = vector.extract_strided_slice %281 {offsets = [0, 80], sizes = [8, 8], strides = [1, 1]} : vector<16x96xf32> to vector<8x8xf32>
    %cst_107 = arith.constant dense<0.000000e+00> : vector<8x8xf32>
    %315 = tpu.matmul %312, %313, %cst_107 {dimension_numbers = #tpu.dot_dimension_numbers<[1], [1], [0], [0], [0, 0, 1, 0], [], []>} : vector<8x8xf32>, vector<8x8xf32>, vector<8x8xf32> -> vector<8x8xf32>
    %cst_108 = arith.constant dense<0xFF800000> : vector<8xf32>
    %316 = vector.multi_reduction <maximumf>, %315, %cst_108 [1] : vector<8x8xf32> to vector<8xf32>
    %317 = vector.shape_cast %316 : vector<8xf32> to vector<8x1xf32>
    %318 = vector.broadcast %317 : vector<8x1xf32> to vector<8x8xf32>
    %319 = arith.subf %315, %318 : vector<8x8xf32>
    %320 = math.exp %319 : vector<8x8xf32>
    %cst_109 = arith.constant dense<0.000000e+00> : vector<8xf32>
    %321 = vector.multi_reduction <add>, %320, %cst_109 [1] : vector<8x8xf32> to vector<8xf32>
    %322 = vector.shape_cast %321 : vector<8xf32> to vector<8x1xf32>
    %323 = tpu.reciprocal %322 : vector<8x1xf32> -> vector<8x1xf32>
    %324 = vector.broadcast %323 : vector<8x1xf32> to vector<8x8xf32>
    %325 = arith.mulf %320, %324 : vector<8x8xf32>
    %cst_110 = arith.constant dense<0.000000e+00> : vector<8x8xf32>
    %326 = tpu.matmul %325, %314, %cst_110 {dimension_numbers = #tpu.dot_dimension_numbers<[1], [0], [0], [1], [0, 0, 1, 1], [], []>} : vector<8x8xf32>, vector<8x8xf32>, vector<8x8xf32> -> vector<8x8xf32>
    %327 = vector.extract_strided_slice %281 {offsets = [0, 24], sizes = [8, 8], strides = [1, 1]} : vector<16x96xf32> to vector<8x8xf32>
    %328 = vector.extract_strided_slice %281 {offsets = [0, 56], sizes = [8, 8], strides = [1, 1]} : vector<16x96xf32> to vector<8x8xf32>
    %329 = vector.extract_strided_slice %281 {offsets = [0, 88], sizes = [8, 8], strides = [1, 1]} : vector<16x96xf32> to vector<8x8xf32>
    %cst_111 = arith.constant dense<0.000000e+00> : vector<8x8xf32>
    %330 = tpu.matmul %327, %328, %cst_111 {dimension_numbers = #tpu.dot_dimension_numbers<[1], [1], [0], [0], [0, 0, 1, 0], [], []>} : vector<8x8xf32>, vector<8x8xf32>, vector<8x8xf32> -> vector<8x8xf32>
    %cst_112 = arith.constant dense<0xFF800000> : vector<8xf32>
    %331 = vector.multi_reduction <maximumf>, %330, %cst_112 [1] : vector<8x8xf32> to vector<8xf32>
    %332 = vector.shape_cast %331 : vector<8xf32> to vector<8x1xf32>
    %333 = vector.broadcast %332 : vector<8x1xf32> to vector<8x8xf32>
    %334 = arith.subf %330, %333 : vector<8x8xf32>
    %335 = math.exp %334 : vector<8x8xf32>
    %cst_113 = arith.constant dense<0.000000e+00> : vector<8xf32>
    %336 = vector.multi_reduction <add>, %335, %cst_113 [1] : vector<8x8xf32> to vector<8xf32>
    %337 = vector.shape_cast %336 : vector<8xf32> to vector<8x1xf32>
    %338 = tpu.reciprocal %337 : vector<8x1xf32> -> vector<8x1xf32>
    %339 = vector.broadcast %338 : vector<8x1xf32> to vector<8x8xf32>
    %340 = arith.mulf %335, %339 : vector<8x8xf32>
    %cst_114 = arith.constant dense<0.000000e+00> : vector<8x8xf32>
    %341 = tpu.matmul %340, %329, %cst_114 {dimension_numbers = #tpu.dot_dimension_numbers<[1], [0], [0], [1], [0, 0, 1, 1], [], []>} : vector<8x8xf32>, vector<8x8xf32>, vector<8x8xf32> -> vector<8x8xf32>
    %342 = tpu.concatenate %296, %311, %326, %341 in 1 : vector<8x8xf32>, vector<8x8xf32>, vector<8x8xf32>, vector<8x8xf32> -> vector<8x32xf32>
    %343 = vector.extract_strided_slice %281 {offsets = [8, 0], sizes = [8, 8], strides = [1, 1]} : vector<16x96xf32> to vector<8x8xf32>
    %344 = vector.extract_strided_slice %281 {offsets = [8, 32], sizes = [8, 8], strides = [1, 1]} : vector<16x96xf32> to vector<8x8xf32>
    %345 = vector.extract_strided_slice %281 {offsets = [8, 64], sizes = [8, 8], strides = [1, 1]} : vector<16x96xf32> to vector<8x8xf32>
    %cst_115 = arith.constant dense<0.000000e+00> : vector<8x8xf32>
    %346 = tpu.matmul %343, %344, %cst_115 {dimension_numbers = #tpu.dot_dimension_numbers<[1], [1], [0], [0], [0, 0, 1, 0], [], []>} : vector<8x8xf32>, vector<8x8xf32>, vector<8x8xf32> -> vector<8x8xf32>
    %cst_116 = arith.constant dense<0xFF800000> : vector<8xf32>
    %347 = vector.multi_reduction <maximumf>, %346, %cst_116 [1] : vector<8x8xf32> to vector<8xf32>
    %348 = vector.shape_cast %347 : vector<8xf32> to vector<8x1xf32>
    %349 = vector.broadcast %348 : vector<8x1xf32> to vector<8x8xf32>
    %350 = arith.subf %346, %349 : vector<8x8xf32>
    %351 = math.exp %350 : vector<8x8xf32>
    %cst_117 = arith.constant dense<0.000000e+00> : vector<8xf32>
    %352 = vector.multi_reduction <add>, %351, %cst_117 [1] : vector<8x8xf32> to vector<8xf32>
    %353 = vector.shape_cast %352 : vector<8xf32> to vector<8x1xf32>
    %354 = tpu.reciprocal %353 : vector<8x1xf32> -> vector<8x1xf32>
    %355 = vector.broadcast %354 : vector<8x1xf32> to vector<8x8xf32>
    %356 = arith.mulf %351, %355 : vector<8x8xf32>
    %cst_118 = arith.constant dense<0.000000e+00> : vector<8x8xf32>
    %357 = tpu.matmul %356, %345, %cst_118 {dimension_numbers = #tpu.dot_dimension_numbers<[1], [0], [0], [1], [0, 0, 1, 1], [], []>} : vector<8x8xf32>, vector<8x8xf32>, vector<8x8xf32> -> vector<8x8xf32>
    %358 = vector.extract_strided_slice %281 {offsets = [8, 8], sizes = [8, 8], strides = [1, 1]} : vector<16x96xf32> to vector<8x8xf32>
    %359 = vector.extract_strided_slice %281 {offsets = [8, 40], sizes = [8, 8], strides = [1, 1]} : vector<16x96xf32> to vector<8x8xf32>
    %360 = vector.extract_strided_slice %281 {offsets = [8, 72], sizes = [8, 8], strides = [1, 1]} : vector<16x96xf32> to vector<8x8xf32>
    %cst_119 = arith.constant dense<0.000000e+00> : vector<8x8xf32>
    %361 = tpu.matmul %358, %359, %cst_119 {dimension_numbers = #tpu.dot_dimension_numbers<[1], [1], [0], [0], [0, 0, 1, 0], [], []>} : vector<8x8xf32>, vector<8x8xf32>, vector<8x8xf32> -> vector<8x8xf32>
    %cst_120 = arith.constant dense<0xFF800000> : vector<8xf32>
    %362 = vector.multi_reduction <maximumf>, %361, %cst_120 [1] : vector<8x8xf32> to vector<8xf32>
    %363 = vector.shape_cast %362 : vector<8xf32> to vector<8x1xf32>
    %364 = vector.broadcast %363 : vector<8x1xf32> to vector<8x8xf32>
    %365 = arith.subf %361, %364 : vector<8x8xf32>
    %366 = math.exp %365 : vector<8x8xf32>
    %cst_121 = arith.constant dense<0.000000e+00> : vector<8xf32>
    %367 = vector.multi_reduction <add>, %366, %cst_121 [1] : vector<8x8xf32> to vector<8xf32>
    %368 = vector.shape_cast %367 : vector<8xf32> to vector<8x1xf32>
    %369 = tpu.reciprocal %368 : vector<8x1xf32> -> vector<8x1xf32>
    %370 = vector.broadcast %369 : vector<8x1xf32> to vector<8x8xf32>
    %371 = arith.mulf %366, %370 : vector<8x8xf32>
    %cst_122 = arith.constant dense<0.000000e+00> : vector<8x8xf32>
    %372 = tpu.matmul %371, %360, %cst_122 {dimension_numbers = #tpu.dot_dimension_numbers<[1], [0], [0], [1], [0, 0, 1, 1], [], []>} : vector<8x8xf32>, vector<8x8xf32>, vector<8x8xf32> -> vector<8x8xf32>
    %373 = vector.extract_strided_slice %281 {offsets = [8, 16], sizes = [8, 8], strides = [1, 1]} : vector<16x96xf32> to vector<8x8xf32>
    %374 = vector.extract_strided_slice %281 {offsets = [8, 48], sizes = [8, 8], strides = [1, 1]} : vector<16x96xf32> to vector<8x8xf32>
    %375 = vector.extract_strided_slice %281 {offsets = [8, 80], sizes = [8, 8], strides = [1, 1]} : vector<16x96xf32> to vector<8x8xf32>
    %cst_123 = arith.constant dense<0.000000e+00> : vector<8x8xf32>
    %376 = tpu.matmul %373, %374, %cst_123 {dimension_numbers = #tpu.dot_dimension_numbers<[1], [1], [0], [0], [0, 0, 1, 0], [], []>} : vector<8x8xf32>, vector<8x8xf32>, vector<8x8xf32> -> vector<8x8xf32>
    %cst_124 = arith.constant dense<0xFF800000> : vector<8xf32>
    %377 = vector.multi_reduction <maximumf>, %376, %cst_124 [1] : vector<8x8xf32> to vector<8xf32>
    %378 = vector.shape_cast %377 : vector<8xf32> to vector<8x1xf32>
    %379 = vector.broadcast %378 : vector<8x1xf32> to vector<8x8xf32>
    %380 = arith.subf %376, %379 : vector<8x8xf32>
    %381 = math.exp %380 : vector<8x8xf32>
    %cst_125 = arith.constant dense<0.000000e+00> : vector<8xf32>
    %382 = vector.multi_reduction <add>, %381, %cst_125 [1] : vector<8x8xf32> to vector<8xf32>
    %383 = vector.shape_cast %382 : vector<8xf32> to vector<8x1xf32>
    %384 = tpu.reciprocal %383 : vector<8x1xf32> -> vector<8x1xf32>
    %385 = vector.broadcast %384 : vector<8x1xf32> to vector<8x8xf32>
    %386 = arith.mulf %381, %385 : vector<8x8xf32>
    %cst_126 = arith.constant dense<0.000000e+00> : vector<8x8xf32>
    %387 = tpu.matmul %386, %375, %cst_126 {dimension_numbers = #tpu.dot_dimension_numbers<[1], [0], [0], [1], [0, 0, 1, 1], [], []>} : vector<8x8xf32>, vector<8x8xf32>, vector<8x8xf32> -> vector<8x8xf32>
    %388 = vector.extract_strided_slice %281 {offsets = [8, 24], sizes = [8, 8], strides = [1, 1]} : vector<16x96xf32> to vector<8x8xf32>
    %389 = vector.extract_strided_slice %281 {offsets = [8, 56], sizes = [8, 8], strides = [1, 1]} : vector<16x96xf32> to vector<8x8xf32>
    %390 = vector.extract_strided_slice %281 {offsets = [8, 88], sizes = [8, 8], strides = [1, 1]} : vector<16x96xf32> to vector<8x8xf32>
    %cst_127 = arith.constant dense<0.000000e+00> : vector<8x8xf32>
    %391 = tpu.matmul %388, %389, %cst_127 {dimension_numbers = #tpu.dot_dimension_numbers<[1], [1], [0], [0], [0, 0, 1, 0], [], []>} : vector<8x8xf32>, vector<8x8xf32>, vector<8x8xf32> -> vector<8x8xf32>
    %cst_128 = arith.constant dense<0xFF800000> : vector<8xf32>
    %392 = vector.multi_reduction <maximumf>, %391, %cst_128 [1] : vector<8x8xf32> to vector<8xf32>
    %393 = vector.shape_cast %392 : vector<8xf32> to vector<8x1xf32>
    %394 = vector.broadcast %393 : vector<8x1xf32> to vector<8x8xf32>
    %395 = arith.subf %391, %394 : vector<8x8xf32>
    %396 = math.exp %395 : vector<8x8xf32>
    %cst_129 = arith.constant dense<0.000000e+00> : vector<8xf32>
    %397 = vector.multi_reduction <add>, %396, %cst_129 [1] : vector<8x8xf32> to vector<8xf32>
    %398 = vector.shape_cast %397 : vector<8xf32> to vector<8x1xf32>
    %399 = tpu.reciprocal %398 : vector<8x1xf32> -> vector<8x1xf32>
    %400 = vector.broadcast %399 : vector<8x1xf32> to vector<8x8xf32>
    %401 = arith.mulf %396, %400 : vector<8x8xf32>
    %cst_130 = arith.constant dense<0.000000e+00> : vector<8x8xf32>
    %402 = tpu.matmul %401, %390, %cst_130 {dimension_numbers = #tpu.dot_dimension_numbers<[1], [0], [0], [1], [0, 0, 1, 1], [], []>} : vector<8x8xf32>, vector<8x8xf32>, vector<8x8xf32> -> vector<8x8xf32>
    %403 = tpu.concatenate %357, %372, %387, %402 in 1 : vector<8x8xf32>, vector<8x8xf32>, vector<8x8xf32>, vector<8x8xf32> -> vector<8x32xf32>
    %404 = tpu.concatenate %342, %403 in 0 : vector<8x32xf32>, vector<8x32xf32> -> vector<16x32xf32>
    %c1_131 = arith.constant 1 : index
    %c0_132 = arith.constant 0 : index
    %c0_133 = arith.constant 0 : index
    %405 = vector.load %arg5[%c1_131, %c0_132, %c0_133] : memref<2x32x32xf32, #tpu.memory_space<vmem>>, vector<1x32x32xf32>
    %406 = vector.shape_cast %405 : vector<1x32x32xf32> to vector<32x32xf32>
    %cst_134 = arith.constant dense<0.000000e+00> : vector<16x32xf32>
    %407 = tpu.matmul %404, %406, %cst_134 {dimension_numbers = #tpu.dot_dimension_numbers<[1], [0], [0], [1], [0, 0, 1, 1], [], []>} : vector<16x32xf32>, vector<32x32xf32>, vector<16x32xf32> -> vector<16x32xf32>
    %408 = arith.addf %243, %407 : vector<16x32xf32>
    %409 = vector.broadcast %252 : vector<1x32xf32> to vector<16x32xf32>
    %410 = arith.addf %408, %409 : vector<16x32xf32>
    %cst_135 = arith.constant dense<0.000000e+00> : vector<16xf32>
    %411 = vector.multi_reduction <add>, %410, %cst_135 [1] : vector<16x32xf32> to vector<16xf32>
    %412 = vector.shape_cast %411 : vector<16xf32> to vector<16x1xf32>
    %cst_136 = arith.constant 3.200000e+01 : f32
    %413 = vector.broadcast %cst_136 : f32 to vector<16x1xf32>
    %414 = arith.divf %412, %413 : vector<16x1xf32>
    %415 = vector.broadcast %414 : vector<16x1xf32> to vector<16x32xf32>
    %416 = arith.subf %410, %415 : vector<16x32xf32>
    %417 = arith.mulf %416, %416 : vector<16x32xf32>
    %cst_137 = arith.constant dense<0.000000e+00> : vector<16xf32>
    %418 = vector.multi_reduction <add>, %417, %cst_137 [1] : vector<16x32xf32> to vector<16xf32>
    %419 = vector.shape_cast %418 : vector<16xf32> to vector<16x1xf32>
    %cst_138 = arith.constant 3.200000e+01 : f32
    %420 = vector.broadcast %cst_138 : f32 to vector<16x1xf32>
    %421 = arith.divf %419, %420 : vector<16x1xf32>
    %422 = vector.broadcast %414 : vector<16x1xf32> to vector<16x32xf32>
    %423 = arith.subf %410, %422 : vector<16x32xf32>
    %cst_139 = arith.constant 9.99999974E-6 : f32
    %424 = vector.broadcast %cst_139 : f32 to vector<16x1xf32>
    %425 = arith.addf %421, %424 : vector<16x1xf32>
    %426 = math.rsqrt %425 : vector<16x1xf32>
    %427 = vector.broadcast %426 : vector<16x1xf32> to vector<16x32xf32>
    %428 = arith.mulf %423, %427 : vector<16x32xf32>
    %429 = vector.broadcast %253 : vector<1x32xf32> to vector<16x32xf32>
    %430 = arith.mulf %428, %429 : vector<16x32xf32>
    %431 = vector.broadcast %254 : vector<1x32xf32> to vector<16x32xf32>
    %432 = arith.addf %430, %431 : vector<16x32xf32>
    %c1_140 = arith.constant 1 : index
    %c0_141 = arith.constant 0 : index
    %c0_142 = arith.constant 0 : index
    %433 = vector.load %arg6[%c1_140, %c0_141, %c0_142] : memref<2x32x64xf32, #tpu.memory_space<vmem>>, vector<1x32x64xf32>
    %434 = vector.shape_cast %433 : vector<1x32x64xf32> to vector<32x64xf32>
    %cst_143 = arith.constant dense<0.000000e+00> : vector<16x64xf32>
    %435 = tpu.matmul %432, %434, %cst_143 {dimension_numbers = #tpu.dot_dimension_numbers<[1], [0], [0], [1], [0, 0, 1, 1], [], []>} : vector<16x32xf32>, vector<32x64xf32>, vector<16x64xf32> -> vector<16x64xf32>
    %436 = vector.broadcast %255 : vector<1x64xf32> to vector<16x64xf32>
    %437 = arith.addf %435, %436 : vector<16x64xf32>
    %cst_144 = arith.constant 5.000000e-01 : f32
    %438 = vector.broadcast %cst_144 : f32 to vector<16x64xf32>
    %439 = arith.mulf %438, %437 : vector<16x64xf32>
    %cst_145 = arith.constant 0.707106769 : f32
    %440 = vector.broadcast %cst_145 : f32 to vector<16x64xf32>
    %441 = arith.mulf %437, %440 : vector<16x64xf32>
    %cst_146 = arith.constant 0.000000e+00 : f32
    %442 = vector.broadcast %cst_146 : f32 to vector<16x64xf32>
    %443 = arith.cmpf olt, %441, %442 : vector<16x64xf32>
    %cst_147 = arith.constant -1.000000e+00 : f32
    %cst_148 = arith.constant 1.000000e+00 : f32
    %444 = vector.broadcast %cst_147 : f32 to vector<16x64xf32>
    %445 = vector.broadcast %cst_148 : f32 to vector<16x64xf32>
    %446 = arith.select %443, %444, %445 : vector<16x64xi1>, vector<16x64xf32>
    %447 = math.absf %441 : vector<16x64xf32>
    %cst_149 = arith.constant 0.327591091 : f32
    %448 = vector.broadcast %cst_149 : f32 to vector<16x64xf32>
    %449 = arith.mulf %448, %447 : vector<16x64xf32>
    %cst_150 = arith.constant 1.000000e+00 : f32
    %450 = vector.broadcast %cst_150 : f32 to vector<16x64xf32>
    %451 = arith.addf %450, %449 : vector<16x64xf32>
    %cst_151 = arith.constant 1.000000e+00 : f32
    %452 = vector.broadcast %cst_151 : f32 to vector<16x64xf32>
    %453 = arith.divf %452, %451 : vector<16x64xf32>
    %cst_152 = arith.constant 1.06140542 : f32
    %454 = vector.broadcast %cst_152 : f32 to vector<16x64xf32>
    %455 = arith.mulf %454, %453 : vector<16x64xf32>
    %cst_153 = arith.constant -1.45315206 : f32
    %456 = vector.broadcast %cst_153 : f32 to vector<16x64xf32>
    %457 = arith.addf %455, %456 : vector<16x64xf32>
    %458 = arith.mulf %457, %453 : vector<16x64xf32>
    %cst_154 = arith.constant 1.42141378 : f32
    %459 = vector.broadcast %cst_154 : f32 to vector<16x64xf32>
    %460 = arith.addf %458, %459 : vector<16x64xf32>
    %461 = arith.mulf %460, %453 : vector<16x64xf32>
    %cst_155 = arith.constant -0.284496725 : f32
    %462 = vector.broadcast %cst_155 : f32 to vector<16x64xf32>
    %463 = arith.addf %461, %462 : vector<16x64xf32>
    %464 = arith.mulf %463, %453 : vector<16x64xf32>
    %cst_156 = arith.constant 0.254829586 : f32
    %465 = vector.broadcast %cst_156 : f32 to vector<16x64xf32>
    %466 = arith.addf %464, %465 : vector<16x64xf32>
    %467 = arith.mulf %466, %453 : vector<16x64xf32>
    %cst_157 = arith.constant 0.000000e+00 : f32
    %468 = vector.broadcast %cst_157 : f32 to vector<16x64xf32>
    %469 = arith.subf %468, %447 : vector<16x64xf32>
    %470 = arith.mulf %469, %447 : vector<16x64xf32>
    %471 = math.exp %470 : vector<16x64xf32>
    %472 = arith.mulf %467, %471 : vector<16x64xf32>
    %cst_158 = arith.constant 1.000000e+00 : f32
    %473 = vector.broadcast %cst_158 : f32 to vector<16x64xf32>
    %474 = arith.subf %473, %472 : vector<16x64xf32>
    %475 = arith.mulf %446, %474 : vector<16x64xf32>
    %cst_159 = arith.constant 1.000000e+00 : f32
    %476 = vector.broadcast %cst_159 : f32 to vector<16x64xf32>
    %477 = arith.addf %476, %475 : vector<16x64xf32>
    %478 = arith.mulf %439, %477 : vector<16x64xf32>
    %c1_160 = arith.constant 1 : index
    %c0_161 = arith.constant 0 : index
    %c0_162 = arith.constant 0 : index
    %479 = vector.load %arg7[%c1_160, %c0_161, %c0_162] : memref<2x64x32xf32, #tpu.memory_space<vmem>>, vector<1x64x32xf32>
    %480 = vector.shape_cast %479 : vector<1x64x32xf32> to vector<64x32xf32>
    %cst_163 = arith.constant dense<0.000000e+00> : vector<16x32xf32>
    %481 = tpu.matmul %478, %480, %cst_163 {dimension_numbers = #tpu.dot_dimension_numbers<[1], [0], [0], [1], [0, 0, 1, 1], [], []>} : vector<16x64xf32>, vector<64x32xf32>, vector<16x32xf32> -> vector<16x32xf32>
    %482 = arith.addf %410, %481 : vector<16x32xf32>
    %483 = vector.broadcast %256 : vector<1x32xf32> to vector<16x32xf32>
    %484 = arith.addf %482, %483 : vector<16x32xf32>
    %485 = vector.shape_cast %484 : vector<16x32xf32> to vector<2x8x32xf32>
    %c1_164 = arith.constant 1 : index
    %c0_165 = arith.constant 0 : index
    %c0_166 = arith.constant 0 : index
    %c0_167 = arith.constant 0 : index
    %486 = vector.load %arg9[%c1_164, %c0_165, %c0_166, %c0_167] : memref<3x2x8x32xf32, #tpu.memory_space<vmem>>, vector<1x2x8x32xf32>
    %487 = vector.shape_cast %486 : vector<1x2x8x32xf32> to vector<2x8x32xf32>
    %488 = vector.shape_cast %485 : vector<2x8x32xf32> to vector<1x2x8x32xf32>
    tpu.vector_store %arg9[%c1_164, %c0_165, %c0_166, %c0_167], %488 {strides = array<i32>} : memref<3x2x8x32xf32, #tpu.memory_space<vmem>>, vector<1x2x8x32xf32>,
    %c2 = arith.constant 2 : index
    %c0_168 = arith.constant 0 : index
    %c0_169 = arith.constant 0 : index
    %489 = vector.load %arg8[%c2, %c0_168, %c0_169] : memref<3x8x64xf32, #tpu.memory_space<vmem>>, vector<1x8x64xf32>
    %490 = vector.shape_cast %489 : vector<1x8x64xf32> to vector<8x64xf32>
    %491 = vector.extract_strided_slice %490 {offsets = [0, 0], sizes = [1, 32], strides = [1, 1]} : vector<8x64xf32> to vector<1x32xf32>
    %492 = vector.extract_strided_slice %490 {offsets = [1, 0], sizes = [1, 32], strides = [1, 1]} : vector<8x64xf32> to vector<1x32xf32>
    %cst_170 = arith.constant dense<0.000000e+00> : vector<16xf32>
    %493 = vector.multi_reduction <add>, %484, %cst_170 [1] : vector<16x32xf32> to vector<16xf32>
    %494 = vector.shape_cast %493 : vector<16xf32> to vector<16x1xf32>
    %cst_171 = arith.constant 3.200000e+01 : f32
    %495 = vector.broadcast %cst_171 : f32 to vector<16x1xf32>
    %496 = arith.divf %494, %495 : vector<16x1xf32>
    %497 = vector.broadcast %496 : vector<16x1xf32> to vector<16x32xf32>
    %498 = arith.subf %484, %497 : vector<16x32xf32>
    %499 = arith.mulf %498, %498 : vector<16x32xf32>
    %cst_172 = arith.constant dense<0.000000e+00> : vector<16xf32>
    %500 = vector.multi_reduction <add>, %499, %cst_172 [1] : vector<16x32xf32> to vector<16xf32>
    %501 = vector.shape_cast %500 : vector<16xf32> to vector<16x1xf32>
    %cst_173 = arith.constant 3.200000e+01 : f32
    %502 = vector.broadcast %cst_173 : f32 to vector<16x1xf32>
    %503 = arith.divf %501, %502 : vector<16x1xf32>
    %504 = vector.broadcast %496 : vector<16x1xf32> to vector<16x32xf32>
    %505 = arith.subf %484, %504 : vector<16x32xf32>
    %cst_174 = arith.constant 9.99999974E-6 : f32
    %506 = vector.broadcast %cst_174 : f32 to vector<16x1xf32>
    %507 = arith.addf %503, %506 : vector<16x1xf32>
    %508 = math.rsqrt %507 : vector<16x1xf32>
    %509 = vector.broadcast %508 : vector<16x1xf32> to vector<16x32xf32>
    %510 = arith.mulf %505, %509 : vector<16x32xf32>
    %511 = vector.broadcast %491 : vector<1x32xf32> to vector<16x32xf32>
    %512 = arith.mulf %510, %511 : vector<16x32xf32>
    %513 = vector.broadcast %492 : vector<1x32xf32> to vector<16x32xf32>
    %514 = arith.addf %512, %513 : vector<16x32xf32>
    %515 = vector.shape_cast %514 : vector<16x32xf32> to vector<2x8x32xf32>
    %c2_175 = arith.constant 2 : index
    %c0_176 = arith.constant 0 : index
    %c0_177 = arith.constant 0 : index
    %c0_178 = arith.constant 0 : index
    %516 = vector.load %arg9[%c2_175, %c0_176, %c0_177, %c0_178] : memref<3x2x8x32xf32, #tpu.memory_space<vmem>>, vector<1x2x8x32xf32>
    %517 = vector.shape_cast %516 : vector<1x2x8x32xf32> to vector<2x8x32xf32>
    %518 = vector.shape_cast %515 : vector<2x8x32xf32> to vector<1x2x8x32xf32>
    tpu.vector_store %arg9[%c2_175, %c0_176, %c0_177, %c0_178], %518 {strides = array<i32>} : memref<3x2x8x32xf32, #tpu.memory_space<vmem>>, vector<1x2x8x32xf32>,
    return
  }
  func.func @transform_0(%arg0: i32) -> (i32, i32, i32) {
    %c0_i32 = arith.constant 0 : i32
    %c0_i32_0 = arith.constant 0 : i32
    %c0_i32_1 = arith.constant 0 : i32
    return %arg0, %c0_i32, %c0_i32_0 : i32, i32, i32
  }
  func.func @transform_1(%arg0: i32) -> (i32, i32) {
    %c0_i32 = arith.constant 0 : i32
    %c0_i32_0 = arith.constant 0 : i32
    %c0_i32_1 = arith.constant 0 : i32
    return %c0_i32, %c0_i32_0 : i32, i32
  }
  func.func @transform_2(%arg0: i32) -> (i32, i32, i32) {
    %c0_i32 = arith.constant 0 : i32
    %c0_i32_0 = arith.constant 0 : i32
    %c0_i32_1 = arith.constant 0 : i32
    return %arg0, %c0_i32, %c0_i32_0 : i32, i32, i32
  }
  func.func @transform_3(%arg0: i32) -> (i32, i32, i32) {
    %c0_i32 = arith.constant 0 : i32
    %c0_i32_0 = arith.constant 0 : i32
    %c0_i32_1 = arith.constant 0 : i32
    %c0_i32_2 = arith.constant 0 : i32
    return %c0_i32, %c0_i32_0, %c0_i32_1 : i32, i32, i32
  }
  func.func @transform_4(%arg0: i32) -> (i32, i32, i32) {
    %c0_i32 = arith.constant 0 : i32
    %c0_i32_0 = arith.constant 0 : i32
    %c0_i32_1 = arith.constant 0 : i32
    %c0_i32_2 = arith.constant 0 : i32
    return %c0_i32, %c0_i32_0, %c0_i32_1 : i32, i32, i32
  }
  func.func @transform_5(%arg0: i32) -> (i32, i32, i32) {
    %c0_i32 = arith.constant 0 : i32
    %c0_i32_0 = arith.constant 0 : i32
    %c0_i32_1 = arith.constant 0 : i32
    %c0_i32_2 = arith.constant 0 : i32
    return %c0_i32, %c0_i32_0, %c0_i32_1 : i32, i32, i32
  }
  func.func @transform_6(%arg0: i32) -> (i32, i32, i32) {
    %c0_i32 = arith.constant 0 : i32
    %c0_i32_0 = arith.constant 0 : i32
    %c0_i32_1 = arith.constant 0 : i32
    %c0_i32_2 = arith.constant 0 : i32
    return %c0_i32, %c0_i32_0, %c0_i32_1 : i32, i32, i32
  }
  func.func @transform_7(%arg0: i32) -> (i32, i32, i32) {
    %c0_i32 = arith.constant 0 : i32
    %c0_i32_0 = arith.constant 0 : i32
    %c0_i32_1 = arith.constant 0 : i32
    %c0_i32_2 = arith.constant 0 : i32
    return %c0_i32, %c0_i32_0, %c0_i32_1 : i32, i32, i32
  }
  func.func @transform_8(%arg0: i32) -> (i32, i32, i32, i32) {
    %c0_i32 = arith.constant 0 : i32
    %c0_i32_0 = arith.constant 0 : i32
    %c0_i32_1 = arith.constant 0 : i32
    %c0_i32_2 = arith.constant 0 : i32
    return %c0_i32, %arg0, %c0_i32_0, %c0_i32_1 : i32, i32, i32, i32
  }
}

</mosaic_0001>

<llo_original>
// kernel: tpu_custom_call.1
$region0: #{tpu_custom_call.1}
  #allocation0 [shape = 'u32[]', space=smem, size = 0x4, offset = 0x4, fixed_abs, tag = 'smem constant byte address 0x4 - core index']
  #allocation1 [shape = 'u32[72,128]{1,0:T(1,128)}', space=vmem, size = 0x9000, scoped, tag = 'internal scratch']
  %s0 = inlined_call_operand.vmem [shape: f32[2,8,512], index: 0, kind: input, shape index: {}]
  %s1 = inlined_call_operand.vmem [shape: f32[512,32], index: 1, kind: input, shape index: {}]
  %s2 = inlined_call_operand.vmem [shape: f32[2,8,32], index: 2, kind: input, shape index: {}]
  %s3 = inlined_call_operand.vmem [shape: f32[2,32,96], index: 3, kind: input, shape index: {}]
  %s4 = inlined_call_operand.vmem [shape: f32[2,32,32], index: 4, kind: input, shape index: {}]
  %s5 = inlined_call_operand.vmem [shape: f32[2,32,64], index: 5, kind: input, shape index: {}]
  %s6 = inlined_call_operand.vmem [shape: f32[2,64,32], index: 6, kind: input, shape index: {}]
  %s7 = inlined_call_operand.vmem [shape: f32[3,8,64], index: 7, kind: input, shape index: {}]
  %s8 = inlined_call_operand.hbm [shape: f32[3,2,8,32], index: 8, kind: output, shape index: {}]
  %s9 = sld [smem:[#allocation0]]
  $region42: #{tpu_custom_call.1} parent=0
    _
  %s11 = ssub.s32 1, %s9
  %s12 = scalar_select 0, %s11, %s9
  $region1: #{tpu_custom_call.1} parent=0
    #allocation2 [shape = 'u8[24576]{0}', space=vmem, size = 0x6000, scoped, tag = 'output window, operand 0, single buffered']
    #allocation3 [shape = 's32[1]{0}', space=sflag, size = 0x4, scoped, tag = 'scoped memory for tpu_custom_call.1']
    %13 = vsyncpa [#allocation3], 0
    // Predicated region
    $region2: #{tpu_custom_call.1} parent=1 // pred_check
      _
    $region3: #{tpu_custom_call.1} parent=1 // pred_check_branch
      %15 = sbr.rel (0) target = $region5
    $region4: #{tpu_custom_call.1} parent=1 // pred_region
      _
    $region5: #{tpu_custom_call.1} parent=1 // pred_fallthru
      _
    // Predicated region
    $region6: #{tpu_custom_call.1} parent=1 // pred_check
      _
    $region7: #{tpu_custom_call.1} parent=1 // pred_check_branch
      %17 = sbr.rel (0) target = $region9
    $region8: #{tpu_custom_call.1} parent=1 // pred_region
      _
    $region9: #{tpu_custom_call.1} parent=1 // pred_fallthru
      _
    // Predicated region
    $region10: #{tpu_custom_call.1} parent=1 // pred_check
      _
    $region11: #{tpu_custom_call.1} parent=1 // pred_check_branch
      %19 = sbr.rel (0) target = $region13
    $region12: #{tpu_custom_call.1} parent=1 // pred_region
      _
    $region13: #{tpu_custom_call.1} parent=1 // pred_fallthru
      _
    // Predicated region
    $region14: #{tpu_custom_call.1} parent=1 // pred_check
      _
    $region15: #{tpu_custom_call.1} parent=1 // pred_check_branch
      %21 = sbr.rel (0) target = $region17
    $region16: #{tpu_custom_call.1} parent=1 // pred_region
      _
    $region17: #{tpu_custom_call.1} parent=1 // pred_fallthru
      _
    // Predicated region
    $region18: #{tpu_custom_call.1} parent=1 // pred_check
      _
    $region19: #{tpu_custom_call.1} parent=1 // pred_check_branch
      %23 = sbr.rel (0) target = $region21
    $region20: #{tpu_custom_call.1} parent=1 // pred_region
      _
    $region21: #{tpu_custom_call.1} parent=1 // pred_fallthru
      _
    // Predicated region
    $region22: #{tpu_custom_call.1} parent=1 // pred_check
      _
    $region23: #{tpu_custom_call.1} parent=1 // pred_check_branch
      %25 = sbr.rel (0) target = $region25
    $region24: #{tpu_custom_call.1} parent=1 // pred_region
      _
    $region25: #{tpu_custom_call.1} parent=1 // pred_fallthru
      _
    // Predicated region
    $region26: #{tpu_custom_call.1} parent=1 // pred_check
      _
    $region27: #{tpu_custom_call.1} parent=1 // pred_check_branch
      %27 = sbr.rel (0) target = $region29
    $region28: #{tpu_custom_call.1} parent=1 // pred_region
      _
    $region29: #{tpu_custom_call.1} parent=1 // pred_fallthru
      _
    // Predicated region
    $region30: #{tpu_custom_call.1} parent=1 // pred_check
      _
    $region31: #{tpu_custom_call.1} parent=1 // pred_check_branch
      %29 = sbr.rel (0) target = $region33
    $region32: #{tpu_custom_call.1} parent=1 // pred_region
      _
    $region33: #{tpu_custom_call.1} parent=1 // pred_fallthru
      _
    %v30 = vld [vmem:[%s0] sm:$0xff]
    %v31 = vld [vmem:[%s0 + $0x8] sm:$0xff]
    %v32 = vld [vmem:[%s0 + $0x10] sm:$0xff]
    %v33 = vld [vmem:[%s0 + $0x18] sm:$0xff]
    %v34 = vld [vmem:[%s0 + $0x20] sm:$0xff]
    %v35 = vld [vmem:[%s0 + $0x28] sm:$0xff]
    %v36 = vld [vmem:[%s0 + $0x30] sm:$0xff]
    %v37 = vld [vmem:[%s0 + $0x38] sm:$0xff]
    %v38 = vld [vmem:[%s1] sm:$0xff]
    %v39 = vld [vmem:[%s1 + $0x8] sm:$0xff]
    %v40 = vld [vmem:[%s1 + $0x10] sm:$0xff]
    %v41 = vld [vmem:[%s1 + $0x18] sm:$0xff]
    %v42 = vld [vmem:[%s1 + $0x20] sm:$0xff]
    %v43 = vld [vmem:[%s1 + $0x28] sm:$0xff]
    %v44 = vld [vmem:[%s1 + $0x30] sm:$0xff]
    %v45 = vld [vmem:[%s1 + $0x38] sm:$0xff]
    %v46 = vld [vmem:[%s1 + $0x40] sm:$0xff]
    %v47 = vld [vmem:[%s1 + $0x48] sm:$0xff]
    %v48 = vld [vmem:[%s1 + $0x50] sm:$0xff]
    %v49 = vld [vmem:[%s1 + $0x58] sm:$0xff]
    %v50 = vld [vmem:[%s1 + $0x60] sm:$0xff]
    %v51 = vld [vmem:[%s1 + $0x68] sm:$0xff]
    %v52 = vld [vmem:[%s1 + $0x70] sm:$0xff]
    %v53 = vld [vmem:[%s1 + $0x78] sm:$0xff]
    %v54 = vld [vmem:[%s1 + $0x80] sm:$0xff]
    %v55 = vld [vmem:[%s1 + $0x88] sm:$0xff]
    %v56 = vld [vmem:[%s1 + $0x90] sm:$0xff]
    %v57 = vld [vmem:[%s1 + $0x98] sm:$0xff]
    %v58 = vld [vmem:[%s1 + $0xa0] sm:$0xff]
    %v59 = vld [vmem:[%s1 + $0xa8] sm:$0xff]
    %v60 = vld [vmem:[%s1 + $0xb0] sm:$0xff]
    %v61 = vld [vmem:[%s1 + $0xb8] sm:$0xff]
    %v62 = vld [vmem:[%s1 + $0xc0] sm:$0xff]
    %v63 = vld [vmem:[%s1 + $0xc8] sm:$0xff]
    %v64 = vld [vmem:[%s1 + $0xd0] sm:$0xff]
    %v65 = vld [vmem:[%s1 + $0xd8] sm:$0xff]
    %v66 = vld [vmem:[%s1 + $0xe0] sm:$0xff]
    %v67 = vld [vmem:[%s1 + $0xe8] sm:$0xff]
    %v68 = vld [vmem:[%s1 + $0xf0] sm:$0xff]
    %v69 = vld [vmem:[%s1 + $0xf8] sm:$0xff]
    %v70 = vld [vmem:[%s1 + $0x100] sm:$0xff]
    %v71 = vld [vmem:[%s1 + $0x108] sm:$0xff]
    %v72 = vld [vmem:[%s1 + $0x110] sm:$0xff]
    %v73 = vld [vmem:[%s1 + $0x118] sm:$0xff]
    %v74 = vld [vmem:[%s1 + $0x120] sm:$0xff]
    %v75 = vld [vmem:[%s1 + $0x128] sm:$0xff]
    %v76 = vld [vmem:[%s1 + $0x130] sm:$0xff]
    %v77 = vld [vmem:[%s1 + $0x138] sm:$0xff]
    %v78 = vld [vmem:[%s1 + $0x140] sm:$0xff]
    %v79 = vld [vmem:[%s1 + $0x148] sm:$0xff]
    %v80 = vld [vmem:[%s1 + $0x150] sm:$0xff]
    %v81 = vld [vmem:[%s1 + $0x158] sm:$0xff]
    %v82 = vld [vmem:[%s1 + $0x160] sm:$0xff]
    %v83 = vld [vmem:[%s1 + $0x168] sm:$0xff]
    %v84 = vld [vmem:[%s1 + $0x170] sm:$0xff]
    %v85 = vld [vmem:[%s1 + $0x178] sm:$0xff]
    %v86 = vld [vmem:[%s1 + $0x180] sm:$0xff]
    %v87 = vld [vmem:[%s1 + $0x188] sm:$0xff]
    %v88 = vld [vmem:[%s1 + $0x190] sm:$0xff]
    %v89 = vld [vmem:[%s1 + $0x198] sm:$0xff]
    %v90 = vld [vmem:[%s1 + $0x1a0] sm:$0xff]
    %v91 = vld [vmem:[%s1 + $0x1a8] sm:$0xff]
    %v92 = vld [vmem:[%s1 + $0x1b0] sm:$0xff]
    %v93 = vld [vmem:[%s1 + $0x1b8] sm:$0xff]
    %v94 = vld [vmem:[%s1 + $0x1c0] sm:$0xff]
    %v95 = vld [vmem:[%s1 + $0x1c8] sm:$0xff]
    %v96 = vld [vmem:[%s1 + $0x1d0] sm:$0xff]
    %v97 = vld [vmem:[%s1 + $0x1d8] sm:$0xff]
    %v98 = vld [vmem:[%s1 + $0x1e0] sm:$0xff]
    %v99 = vld [vmem:[%s1 + $0x1e8] sm:$0xff]
    %v100 = vld [vmem:[%s1 + $0x1f0] sm:$0xff]
    %v101 = vld [vmem:[%s1 + $0x1f8] sm:$0xff]
    %v102 = vld [vmem:[%s2] sm:$0xff]
    %v103 = vld [vmem:[%s2 + $0x8] sm:$0xff]
    %104 = vmatpush.msra.mxu0 %v53
    %105 = vmatpush.msra.mxu0 %v52
    %106 = vmatpush.msra.mxu0 %v51
    %107 = vmatpush.msra.mxu0 %v50
    %108 = vmatpush.msra.mxu0 %v49
    %109 = vmatpush.msra.mxu0 %v48
    %110 = vmatpush.msra.mxu0 %v47
    %111 = vmatpush.msra.mxu0 %v46
    %112 = vmatpush.msra.mxu0 %v45
    %113 = vmatpush.msra.mxu0 %v44
    %114 = vmatpush.msra.mxu0 %v43
    %115 = vmatpush.msra.mxu0 %v42
    %116 = vmatpush.msra.mxu0 %v41
    %117 = vmatpush.msra.mxu0 %v40
    %118 = vmatpush.msra.mxu0 %v39
    %119 = vmatpush.msra.mxu0 %v38
    %120 = vmatmul.f32.gmra.mxu0 %v30
    %v121 = vpop.f32.mrf.mxu0
    %v122 = vadd.f32 %v102, %v121
    %123 = vmatmul.f32.gmra.mxu0 %v34
    %v124 = vpop.f32.mrf.mxu0
    %v125 = vadd.f32 %v103, %v124
    %126 = vdwg.mxu0
    %127 = vmatpush.msra.mxu0 %v69
    %128 = vmatpush.msra.mxu0 %v68
    %129 = vmatpush.msra.mxu0 %v67
    %130 = vmatpush.msra.mxu0 %v66
    %131 = vmatpush.msra.mxu0 %v65
    %132 = vmatpush.msra.mxu0 %v64
    %133 = vmatpush.msra.mxu0 %v63
    %134 = vmatpush.msra.mxu0 %v62
    %135 = vmatpush.msra.mxu0 %v61
    %136 = vmatpush.msra.mxu0 %v60
    %137 = vmatpush.msra.mxu0 %v59
    %138 = vmatpush.msra.mxu0 %v58
    %139 = vmatpush.msra.mxu0 %v57
    %140 = vmatpush.msra.mxu0 %v56
    %141 = vmatpush.msra.mxu0 %v55
    %142 = vmatpush.msra.mxu0 %v54
    %143 = vmatmul.f32.gmra.mxu0 %v31
    %v144 = vpop.f32.mrf.mxu0
    %v145 = vadd.f32 %v122, %v144
    %146 = vmatmul.f32.gmra.mxu0 %v35
    %v147 = vpop.f32.mrf.mxu0
    %v148 = vadd.f32 %v125, %v147
    %149 = vdwg.mxu0
    %150 = vmatpush.msra.mxu0 %v85
    %151 = vmatpush.msra.mxu0 %v84
    %152 = vmatpush.msra.mxu0 %v83
    %153 = vmatpush.msra.mxu0 %v82
    %154 = vmatpush.msra.mxu0 %v81
    %155 = vmatpush.msra.mxu0 %v80
    %156 = vmatpush.msra.mxu0 %v79
    %157 = vmatpush.msra.mxu0 %v78
    %158 = vmatpush.msra.mxu0 %v77
    %159 = vmatpush.msra.mxu0 %v76
    %160 = vmatpush.msra.mxu0 %v75
    %161 = vmatpush.msra.mxu0 %v74
    %162 = vmatpush.msra.mxu0 %v73
    %163 = vmatpush.msra.mxu0 %v72
    %164 = vmatpush.msra.mxu0 %v71
    %165 = vmatpush.msra.mxu0 %v70
    %166 = vmatmul.f32.gmra.mxu0 %v32
    %v167 = vpop.f32.mrf.mxu0
    %v168 = vadd.f32 %v145, %v167
    %169 = vmatmul.f32.gmra.mxu0 %v36
    %v170 = vpop.f32.mrf.mxu0
    %v171 = vadd.f32 %v148, %v170
    %172 = vdwg.mxu0
    %173 = vmatpush.msra.mxu0 %v101
    %174 = vmatpush.msra.mxu0 %v100
    %175 = vmatpush.msra.mxu0 %v99
    %176 = vmatpush.msra.mxu0 %v98
    %177 = vmatpush.msra.mxu0 %v97
    %178 = vmatpush.msra.mxu0 %v96
    %179 = vmatpush.msra.mxu0 %v95
    %180 = vmatpush.msra.mxu0 %v94
    %181 = vmatpush.msra.mxu0 %v93
    %182 = vmatpush.msra.mxu0 %v92
    %183 = vmatpush.msra.mxu0 %v91
    %184 = vmatpush.msra.mxu0 %v90
    %185 = vmatpush.msra.mxu0 %v89
    %186 = vmatpush.msra.mxu0 %v88
    %187 = vmatpush.msra.mxu0 %v87
    %188 = vmatpush.msra.mxu0 %v86
    %189 = vmatmul.f32.gmra.mxu0 %v33
    %v190 = vpop.f32.mrf.mxu0
    %v191 = vadd.f32 %v168, %v190
    %192 = vmatmul.f32.gmra.mxu0 %v37
    %v193 = vpop.f32.mrf.mxu0
    %v194 = vadd.f32 %v171, %v193
    %195 = vdwg.mxu0
    %v196 = vld [vmem:[%s7] sm:$0xff]
    %vm197 = vcmask 261120
    %v198 = vsel %vm197, %v191, 0.0
    %199 = vadd.xlane.f32.xlu0 %v198
    %v200 = vpop.xlane.xlu0 %199
    %v201 = vsel %vm197, %v194, 0.0
    %202 = vadd.xlane.f32.xlu0 %v201
    %v203 = vpop.xlane.xlu0 %202
    %v204 = vrcp.pop 32.0
    %v205 = vmul.f32 32.0, %v204
    %v206 = vsub.f32 1.0, %v205
    %v207 = vmul.f32 %v204, %v206
    %v208 = vadd.f32 %v204, %v207
    %vm209 = vweird.f32 %v204
    %v210 = vsel %vm209, %v204, %v208
    %v211 = vmul.f32 %v200, %v210
    %v212 = vmul.f32 %v203, %v210
    %v213 = vsub.f32 %v191, %v211
    %v214 = vsub.f32 %v194, %v212
    %v215 = vmul.f32 %v213, %v213
    %v216 = vmul.f32 %v214, %v214
    %v217 = vsel %vm197, %v215, 0.0
    %218 = vadd.xlane.f32.xlu0 %v217
    %v219 = vpop.xlane.xlu0 %218
    %v220 = vsel %vm197, %v216, 0.0
    %221 = vadd.xlane.f32.xlu0 %v220
    %v222 = vpop.xlane.xlu0 %221
    %v223 = vmul.f32 %v219, %v210
    %v224 = vmul.f32 %v222, %v210
    %v225 = vadd.f32 %v223, 1e-05
    %v226 = vadd.f32 %v224, 1e-05
    %v227 = vrsqrt.pop %v225
    %v228 = vmul.f32 %v227, %v225
    %v229 = vmul.f32 %v228, %v227
    %v230 = vmul.f32 0.5, %v229
    %v231 = vsub.f32 1.5, %v230
    %v232 = vmul.f32 %v227, %v231
    %vm233 = vweird.f32 %v225
    %vm234 = vweird.f32 %v227
    %vm235 = vmor %vm233, %vm234
    %v236 = vsel %vm235, %v227, %v232
    %v237 = vrsqrt.pop %v226
    %v238 = vmul.f32 %v237, %v226
    %v239 = vmul.f32 %v238, %v237
    %v240 = vmul.f32 0.5, %v239
    %v241 = vsub.f32 1.5, %v240
    %v242 = vmul.f32 %v237, %v241
    %vm243 = vweird.f32 %v226
    %vm244 = vweird.f32 %v237
    %vm245 = vmor %vm243, %vm244
    %v246 = vsel %vm245, %v237, %v242
    %v247 = vmul.f32 %v213, %v236
    %v248 = vmul.f32 %v214, %v246
    %v249 = vperm.slane %v196, 0
    %v250 = vmul.f32 %v247, %v249
    %v251 = vmul.f32 %v248, %v249
    %v252 = vperm.slane %v196, 1
    %v253 = vadd.f32 %v250, %v252
    %v254 = vadd.f32 %v251, %v252
    %v255 = vld [vmem:[%s3] sm:$0xff]
    %v256 = vld [vmem:[%s3 + $0x8] sm:$0xff]
    %v257 = vld [vmem:[%s3 + $0x10] sm:$0xff]
    %v258 = vld [vmem:[%s3 + $0x18] sm:$0xff]
    %v260 = vsel %vm197, %v253, 0
    %v263 = vsel %vm197, %v254, 0
    %265 = vmatpush.msra.mxu0 0.0
    %266 = vmatpush.msra.mxu0 0.0
    %267 = vmatpush.msra.mxu0 0.0
    %268 = vmatpush.msra.mxu0 0.0
    %269 = vmatpush.msra.mxu0 0.0
    %270 = vmatpush.msra.mxu0 0.0
    %271 = vmatpush.msra.mxu0 0.0
    %272 = vmatpush.msra.mxu0 0.0
    %273 = vmatpush.msra.mxu0 0.0
    %274 = vmatpush.msra.mxu0 0.0
    %275 = vmatpush.msra.mxu0 0.0
    %276 = vmatpush.msra.mxu0 0.0
    %277 = vmatpush.msra.mxu0 %v258
    %278 = vmatpush.msra.mxu0 %v257
    %279 = vmatpush.msra.mxu0 %v256
    %280 = vmatpush.msra.mxu0 %v255
    %281 = vmatmul.f32.gmra.mxu0 %v260
    %v282 = vpop.f32.mrf.mxu0
    %v283 = vadd.f32 0.0, %v282
    %284 = vmatmul.f32.gmra.mxu0 %v263
    %v285 = vpop.f32.mrf.mxu0
    %v286 = vadd.f32 0.0, %v285
    %287 = vdwg.mxu0
    %289 = vrot.lane.b32.xlu0 %v283, 96
    %v290 = vpop.permute.xlu0 %289
    %vm291 = vcmask 64512
    %v292 = vsel %vm291, %v283, 0
    %v294 = vsel %vm291, %v290, 0
    %296 = vmatpush.xpose.msra.mxu0 0.0
    %297 = vmatpush.xpose.msra.mxu0 0.0
    %298 = vmatpush.xpose.msra.mxu0 0.0
    %299 = vmatpush.xpose.msra.mxu0 0.0
    %300 = vmatpush.xpose.msra.mxu0 0.0
    %301 = vmatpush.xpose.msra.mxu0 0.0
    %302 = vmatpush.xpose.msra.mxu0 0.0
    %303 = vmatpush.xpose.msra.mxu0 0.0
    %304 = vmatpush.xpose.msra.mxu0 0.0
    %305 = vmatpush.xpose.msra.mxu0 0.0
    %306 = vmatpush.xpose.msra.mxu0 0.0
    %307 = vmatpush.xpose.msra.mxu0 0.0
    %308 = vmatpush.xpose.msra.mxu0 0.0
    %309 = vmatpush.xpose.msra.mxu0 0.0
    %310 = vmatpush.xpose.msra.mxu0 0.0
    %311 = vmatpush.xpose.msra.mxu0 %v294
    %312 = vmatmul.f32.gmra.mxu0 %v292
    %v313 = vpop.f32.mrf.mxu0
    %v314 = vadd.f32 0.0, %v313
    %315 = vdwg.mxu0
    %v316 = vsel %vm291, %v314, -inf
    %317 = vmax.xlane.f32.xlu0 %v316
    %v318 = vpop.xlane.xlu0 %317
    %v319 = vsub.f32 %v314, %v318
    %v320 = vmul.f32 %v319, 1.442695
    %v321 = vpow.pop %v320
    %v322 = vsel %vm291, %v321, 0.0
    %323 = vadd.xlane.f32.xlu0 %v322
    %v324 = vpop.xlane.xlu0 %323
    %v325 = vrcp.pop %v324
    %v326 = vmul.f32 %v324, %v325
    %v327 = vsub.f32 1.0, %v326
    %v328 = vmul.f32 %v325, %v327
    %v329 = vadd.f32 %v325, %v328
    %vm330 = vweird.f32 %v324
    %vm331 = vweird.f32 %v325
    %vm332 = vmor %vm330, %vm331
    %v333 = vsel %vm332, %v325, %v329
    %v334 = vand.u32 2147483647, %v324
    %vm335 = vcmp.eq.f32.partialorder %v334, 8.507059e+37
    %v336 = vand.u32 %v324, 2147483648
    %v337 = vor.u32 1.1754944e-38, %v336
    %v338 = vsel %vm335, %v337, %v333
    %v339 = vmul.f32 %v321, %v338
    %340 = vrot.lane.b32.xlu0 %v283, 64
    %v341 = vpop.permute.xlu0 %340
    %v344 = vsel %vm291, %v339, 0
    %346 = vmatpush.msra.mxu0 0.0
    %347 = vmatpush.msra.mxu0 0.0
    %348 = vmatpush.msra.mxu0 0.0
    %349 = vmatpush.msra.mxu0 0.0
    %350 = vmatpush.msra.mxu0 0.0
    %351 = vmatpush.msra.mxu0 0.0
    %352 = vmatpush.msra.mxu0 0.0
    %353 = vmatpush.msra.mxu0 0.0
    %354 = vmatpush.msra.mxu0 0.0
    %355 = vmatpush.msra.mxu0 0.0
    %356 = vmatpush.msra.mxu0 0.0
    %357 = vmatpush.msra.mxu0 0.0
    %358 = vmatpush.msra.mxu0 0.0
    %359 = vmatpush.msra.mxu0 0.0
    %360 = vmatpush.msra.mxu0 0.0
    %361 = vmatpush.msra.mxu0 %v341
    %362 = vmatmul.f32.gmra.mxu0 %v344
    %v363 = vpop.f32.mrf.mxu0
    %v364 = vadd.f32 0.0, %v363
    %365 = vdwg.mxu0
    %366 = vrot.lane.b32.xlu0 %v283, 120
    %v367 = vpop.permute.xlu0 %366
    %368 = vrot.lane.b32.xlu0 %v283, 88
    %v369 = vpop.permute.xlu0 %368
    %v370 = vsel %vm291, %v367, 0
    %v372 = vsel %vm291, %v369, 0
    %374 = vmatpush.xpose.msra.mxu0 0.0
    %375 = vmatpush.xpose.msra.mxu0 0.0
    %376 = vmatpush.xpose.msra.mxu0 0.0
    %377 = vmatpush.xpose.msra.mxu0 0.0
    %378 = vmatpush.xpose.msra.mxu0 0.0
    %379 = vmatpush.xpose.msra.mxu0 0.0
    %380 = vmatpush.xpose.msra.mxu0 0.0
    %381 = vmatpush.xpose.msra.mxu0 0.0
    %382 = vmatpush.xpose.msra.mxu0 0.0
    %383 = vmatpush.xpose.msra.mxu0 0.0
    %384 = vmatpush.xpose.msra.mxu0 0.0
    %385 = vmatpush.xpose.msra.mxu0 0.0
    %386 = vmatpush.xpose.msra.mxu0 0.0
    %387 = vmatpush.xpose.msra.mxu0 0.0
    %388 = vmatpush.xpose.msra.mxu0 0.0
    %389 = vmatpush.xpose.msra.mxu0 %v372
    %390 = vmatmul.f32.gmra.mxu0 %v370
    %v391 = vpop.f32.mrf.mxu0
    %v392 = vadd.f32 0.0, %v391
    %393 = vdwg.mxu0
    %v394 = vsel %vm291, %v392, -inf
    %395 = vmax.xlane.f32.xlu0 %v394
    %v396 = vpop.xlane.xlu0 %395
    %v397 = vsub.f32 %v392, %v396
    %v398 = vmul.f32 %v397, 1.442695
    %v399 = vpow.pop %v398
    %v400 = vsel %vm291, %v399, 0.0
    %401 = vadd.xlane.f32.xlu0 %v400
    %v402 = vpop.xlane.xlu0 %401
    %v403 = vrcp.pop %v402
    %v404 = vmul.f32 %v402, %v403
    %v405 = vsub.f32 1.0, %v404
    %v406 = vmul.f32 %v403, %v405
    %v407 = vadd.f32 %v403, %v406
    %vm408 = vweird.f32 %v402
    %vm409 = vweird.f32 %v403
    %vm410 = vmor %vm408, %vm409
    %v411 = vsel %vm410, %v403, %v407
    %v412 = vand.u32 2147483647, %v402
    %vm413 = vcmp.eq.f32.partialorder %v412, 8.507059e+37
    %v414 = vand.u32 %v402, 2147483648
    %v415 = vor.u32 1.1754944e-38, %v414
    %v416 = vsel %vm413, %v415, %v411
    %v417 = vmul.f32 %v399, %v416
    %418 = vrot.lane.b32.xlu0 %v283, 56
    %v419 = vpop.permute.xlu0 %418
    %v422 = vsel %vm291, %v417, 0
    %424 = vmatpush.msra.mxu0 0.0
    %425 = vmatpush.msra.mxu0 0.0
    %426 = vmatpush.msra.mxu0 0.0
    %427 = vmatpush.msra.mxu0 0.0
    %428 = vmatpush.msra.mxu0 0.0
    %429 = vmatpush.msra.mxu0 0.0
    %430 = vmatpush.msra.mxu0 0.0
    %431 = vmatpush.msra.mxu0 0.0
    %432 = vmatpush.msra.mxu0 0.0
    %433 = vmatpush.msra.mxu0 0.0
    %434 = vmatpush.msra.mxu0 0.0
    %435 = vmatpush.msra.mxu0 0.0
    %436 = vmatpush.msra.mxu0 0.0
    %437 = vmatpush.msra.mxu0 0.0
    %438 = vmatpush.msra.mxu0 0.0
    %439 = vmatpush.msra.mxu0 %v419
    %440 = vmatmul.f32.gmra.mxu0 %v422
    %v441 = vpop.f32.mrf.mxu0
    %v442 = vadd.f32 0.0, %v441
    %443 = vdwg.mxu0
    %444 = vrot.lane.b32.xlu0 %v283, 112
    %v445 = vpop.permute.xlu0 %444
    %446 = vrot.lane.b32.xlu0 %v283, 80
    %v447 = vpop.permute.xlu0 %446
    %v448 = vsel %vm291, %v445, 0
    %v450 = vsel %vm291, %v447, 0
    %452 = vmatpush.xpose.msra.mxu0 0.0
    %453 = vmatpush.xpose.msra.mxu0 0.0
    %454 = vmatpush.xpose.msra.mxu0 0.0
    %455 = vmatpush.xpose.msra.mxu0 0.0
    %456 = vmatpush.xpose.msra.mxu0 0.0
    %457 = vmatpush.xpose.msra.mxu0 0.0
    %458 = vmatpush.xpose.msra.mxu0 0.0
    %459 = vmatpush.xpose.msra.mxu0 0.0
    %460 = vmatpush.xpose.msra.mxu0 0.0
    %461 = vmatpush.xpose.msra.mxu0 0.0
    %462 = vmatpush.xpose.msra.mxu0 0.0
    %463 = vmatpush.xpose.msra.mxu0 0.0
    %464 = vmatpush.xpose.msra.mxu0 0.0
    %465 = vmatpush.xpose.msra.mxu0 0.0
    %466 = vmatpush.xpose.msra.mxu0 0.0
    %467 = vmatpush.xpose.msra.mxu0 %v450
    %468 = vmatmul.f32.gmra.mxu0 %v448
    %v469 = vpop.f32.mrf.mxu0
    %v470 = vadd.f32 0.0, %v469
    %471 = vdwg.mxu0
    %v472 = vsel %vm291, %v470, -inf
    %473 = vmax.xlane.f32.xlu0 %v472
    %v474 = vpop.xlane.xlu0 %473
    %v475 = vsub.f32 %v470, %v474
    %v476 = vmul.f32 %v475, 1.442695
    %v477 = vpow.pop %v476
    %v478 = vsel %vm291, %v477, 0.0
    %479 = vadd.xlane.f32.xlu0 %v478
    %v480 = vpop.xlane.xlu0 %479
    %v481 = vrcp.pop %v480
    %v482 = vmul.f32 %v480, %v481
    %v483 = vsub.f32 1.0, %v482
    %v484 = vmul.f32 %v481, %v483
    %v485 = vadd.f32 %v481, %v484
    %vm486 = vweird.f32 %v480
    %vm487 = vweird.f32 %v481
    %vm488 = vmor %vm486, %vm487
    %v489 = vsel %vm488, %v481, %v485
    %v490 = vand.u32 2147483647, %v480
    %vm491 = vcmp.eq.f32.partialorder %v490, 8.507059e+37
    %v492 = vand.u32 %v480, 2147483648
    %v493 = vor.u32 1.1754944e-38, %v492
    %v494 = vsel %vm491, %v493, %v489
    %v495 = vmul.f32 %v477, %v494
    %496 = vrot.lane.b32.xlu0 %v283, 48
    %v497 = vpop.permute.xlu0 %496
    %v500 = vsel %vm291, %v495, 0
    %502 = vmatpush.msra.mxu0 0.0
    %503 = vmatpush.msra.mxu0 0.0
    %504 = vmatpush.msra.mxu0 0.0
    %505 = vmatpush.msra.mxu0 0.0
    %506 = vmatpush.msra.mxu0 0.0
    %507 = vmatpush.msra.mxu0 0.0
    %508 = vmatpush.msra.mxu0 0.0
    %509 = vmatpush.msra.mxu0 0.0
    %510 = vmatpush.msra.mxu0 0.0
    %511 = vmatpush.msra.mxu0 0.0
    %512 = vmatpush.msra.mxu0 0.0
    %513 = vmatpush.msra.mxu0 0.0
    %514 = vmatpush.msra.mxu0 0.0
    %515 = vmatpush.msra.mxu0 0.0
    %516 = vmatpush.msra.mxu0 0.0
    %517 = vmatpush.msra.mxu0 %v497
    %518 = vmatmul.f32.gmra.mxu0 %v500
    %v519 = vpop.f32.mrf.mxu0
    %v520 = vadd.f32 0.0, %v519
    %521 = vdwg.mxu0
    %522 = vrot.lane.b32.xlu0 %v283, 104
    %v523 = vpop.permute.xlu0 %522
    %524 = vrot.lane.b32.xlu0 %v283, 72
    %v525 = vpop.permute.xlu0 %524
    %v526 = vsel %vm291, %v523, 0
    %v528 = vsel %vm291, %v525, 0
    %530 = vmatpush.xpose.msra.mxu0 0.0
    %531 = vmatpush.xpose.msra.mxu0 0.0
    %532 = vmatpush.xpose.msra.mxu0 0.0
    %533 = vmatpush.xpose.msra.mxu0 0.0
    %534 = vmatpush.xpose.msra.mxu0 0.0
    %535 = vmatpush.xpose.msra.mxu0 0.0
    %536 = vmatpush.xpose.msra.mxu0 0.0
    %537 = vmatpush.xpose.msra.mxu0 0.0
    %538 = vmatpush.xpose.msra.mxu0 0.0
    %539 = vmatpush.xpose.msra.mxu0 0.0
    %540 = vmatpush.xpose.msra.mxu0 0.0
    %541 = vmatpush.xpose.msra.mxu0 0.0
    %542 = vmatpush.xpose.msra.mxu0 0.0
    %543 = vmatpush.xpose.msra.mxu0 0.0
    %544 = vmatpush.xpose.msra.mxu0 0.0
    %545 = vmatpush.xpose.msra.mxu0 %v528
    %546 = vmatmul.f32.gmra.mxu0 %v526
    %v547 = vpop.f32.mrf.mxu0
    %v548 = vadd.f32 0.0, %v547
    %549 = vdwg.mxu0
    %v550 = vsel %vm291, %v548, -inf
    %551 = vmax.xlane.f32.xlu0 %v550
    %v552 = vpop.xlane.xlu0 %551
    %v553 = vsub.f32 %v548, %v552
    %v554 = vmul.f32 %v553, 1.442695
    %v555 = vpow.pop %v554
    %v556 = vsel %vm291, %v555, 0.0
    %557 = vadd.xlane.f32.xlu0 %v556
    %v558 = vpop.xlane.xlu0 %557
    %v559 = vrcp.pop %v558
    %v560 = vmul.f32 %v558, %v559
    %v561 = vsub.f32 1.0, %v560
    %v562 = vmul.f32 %v559, %v561
    %v563 = vadd.f32 %v559, %v562
    %vm564 = vweird.f32 %v558
    %vm565 = vweird.f32 %v559
    %vm566 = vmor %vm564, %vm565
    %v567 = vsel %vm566, %v559, %v563
    %v568 = vand.u32 2147483647, %v558
    %vm569 = vcmp.eq.f32.partialorder %v568, 8.507059e+37
    %v570 = vand.u32 %v558, 2147483648
    %v571 = vor.u32 1.1754944e-38, %v570
    %v572 = vsel %vm569, %v571, %v567
    %v573 = vmul.f32 %v555, %v572
    %574 = vrot.lane.b32.xlu0 %v283, 40
    %v575 = vpop.permute.xlu0 %574
    %v578 = vsel %vm291, %v573, 0
    %580 = vmatpush.msra.mxu0 0.0
    %581 = vmatpush.msra.mxu0 0.0
    %582 = vmatpush.msra.mxu0 0.0
    %583 = vmatpush.msra.mxu0 0.0
    %584 = vmatpush.msra.mxu0 0.0
    %585 = vmatpush.msra.mxu0 0.0
    %586 = vmatpush.msra.mxu0 0.0
    %587 = vmatpush.msra.mxu0 0.0
    %588 = vmatpush.msra.mxu0 0.0
    %589 = vmatpush.msra.mxu0 0.0
    %590 = vmatpush.msra.mxu0 0.0
    %591 = vmatpush.msra.mxu0 0.0
    %592 = vmatpush.msra.mxu0 0.0
    %593 = vmatpush.msra.mxu0 0.0
    %594 = vmatpush.msra.mxu0 0.0
    %595 = vmatpush.msra.mxu0 %v575
    %596 = vmatmul.f32.gmra.mxu0 %v578
    %v597 = vpop.f32.mrf.mxu0
    %v598 = vadd.f32 0.0, %v597
    %599 = vdwg.mxu0
    %601 = vrot.lane.b32.xlu0 %v442, 8
    %v602 = vpop.permute.xlu0 %601
    %605 = vrot.lane.b32.xlu0 %v520, 16
    %v606 = vpop.permute.xlu0 %605
    %609 = vrot.lane.b32.xlu0 %v598, 24
    %v610 = vpop.permute.xlu0 %609
    %v612 = vsel %vm291, %v364, %v602
    %vm613 = vcmask 130048
    %v614 = vsel %vm613, %v612, %v606
    %vm615 = vcmask 195584
    %v616 = vsel %vm615, %v614, %v610
    %618 = vrot.lane.b32.xlu0 %v286, 96
    %v619 = vpop.permute.xlu0 %618
    %v620 = vsel %vm291, %v286, 0
    %v622 = vsel %vm291, %v619, 0
    %624 = vmatpush.xpose.msra.mxu0 0.0
    %625 = vmatpush.xpose.msra.mxu0 0.0
    %626 = vmatpush.xpose.msra.mxu0 0.0
    %627 = vmatpush.xpose.msra.mxu0 0.0
    %628 = vmatpush.xpose.msra.mxu0 0.0
    %629 = vmatpush.xpose.msra.mxu0 0.0
    %630 = vmatpush.xpose.msra.mxu0 0.0
    %631 = vmatpush.xpose.msra.mxu0 0.0
    %632 = vmatpush.xpose.msra.mxu0 0.0
    %633 = vmatpush.xpose.msra.mxu0 0.0
    %634 = vmatpush.xpose.msra.mxu0 0.0
    %635 = vmatpush.xpose.msra.mxu0 0.0
    %636 = vmatpush.xpose.msra.mxu0 0.0
    %637 = vmatpush.xpose.msra.mxu0 0.0
    %638 = vmatpush.xpose.msra.mxu0 0.0
    %639 = vmatpush.xpose.msra.mxu0 %v622
    %640 = vmatmul.f32.gmra.mxu0 %v620
    %v641 = vpop.f32.mrf.mxu0
    %v642 = vadd.f32 0.0, %v641
    %643 = vdwg.mxu0
    %v644 = vsel %vm291, %v642, -inf
    %645 = vmax.xlane.f32.xlu0 %v644
    %v646 = vpop.xlane.xlu0 %645
    %v647 = vsub.f32 %v642, %v646
    %v648 = vmul.f32 %v647, 1.442695
    %v649 = vpow.pop %v648
    %v650 = vsel %vm291, %v649, 0.0
    %651 = vadd.xlane.f32.xlu0 %v650
    %v652 = vpop.xlane.xlu0 %651
    %v653 = vrcp.pop %v652
    %v654 = vmul.f32 %v652, %v653
    %v655 = vsub.f32 1.0, %v654
    %v656 = vmul.f32 %v653, %v655
    %v657 = vadd.f32 %v653, %v656
    %vm658 = vweird.f32 %v652
    %vm659 = vweird.f32 %v653
    %vm660 = vmor %vm658, %vm659
    %v661 = vsel %vm660, %v653, %v657
    %v662 = vand.u32 2147483647, %v652
    %vm663 = vcmp.eq.f32.partialorder %v662, 8.507059e+37
    %v664 = vand.u32 %v652, 2147483648
    %v665 = vor.u32 1.1754944e-38, %v664
    %v666 = vsel %vm663, %v665, %v661
    %v667 = vmul.f32 %v649, %v666
    %668 = vrot.lane.b32.xlu0 %v286, 64
    %v669 = vpop.permute.xlu0 %668
    %v672 = vsel %vm291, %v667, 0
    %674 = vmatpush.msra.mxu0 0.0
    %675 = vmatpush.msra.mxu0 0.0
    %676 = vmatpush.msra.mxu0 0.0
    %677 = vmatpush.msra.mxu0 0.0
    %678 = vmatpush.msra.mxu0 0.0
    %679 = vmatpush.msra.mxu0 0.0
    %680 = vmatpush.msra.mxu0 0.0
    %681 = vmatpush.msra.mxu0 0.0
    %682 = vmatpush.msra.mxu0 0.0
    %683 = vmatpush.msra.mxu0 0.0
    %684 = vmatpush.msra.mxu0 0.0
    %685 = vmatpush.msra.mxu0 0.0
    %686 = vmatpush.msra.mxu0 0.0
    %687 = vmatpush.msra.mxu0 0.0
    %688 = vmatpush.msra.mxu0 0.0
    %689 = vmatpush.msra.mxu0 %v669
    %690 = vmatmul.f32.gmra.mxu0 %v672
    %v691 = vpop.f32.mrf.mxu0
    %v692 = vadd.f32 0.0, %v691
    %693 = vdwg.mxu0
    %694 = vrot.lane.b32.xlu0 %v286, 120
    %v695 = vpop.permute.xlu0 %694
    %696 = vrot.lane.b32.xlu0 %v286, 88
    %v697 = vpop.permute.xlu0 %696
    %v698 = vsel %vm291, %v695, 0
    %v700 = vsel %vm291, %v697, 0
    %702 = vmatpush.xpose.msra.mxu0 0.0
    %703 = vmatpush.xpose.msra.mxu0 0.0
    %704 = vmatpush.xpose.msra.mxu0 0.0
    %705 = vmatpush.xpose.msra.mxu0 0.0
    %706 = vmatpush.xpose.msra.mxu0 0.0
    %707 = vmatpush.xpose.msra.mxu0 0.0
    %708 = vmatpush.xpose.msra.mxu0 0.0
    %709 = vmatpush.xpose.msra.mxu0 0.0
    %710 = vmatpush.xpose.msra.mxu0 0.0
    %711 = vmatpush.xpose.msra.mxu0 0.0
    %712 = vmatpush.xpose.msra.mxu0 0.0
    %713 = vmatpush.xpose.msra.mxu0 0.0
    %714 = vmatpush.xpose.msra.mxu0 0.0
    %715 = vmatpush.xpose.msra.mxu0 0.0
    %716 = vmatpush.xpose.msra.mxu0 0.0
    %717 = vmatpush.xpose.msra.mxu0 %v700
    %718 = vmatmul.f32.gmra.mxu0 %v698
    %v719 = vpop.f32.mrf.mxu0
    %v720 = vadd.f32 0.0, %v719
    %721 = vdwg.mxu0
    %v722 = vsel %vm291, %v720, -inf
    %723 = vmax.xlane.f32.xlu0 %v722
    %v724 = vpop.xlane.xlu0 %723
    %v725 = vsub.f32 %v720, %v724
    %v726 = vmul.f32 %v725, 1.442695
    %v727 = vpow.pop %v726
    %v728 = vsel %vm291, %v727, 0.0
    %729 = vadd.xlane.f32.xlu0 %v728
    %v730 = vpop.xlane.xlu0 %729
    %v731 = vrcp.pop %v730
    %v732 = vmul.f32 %v730, %v731
    %v733 = vsub.f32 1.0, %v732
    %v734 = vmul.f32 %v731, %v733
    %v735 = vadd.f32 %v731, %v734
    %vm736 = vweird.f32 %v730
    %vm737 = vweird.f32 %v731
    %vm738 = vmor %vm736, %vm737
    %v739 = vsel %vm738, %v731, %v735
    %v740 = vand.u32 2147483647, %v730
    %vm741 = vcmp.eq.f32.partialorder %v740, 8.507059e+37
    %v742 = vand.u32 %v730, 2147483648
    %v743 = vor.u32 1.1754944e-38, %v742
    %v744 = vsel %vm741, %v743, %v739
    %v745 = vmul.f32 %v727, %v744
    %746 = vrot.lane.b32.xlu0 %v286, 56
    %v747 = vpop.permute.xlu0 %746
    %v750 = vsel %vm291, %v745, 0
    %752 = vmatpush.msra.mxu0 0.0
    %753 = vmatpush.msra.mxu0 0.0
    %754 = vmatpush.msra.mxu0 0.0
    %755 = vmatpush.msra.mxu0 0.0
    %756 = vmatpush.msra.mxu0 0.0
    %757 = vmatpush.msra.mxu0 0.0
    %758 = vmatpush.msra.mxu0 0.0
    %759 = vmatpush.msra.mxu0 0.0
    %760 = vmatpush.msra.mxu0 0.0
    %761 = vmatpush.msra.mxu0 0.0
    %762 = vmatpush.msra.mxu0 0.0
    %763 = vmatpush.msra.mxu0 0.0
    %764 = vmatpush.msra.mxu0 0.0
    %765 = vmatpush.msra.mxu0 0.0
    %766 = vmatpush.msra.mxu0 0.0
    %767 = vmatpush.msra.mxu0 %v747
    %768 = vmatmul.f32.gmra.mxu0 %v750
    %v769 = vpop.f32.mrf.mxu0
    %v770 = vadd.f32 0.0, %v769
    %771 = vdwg.mxu0
    %772 = vrot.lane.b32.xlu0 %v286, 112
    %v773 = vpop.permute.xlu0 %772
    %774 = vrot.lane.b32.xlu0 %v286, 80
    %v775 = vpop.permute.xlu0 %774
    %v776 = vsel %vm291, %v773, 0
    %v778 = vsel %vm291, %v775, 0
    %780 = vmatpush.xpose.msra.mxu0 0.0
    %781 = vmatpush.xpose.msra.mxu0 0.0
    %782 = vmatpush.xpose.msra.mxu0 0.0
    %783 = vmatpush.xpose.msra.mxu0 0.0
    %784 = vmatpush.xpose.msra.mxu0 0.0
    %785 = vmatpush.xpose.msra.mxu0 0.0
    %786 = vmatpush.xpose.msra.mxu0 0.0
    %787 = vmatpush.xpose.msra.mxu0 0.0
    %788 = vmatpush.xpose.msra.mxu0 0.0
    %789 = vmatpush.xpose.msra.mxu0 0.0
    %790 = vmatpush.xpose.msra.mxu0 0.0
    %791 = vmatpush.xpose.msra.mxu0 0.0
    %792 = vmatpush.xpose.msra.mxu0 0.0
    %793 = vmatpush.xpose.msra.mxu0 0.0
    %794 = vmatpush.xpose.msra.mxu0 0.0
    %795 = vmatpush.xpose.msra.mxu0 %v778
    %796 = vmatmul.f32.gmra.mxu0 %v776
    %v797 = vpop.f32.mrf.mxu0
    %v798 = vadd.f32 0.0, %v797
    %799 = vdwg.mxu0
    %v800 = vsel %vm291, %v798, -inf
    %801 = vmax.xlane.f32.xlu0 %v800
    %v802 = vpop.xlane.xlu0 %801
    %v803 = vsub.f32 %v798, %v802
    %v804 = vmul.f32 %v803, 1.442695
    %v805 = vpow.pop %v804
    %v806 = vsel %vm291, %v805, 0.0
    %807 = vadd.xlane.f32.xlu0 %v806
    %v808 = vpop.xlane.xlu0 %807
    %v809 = vrcp.pop %v808
    %v810 = vmul.f32 %v808, %v809
    %v811 = vsub.f32 1.0, %v810
    %v812 = vmul.f32 %v809, %v811
    %v813 = vadd.f32 %v809, %v812
    %vm814 = vweird.f32 %v808
    %vm815 = vweird.f32 %v809
    %vm816 = vmor %vm814, %vm815
    %v817 = vsel %vm816, %v809, %v813
    %v818 = vand.u32 2147483647, %v808
    %vm819 = vcmp.eq.f32.partialorder %v818, 8.507059e+37
    %v820 = vand.u32 %v808, 2147483648
    %v821 = vor.u32 1.1754944e-38, %v820
    %v822 = vsel %vm819, %v821, %v817
    %v823 = vmul.f32 %v805, %v822
    %824 = vrot.lane.b32.xlu0 %v286, 48
    %v825 = vpop.permute.xlu0 %824
    %v828 = vsel %vm291, %v823, 0
    %830 = vmatpush.msra.mxu0 0.0
    %831 = vmatpush.msra.mxu0 0.0
    %832 = vmatpush.msra.mxu0 0.0
    %833 = vmatpush.msra.mxu0 0.0
    %834 = vmatpush.msra.mxu0 0.0
    %835 = vmatpush.msra.mxu0 0.0
    %836 = vmatpush.msra.mxu0 0.0
    %837 = vmatpush.msra.mxu0 0.0
    %838 = vmatpush.msra.mxu0 0.0
    %839 = vmatpush.msra.mxu0 0.0
    %840 = vmatpush.msra.mxu0 0.0
    %841 = vmatpush.msra.mxu0 0.0
    %842 = vmatpush.msra.mxu0 0.0
    %843 = vmatpush.msra.mxu0 0.0
    %844 = vmatpush.msra.mxu0 0.0
    %845 = vmatpush.msra.mxu0 %v825
    %846 = vmatmul.f32.gmra.mxu0 %v828
    %v847 = vpop.f32.mrf.mxu0
    %v848 = vadd.f32 0.0, %v847
    %849 = vdwg.mxu0
    %850 = vrot.lane.b32.xlu0 %v286, 104
    %v851 = vpop.permute.xlu0 %850
    %852 = vrot.lane.b32.xlu0 %v286, 72
    %v853 = vpop.permute.xlu0 %852
    %v854 = vsel %vm291, %v851, 0
    %v856 = vsel %vm291, %v853, 0
    %858 = vmatpush.xpose.msra.mxu0 0.0
    %859 = vmatpush.xpose.msra.mxu0 0.0
    %860 = vmatpush.xpose.msra.mxu0 0.0
    %861 = vmatpush.xpose.msra.mxu0 0.0
    %862 = vmatpush.xpose.msra.mxu0 0.0
    %863 = vmatpush.xpose.msra.mxu0 0.0
    %864 = vmatpush.xpose.msra.mxu0 0.0
    %865 = vmatpush.xpose.msra.mxu0 0.0
    %866 = vmatpush.xpose.msra.mxu0 0.0
    %867 = vmatpush.xpose.msra.mxu0 0.0
    %868 = vmatpush.xpose.msra.mxu0 0.0
    %869 = vmatpush.xpose.msra.mxu0 0.0
    %870 = vmatpush.xpose.msra.mxu0 0.0
    %871 = vmatpush.xpose.msra.mxu0 0.0
    %872 = vmatpush.xpose.msra.mxu0 0.0
    %873 = vmatpush.xpose.msra.mxu0 %v856
    %874 = vmatmul.f32.gmra.mxu0 %v854
    %v875 = vpop.f32.mrf.mxu0
    %v876 = vadd.f32 0.0, %v875
    %877 = vdwg.mxu0
    %v878 = vsel %vm291, %v876, -inf
    %879 = vmax.xlane.f32.xlu0 %v878
    %v880 = vpop.xlane.xlu0 %879
    %v881 = vsub.f32 %v876, %v880
    %v882 = vmul.f32 %v881, 1.442695
    %v883 = vpow.pop %v882
    %v884 = vsel %vm291, %v883, 0.0
    %885 = vadd.xlane.f32.xlu0 %v884
    %v886 = vpop.xlane.xlu0 %885
    %v887 = vrcp.pop %v886
    %v888 = vmul.f32 %v886, %v887
    %v889 = vsub.f32 1.0, %v888
    %v890 = vmul.f32 %v887, %v889
    %v891 = vadd.f32 %v887, %v890
    %vm892 = vweird.f32 %v886
    %vm893 = vweird.f32 %v887
    %vm894 = vmor %vm892, %vm893
    %v895 = vsel %vm894, %v887, %v891
    %v896 = vand.u32 2147483647, %v886
    %vm897 = vcmp.eq.f32.partialorder %v896, 8.507059e+37
    %v898 = vand.u32 %v886, 2147483648
    %v899 = vor.u32 1.1754944e-38, %v898
    %v900 = vsel %vm897, %v899, %v895
    %v901 = vmul.f32 %v883, %v900
    %902 = vrot.lane.b32.xlu0 %v286, 40
    %v903 = vpop.permute.xlu0 %902
    %v906 = vsel %vm291, %v901, 0
    %908 = vmatpush.msra.mxu0 0.0
    %909 = vmatpush.msra.mxu0 0.0
    %910 = vmatpush.msra.mxu0 0.0
    %911 = vmatpush.msra.mxu0 0.0
    %912 = vmatpush.msra.mxu0 0.0
    %913 = vmatpush.msra.mxu0 0.0
    %914 = vmatpush.msra.mxu0 0.0
    %915 = vmatpush.msra.mxu0 0.0
    %916 = vmatpush.msra.mxu0 0.0
    %917 = vmatpush.msra.mxu0 0.0
    %918 = vmatpush.msra.mxu0 0.0
    %919 = vmatpush.msra.mxu0 0.0
    %920 = vmatpush.msra.mxu0 0.0
    %921 = vmatpush.msra.mxu0 0.0
    %922 = vmatpush.msra.mxu0 0.0
    %923 = vmatpush.msra.mxu0 %v903
    %924 = vmatmul.f32.gmra.mxu0 %v906
    %v925 = vpop.f32.mrf.mxu0
    %v926 = vadd.f32 0.0, %v925
    %927 = vdwg.mxu0
    %929 = vrot.lane.b32.xlu0 %v770, 8
    %v930 = vpop.permute.xlu0 %929
    %933 = vrot.lane.b32.xlu0 %v848, 16
    %v934 = vpop.permute.xlu0 %933
    %937 = vrot.lane.b32.xlu0 %v926, 24
    %v938 = vpop.permute.xlu0 %937
    %v940 = vsel %vm291, %v692, %v930
    %v941 = vsel %vm613, %v940, %v934
    %v942 = vsel %vm615, %v941, %v938
    %v943 = vld [vmem:[%s4] sm:$0xff]
    %v944 = vld [vmem:[%s4 + $0x8] sm:$0xff]
    %v945 = vld [vmem:[%s4 + $0x10] sm:$0xff]
    %v946 = vld [vmem:[%s4 + $0x18] sm:$0xff]
    %v948 = vsel %vm197, %v616, 0
    %v951 = vsel %vm197, %v942, 0
    %953 = vmatpush.msra.mxu0 0.0
    %954 = vmatpush.msra.mxu0 0.0
    %955 = vmatpush.msra.mxu0 0.0
    %956 = vmatpush.msra.mxu0 0.0
    %957 = vmatpush.msra.mxu0 0.0
    %958 = vmatpush.msra.mxu0 0.0
    %959 = vmatpush.msra.mxu0 0.0
    %960 = vmatpush.msra.mxu0 0.0
    %961 = vmatpush.msra.mxu0 0.0
    %962 = vmatpush.msra.mxu0 0.0
    %963 = vmatpush.msra.mxu0 0.0
    %964 = vmatpush.msra.mxu0 0.0
    %965 = vmatpush.msra.mxu0 %v946
    %966 = vmatpush.msra.mxu0 %v945
    %967 = vmatpush.msra.mxu0 %v944
    %968 = vmatpush.msra.mxu0 %v943
    %969 = vmatmul.f32.gmra.mxu0 %v948
    %v970 = vpop.f32.mrf.mxu0
    %v971 = vadd.f32 0.0, %v970
    %972 = vmatmul.f32.gmra.mxu0 %v951
    %v973 = vpop.f32.mrf.mxu0
    %v974 = vadd.f32 0.0, %v973
    %975 = vdwg.mxu0
    %v976 = vadd.f32 %v191, %v971
    %v977 = vadd.f32 %v194, %v974
    %v978 = vperm.slane %v196, 2
    %v979 = vadd.f32 %v976, %v978
    %v980 = vadd.f32 %v977, %v978
    %v981 = vsel %vm197, %v979, 0.0
    %982 = vadd.xlane.f32.xlu0 %v981
    %v983 = vpop.xlane.xlu0 %982
    %v984 = vsel %vm197, %v980, 0.0
    %985 = vadd.xlane.f32.xlu0 %v984
    %v986 = vpop.xlane.xlu0 %985
    %v987 = vmul.f32 %v983, %v210
    %v988 = vmul.f32 %v986, %v210
    %v989 = vsub.f32 %v979, %v987
    %v990 = vsub.f32 %v980, %v988
    %v991 = vmul.f32 %v989, %v989
    %v992 = vmul.f32 %v990, %v990
    %v993 = vsel %vm197, %v991, 0.0
    %994 = vadd.xlane.f32.xlu0 %v993
    %v995 = vpop.xlane.xlu0 %994
    %v996 = vsel %vm197, %v992, 0.0
    %997 = vadd.xlane.f32.xlu0 %v996
    %v998 = vpop.xlane.xlu0 %997
    %v999 = vmul.f32 %v995, %v210
    %v1000 = vmul.f32 %v998, %v210
    %v1001 = vadd.f32 %v999, 1e-05
    %v1002 = vadd.f32 %v1000, 1e-05
    %v1003 = vrsqrt.pop %v1001
    %v1004 = vmul.f32 %v1003, %v1001
    %v1005 = vmul.f32 %v1004, %v1003
    %v1006 = vmul.f32 0.5, %v1005
    %v1007 = vsub.f32 1.5, %v1006
    %v1008 = vmul.f32 %v1003, %v1007
    %vm1009 = vweird.f32 %v1001
    %vm1010 = vweird.f32 %v1003
    %vm1011 = vmor %vm1009, %vm1010
    %v1012 = vsel %vm1011, %v1003, %v1008
    %v1013 = vrsqrt.pop %v1002
    %v1014 = vmul.f32 %v1013, %v1002
    %v1015 = vmul.f32 %v1014, %v1013
    %v1016 = vmul.f32 0.5, %v1015
    %v1017 = vsub.f32 1.5, %v1016
    %v1018 = vmul.f32 %v1013, %v1017
    %vm1019 = vweird.f32 %v1002
    %vm1020 = vweird.f32 %v1013
    %vm1021 = vmor %vm1019, %vm1020
    %v1022 = vsel %vm1021, %v1013, %v1018
    %v1023 = vmul.f32 %v989, %v1012
    %v1024 = vmul.f32 %v990, %v1022
    %v1025 = vperm.slane %v196, 3
    %v1026 = vmul.f32 %v1023, %v1025
    %v1027 = vmul.f32 %v1024, %v1025
    %v1028 = vperm.slane %v196, 4
    %v1029 = vadd.f32 %v1026, %v1028
    %v1030 = vadd.f32 %v1027, %v1028
    %v1031 = vld [vmem:[%s5] sm:$0xff]
    %v1032 = vld [vmem:[%s5 + $0x8] sm:$0xff]
    %v1033 = vld [vmem:[%s5 + $0x10] sm:$0xff]
    %v1034 = vld [vmem:[%s5 + $0x18] sm:$0xff]
    %v1035 = vperm.slane %v196, 5
    %v1037 = vsel %vm197, %v1029, 0
    %v1040 = vsel %vm197, %v1030, 0
    %1042 = vmatpush.msra.mxu0 0.0
    %1043 = vmatpush.msra.mxu0 0.0
    %1044 = vmatpush.msra.mxu0 0.0
    %1045 = vmatpush.msra.mxu0 0.0
    %1046 = vmatpush.msra.mxu0 0.0
    %1047 = vmatpush.msra.mxu0 0.0
    %1048 = vmatpush.msra.mxu0 0.0
    %1049 = vmatpush.msra.mxu0 0.0
    %1050 = vmatpush.msra.mxu0 0.0
    %1051 = vmatpush.msra.mxu0 0.0
    %1052 = vmatpush.msra.mxu0 0.0
    %1053 = vmatpush.msra.mxu0 0.0
    %1054 = vmatpush.msra.mxu0 %v1034
    %1055 = vmatpush.msra.mxu0 %v1033
    %1056 = vmatpush.msra.mxu0 %v1032
    %1057 = vmatpush.msra.mxu0 %v1031
    %1058 = vmatmul.f32.gmra.mxu0 %v1037
    %v1059 = vpop.f32.mrf.mxu0
    %v1060 = vadd.f32 %v1035, %v1059
    %1061 = vmatmul.f32.gmra.mxu0 %v1040
    %v1062 = vpop.f32.mrf.mxu0
    %v1063 = vadd.f32 %v1035, %v1062
    %1064 = vdwg.mxu0
    %v1065 = vmul.f32 %v1060, 0.5
    %v1066 = vmul.f32 %v1063, 0.5
    %v1067 = vmul.f32 %v1060, 0.70710677
    %v1068 = vmul.f32 %v1063, 0.70710677
    %vm1069 = vcmp.lt.f32.partialorder %v1067, 0.0
    %vm1070 = vcmp.lt.f32.partialorder %v1068, 0.0
    %v1071 = vsel %vm1069, -1.0, 1.0
    %v1072 = vsel %vm1070, -1.0, 1.0
    %v1073 = vand.u32 2147483647, %v1067
    %v1074 = vand.u32 2147483647, %v1068
    %v1075 = vmul.f32 %v1073, 0.3275911
    %v1076 = vmul.f32 %v1074, 0.3275911
    %v1077 = vadd.f32 %v1075, 1.0
    %v1078 = vadd.f32 %v1076, 1.0
    %v1079 = vrcp.pop %v1077
    %v1080 = vmul.f32 %v1077, %v1079
    %v1081 = vsub.f32 1.0, %v1080
    %v1082 = vmul.f32 %v1079, %v1081
    %v1083 = vadd.f32 %v1079, %v1082
    %vm1084 = vweird.f32 %v1077
    %vm1085 = vweird.f32 %v1079
    %vm1086 = vmor %vm1084, %vm1085
    %v1087 = vsel %vm1086, %v1079, %v1083
    %v1088 = vand.u32 2147483647, %v1077
    %vm1089 = vcmp.eq.f32.partialorder %v1088, 8.507059e+37
    %v1090 = vand.u32 %v1077, 2147483648
    %v1091 = vor.u32 1.1754944e-38, %v1090
    %v1092 = vsel %vm1089, %v1091, %v1087
    %v1093 = vmul.f32 1.0, %v1092
    %v1094 = vrcp.pop %v1078
    %v1095 = vmul.f32 %v1078, %v1094
    %v1096 = vsub.f32 1.0, %v1095
    %v1097 = vmul.f32 %v1094, %v1096
    %v1098 = vadd.f32 %v1094, %v1097
    %vm1099 = vweird.f32 %v1078
    %vm1100 = vweird.f32 %v1094
    %vm1101 = vmor %vm1099, %vm1100
    %v1102 = vsel %vm1101, %v1094, %v1098
    %v1103 = vand.u32 2147483647, %v1078
    %vm1104 = vcmp.eq.f32.partialorder %v1103, 8.507059e+37
    %v1105 = vand.u32 %v1078, 2147483648
    %v1106 = vor.u32 1.1754944e-38, %v1105
    %v1107 = vsel %vm1104, %v1106, %v1102
    %v1108 = vmul.f32 1.0, %v1107
    %v1109 = vmul.f32 %v1093, 1.0614054
    %v1110 = vmul.f32 %v1108, 1.0614054
    %v1111 = vadd.f32 %v1109, -1.4531521
    %v1112 = vadd.f32 %v1110, -1.4531521
    %v1113 = vmul.f32 %v1111, %v1093
    %v1114 = vmul.f32 %v1112, %v1108
    %v1115 = vadd.f32 %v1113, 1.4214138
    %v1116 = vadd.f32 %v1114, 1.4214138
    %v1117 = vmul.f32 %v1115, %v1093
    %v1118 = vmul.f32 %v1116, %v1108
    %v1119 = vadd.f32 %v1117, -0.28449672
    %v1120 = vadd.f32 %v1118, -0.28449672
    %v1121 = vmul.f32 %v1119, %v1093
    %v1122 = vmul.f32 %v1120, %v1108
    %v1123 = vadd.f32 %v1121, 0.2548296
    %v1124 = vadd.f32 %v1122, 0.2548296
    %v1125 = vmul.f32 %v1123, %v1093
    %v1126 = vmul.f32 %v1124, %v1108
    %v1127 = vsub.f32 0.0, %v1073
    %v1128 = vsub.f32 0.0, %v1074
    %v1129 = vmul.f32 %v1127, %v1073
    %v1130 = vmul.f32 %v1128, %v1074
    %v1131 = vmul.f32 %v1129, 1.442695
    %v1132 = vpow.pop %v1131
    %v1133 = vmul.f32 %v1130, 1.442695
    %v1134 = vpow.pop %v1133
    %v1135 = vmul.f32 %v1125, %v1132
    %v1136 = vmul.f32 %v1126, %v1134
    %v1137 = vsub.f32 1.0, %v1135
    %v1138 = vsub.f32 1.0, %v1136
    %v1139 = vmul.f32 %v1071, %v1137
    %v1140 = vmul.f32 %v1072, %v1138
    %v1141 = vadd.f32 %v1139, 1.0
    %v1142 = vadd.f32 %v1140, 1.0
    %v1143 = vmul.f32 %v1065, %v1141
    %v1144 = vmul.f32 %v1066, %v1142
    %v1145 = vld [vmem:[%s6] sm:$0xff]
    %v1146 = vld [vmem:[%s6 + $0x8] sm:$0xff]
    %v1147 = vld [vmem:[%s6 + $0x10] sm:$0xff]
    %v1148 = vld [vmem:[%s6 + $0x18] sm:$0xff]
    %v1149 = vld [vmem:[%s6 + $0x20] sm:$0xff]
    %v1150 = vld [vmem:[%s6 + $0x28] sm:$0xff]
    %v1151 = vld [vmem:[%s6 + $0x30] sm:$0xff]
    %v1152 = vld [vmem:[%s6 + $0x38] sm:$0xff]
    %vm1153 = vcmask 523264
    %v1155 = vsel %vm1153, %v1143, 0
    %v1158 = vsel %vm1153, %v1144, 0
    %1160 = vmatpush.msra.mxu0 0.0
    %1161 = vmatpush.msra.mxu0 0.0
    %1162 = vmatpush.msra.mxu0 0.0
    %1163 = vmatpush.msra.mxu0 0.0
    %1164 = vmatpush.msra.mxu0 0.0
    %1165 = vmatpush.msra.mxu0 0.0
    %1166 = vmatpush.msra.mxu0 0.0
    %1167 = vmatpush.msra.mxu0 0.0
    %1168 = vmatpush.msra.mxu0 %v1152
    %1169 = vmatpush.msra.mxu0 %v1151
    %1170 = vmatpush.msra.mxu0 %v1150
    %1171 = vmatpush.msra.mxu0 %v1149
    %1172 = vmatpush.msra.mxu0 %v1148
    %1173 = vmatpush.msra.mxu0 %v1147
    %1174 = vmatpush.msra.mxu0 %v1146
    %1175 = vmatpush.msra.mxu0 %v1145
    %1176 = vmatmul.f32.gmra.mxu0 %v1155
    %v1177 = vpop.f32.mrf.mxu0
    %v1178 = vadd.f32 0.0, %v1177
    %1179 = vmatmul.f32.gmra.mxu0 %v1158
    %v1180 = vpop.f32.mrf.mxu0
    %v1181 = vadd.f32 0.0, %v1180
    %1182 = vdwg.mxu0
    %v1183 = vadd.f32 %v979, %v1178
    %v1184 = vadd.f32 %v980, %v1181
    %v1185 = vperm.slane %v196, 6
    %v1186 = vadd.f32 %v1183, %v1185
    %v1187 = vadd.f32 %v1184, %v1185
    %1188 = vst.msk [vmem:[#allocation2] sm:$0xff] %vm197, %v1186
    %1189 = vst.msk [vmem:[#allocation2 + $0x8] sm:$0xff] %vm197, %v1187
    %s1190 = scalar_lea.vmem %s7, 8
    %v1191 = vld [vmem:[%s1190] sm:$0xff]
    %v1192 = vsel %vm197, %v1186, 0.0
    %1193 = vadd.xlane.f32.xlu0 %v1192
    %v1194 = vpop.xlane.xlu0 %1193
    %v1195 = vsel %vm197, %v1187, 0.0
    %1196 = vadd.xlane.f32.xlu0 %v1195
    %v1197 = vpop.xlane.xlu0 %1196
    %v1198 = vmul.f32 %v1194, %v210
    %v1199 = vmul.f32 %v1197, %v210
    %v1200 = vsub.f32 %v1186, %v1198
    %v1201 = vsub.f32 %v1187, %v1199
    %v1202 = vmul.f32 %v1200, %v1200
    %v1203 = vmul.f32 %v1201, %v1201
    %v1204 = vsel %vm197, %v1202, 0.0
    %1205 = vadd.xlane.f32.xlu0 %v1204
    %v1206 = vpop.xlane.xlu0 %1205
    %v1207 = vsel %vm197, %v1203, 0.0
    %1208 = vadd.xlane.f32.xlu0 %v1207
    %v1209 = vpop.xlane.xlu0 %1208
    %v1210 = vmul.f32 %v1206, %v210
    %v1211 = vmul.f32 %v1209, %v210
    %v1212 = vadd.f32 %v1210, 1e-05
    %v1213 = vadd.f32 %v1211, 1e-05
    %v1214 = vrsqrt.pop %v1212
    %v1215 = vmul.f32 %v1214, %v1212
    %v1216 = vmul.f32 %v1215, %v1214
    %v1217 = vmul.f32 0.5, %v1216
    %v1218 = vsub.f32 1.5, %v1217
    %v1219 = vmul.f32 %v1214, %v1218
    %vm1220 = vweird.f32 %v1212
    %vm1221 = vweird.f32 %v1214
    %vm1222 = vmor %vm1220, %vm1221
    %v1223 = vsel %vm1222, %v1214, %v1219
    %v1224 = vrsqrt.pop %v1213
    %v1225 = vmul.f32 %v1224, %v1213
    %v1226 = vmul.f32 %v1225, %v1224
    %v1227 = vmul.f32 0.5, %v1226
    %v1228 = vsub.f32 1.5, %v1227
    %v1229 = vmul.f32 %v1224, %v1228
    %vm1230 = vweird.f32 %v1213
    %vm1231 = vweird.f32 %v1224
    %vm1232 = vmor %vm1230, %vm1231
    %v1233 = vsel %vm1232, %v1224, %v1229
    %v1234 = vmul.f32 %v1200, %v1223
    %v1235 = vmul.f32 %v1201, %v1233
    %v1236 = vperm.slane %v1191, 0
    %v1237 = vmul.f32 %v1234, %v1236
    %v1238 = vmul.f32 %v1235, %v1236
    %v1239 = vperm.slane %v1191, 1
    %v1240 = vadd.f32 %v1237, %v1239
    %v1241 = vadd.f32 %v1238, %v1239
    %s1242 = scalar_lea.vmem %s3, 32
    %v1243 = vld [vmem:[%s1242] sm:$0xff]
    %v1244 = vld [vmem:[%s1242 + $0x8] sm:$0xff]
    %v1245 = vld [vmem:[%s1242 + $0x10] sm:$0xff]
    %v1246 = vld [vmem:[%s1242 + $0x18] sm:$0xff]
    %v1248 = vsel %vm197, %v1240, 0
    %v1251 = vsel %vm197, %v1241, 0
    %1253 = vmatpush.msra.mxu0 0.0
    %1254 = vmatpush.msra.mxu0 0.0
    %1255 = vmatpush.msra.mxu0 0.0
    %1256 = vmatpush.msra.mxu0 0.0
    %1257 = vmatpush.msra.mxu0 0.0
    %1258 = vmatpush.msra.mxu0 0.0
    %1259 = vmatpush.msra.mxu0 0.0
    %1260 = vmatpush.msra.mxu0 0.0
    %1261 = vmatpush.msra.mxu0 0.0
    %1262 = vmatpush.msra.mxu0 0.0
    %1263 = vmatpush.msra.mxu0 0.0
    %1264 = vmatpush.msra.mxu0 0.0
    %1265 = vmatpush.msra.mxu0 %v1246
    %1266 = vmatpush.msra.mxu0 %v1245
    %1267 = vmatpush.msra.mxu0 %v1244
    %1268 = vmatpush.msra.mxu0 %v1243
    %1269 = vmatmul.f32.gmra.mxu0 %v1248
    %v1270 = vpop.f32.mrf.mxu0
    %v1271 = vadd.f32 0.0, %v1270
    %1272 = vmatmul.f32.gmra.mxu0 %v1251
    %v1273 = vpop.f32.mrf.mxu0
    %v1274 = vadd.f32 0.0, %v1273
    %1275 = vdwg.mxu0
    %1277 = vrot.lane.b32.xlu0 %v1271, 96
    %v1278 = vpop.permute.xlu0 %1277
    %v1279 = vsel %vm291, %v1271, 0
    %v1281 = vsel %vm291, %v1278, 0
    %1283 = vmatpush.xpose.msra.mxu0 0.0
    %1284 = vmatpush.xpose.msra.mxu0 0.0
    %1285 = vmatpush.xpose.msra.mxu0 0.0
    %1286 = vmatpush.xpose.msra.mxu0 0.0
    %1287 = vmatpush.xpose.msra.mxu0 0.0
    %1288 = vmatpush.xpose.msra.mxu0 0.0
    %1289 = vmatpush.xpose.msra.mxu0 0.0
    %1290 = vmatpush.xpose.msra.mxu0 0.0
    %1291 = vmatpush.xpose.msra.mxu0 0.0
    %1292 = vmatpush.xpose.msra.mxu0 0.0
    %1293 = vmatpush.xpose.msra.mxu0 0.0
    %1294 = vmatpush.xpose.msra.mxu0 0.0
    %1295 = vmatpush.xpose.msra.mxu0 0.0
    %1296 = vmatpush.xpose.msra.mxu0 0.0
    %1297 = vmatpush.xpose.msra.mxu0 0.0
    %1298 = vmatpush.xpose.msra.mxu0 %v1281
    %1299 = vmatmul.f32.gmra.mxu0 %v1279
    %v1300 = vpop.f32.mrf.mxu0
    %v1301 = vadd.f32 0.0, %v1300
    %1302 = vdwg.mxu0
    %v1303 = vsel %vm291, %v1301, -inf
    %1304 = vmax.xlane.f32.xlu0 %v1303
    %v1305 = vpop.xlane.xlu0 %1304
    %v1306 = vsub.f32 %v1301, %v1305
    %v1307 = vmul.f32 %v1306, 1.442695
    %v1308 = vpow.pop %v1307
    %v1309 = vsel %vm291, %v1308, 0.0
    %1310 = vadd.xlane.f32.xlu0 %v1309
    %v1311 = vpop.xlane.xlu0 %1310
    %v1312 = vrcp.pop %v1311
    %v1313 = vmul.f32 %v1311, %v1312
    %v1314 = vsub.f32 1.0, %v1313
    %v1315 = vmul.f32 %v1312, %v1314
    %v1316 = vadd.f32 %v1312, %v1315
    %vm1317 = vweird.f32 %v1311
    %vm1318 = vweird.f32 %v1312
    %vm1319 = vmor %vm1317, %vm1318
    %v1320 = vsel %vm1319, %v1312, %v1316
    %v1321 = vand.u32 2147483647, %v1311
    %vm1322 = vcmp.eq.f32.partialorder %v1321, 8.507059e+37
    %v1323 = vand.u32 %v1311, 2147483648
    %v1324 = vor.u32 1.1754944e-38, %v1323
    %v1325 = vsel %vm1322, %v1324, %v1320
    %v1326 = vmul.f32 %v1308, %v1325
    %1327 = vrot.lane.b32.xlu0 %v1271, 64
    %v1328 = vpop.permute.xlu0 %1327
    %v1331 = vsel %vm291, %v1326, 0
    %1333 = vmatpush.msra.mxu0 0.0
    %1334 = vmatpush.msra.mxu0 0.0
    %1335 = vmatpush.msra.mxu0 0.0
    %1336 = vmatpush.msra.mxu0 0.0
    %1337 = vmatpush.msra.mxu0 0.0
    %1338 = vmatpush.msra.mxu0 0.0
    %1339 = vmatpush.msra.mxu0 0.0
    %1340 = vmatpush.msra.mxu0 0.0
    %1341 = vmatpush.msra.mxu0 0.0
    %1342 = vmatpush.msra.mxu0 0.0
    %1343 = vmatpush.msra.mxu0 0.0
    %1344 = vmatpush.msra.mxu0 0.0
    %1345 = vmatpush.msra.mxu0 0.0
    %1346 = vmatpush.msra.mxu0 0.0
    %1347 = vmatpush.msra.mxu0 0.0
    %1348 = vmatpush.msra.mxu0 %v1328
    %1349 = vmatmul.f32.gmra.mxu0 %v1331
    %v1350 = vpop.f32.mrf.mxu0
    %v1351 = vadd.f32 0.0, %v1350
    %1352 = vdwg.mxu0
    %1353 = vrot.lane.b32.xlu0 %v1271, 120
    %v1354 = vpop.permute.xlu0 %1353
    %1355 = vrot.lane.b32.xlu0 %v1271, 88
    %v1356 = vpop.permute.xlu0 %1355
    %v1357 = vsel %vm291, %v1354, 0
    %v1359 = vsel %vm291, %v1356, 0
    %1361 = vmatpush.xpose.msra.mxu0 0.0
    %1362 = vmatpush.xpose.msra.mxu0 0.0
    %1363 = vmatpush.xpose.msra.mxu0 0.0
    %1364 = vmatpush.xpose.msra.mxu0 0.0
    %1365 = vmatpush.xpose.msra.mxu0 0.0
    %1366 = vmatpush.xpose.msra.mxu0 0.0
    %1367 = vmatpush.xpose.msra.mxu0 0.0
    %1368 = vmatpush.xpose.msra.mxu0 0.0
    %1369 = vmatpush.xpose.msra.mxu0 0.0
    %1370 = vmatpush.xpose.msra.mxu0 0.0
    %1371 = vmatpush.xpose.msra.mxu0 0.0
    %1372 = vmatpush.xpose.msra.mxu0 0.0
    %1373 = vmatpush.xpose.msra.mxu0 0.0
    %1374 = vmatpush.xpose.msra.mxu0 0.0
    %1375 = vmatpush.xpose.msra.mxu0 0.0
    %1376 = vmatpush.xpose.msra.mxu0 %v1359
    %1377 = vmatmul.f32.gmra.mxu0 %v1357
    %v1378 = vpop.f32.mrf.mxu0
    %v1379 = vadd.f32 0.0, %v1378
    %1380 = vdwg.mxu0
    %v1381 = vsel %vm291, %v1379, -inf
    %1382 = vmax.xlane.f32.xlu0 %v1381
    %v1383 = vpop.xlane.xlu0 %1382
    %v1384 = vsub.f32 %v1379, %v1383
    %v1385 = vmul.f32 %v1384, 1.442695
    %v1386 = vpow.pop %v1385
    %v1387 = vsel %vm291, %v1386, 0.0
    %1388 = vadd.xlane.f32.xlu0 %v1387
    %v1389 = vpop.xlane.xlu0 %1388
    %v1390 = vrcp.pop %v1389
    %v1391 = vmul.f32 %v1389, %v1390
    %v1392 = vsub.f32 1.0, %v1391
    %v1393 = vmul.f32 %v1390, %v1392
    %v1394 = vadd.f32 %v1390, %v1393
    %vm1395 = vweird.f32 %v1389
    %vm1396 = vweird.f32 %v1390
    %vm1397 = vmor %vm1395, %vm1396
    %v1398 = vsel %vm1397, %v1390, %v1394
    %v1399 = vand.u32 2147483647, %v1389
    %vm1400 = vcmp.eq.f32.partialorder %v1399, 8.507059e+37
    %v1401 = vand.u32 %v1389, 2147483648
    %v1402 = vor.u32 1.1754944e-38, %v1401
    %v1403 = vsel %vm1400, %v1402, %v1398
    %v1404 = vmul.f32 %v1386, %v1403
    %1405 = vrot.lane.b32.xlu0 %v1271, 56
    %v1406 = vpop.permute.xlu0 %1405
    %v1409 = vsel %vm291, %v1404, 0
    %1411 = vmatpush.msra.mxu0 0.0
    %1412 = vmatpush.msra.mxu0 0.0
    %1413 = vmatpush.msra.mxu0 0.0
    %1414 = vmatpush.msra.mxu0 0.0
    %1415 = vmatpush.msra.mxu0 0.0
    %1416 = vmatpush.msra.mxu0 0.0
    %1417 = vmatpush.msra.mxu0 0.0
    %1418 = vmatpush.msra.mxu0 0.0
    %1419 = vmatpush.msra.mxu0 0.0
    %1420 = vmatpush.msra.mxu0 0.0
    %1421 = vmatpush.msra.mxu0 0.0
    %1422 = vmatpush.msra.mxu0 0.0
    %1423 = vmatpush.msra.mxu0 0.0
    %1424 = vmatpush.msra.mxu0 0.0
    %1425 = vmatpush.msra.mxu0 0.0
    %1426 = vmatpush.msra.mxu0 %v1406
    %1427 = vmatmul.f32.gmra.mxu0 %v1409
    %v1428 = vpop.f32.mrf.mxu0
    %v1429 = vadd.f32 0.0, %v1428
    %1430 = vdwg.mxu0
    %1431 = vrot.lane.b32.xlu0 %v1271, 112
    %v1432 = vpop.permute.xlu0 %1431
    %1433 = vrot.lane.b32.xlu0 %v1271, 80
    %v1434 = vpop.permute.xlu0 %1433
    %v1435 = vsel %vm291, %v1432, 0
    %v1437 = vsel %vm291, %v1434, 0
    %1439 = vmatpush.xpose.msra.mxu0 0.0
    %1440 = vmatpush.xpose.msra.mxu0 0.0
    %1441 = vmatpush.xpose.msra.mxu0 0.0
    %1442 = vmatpush.xpose.msra.mxu0 0.0
    %1443 = vmatpush.xpose.msra.mxu0 0.0
    %1444 = vmatpush.xpose.msra.mxu0 0.0
    %1445 = vmatpush.xpose.msra.mxu0 0.0
    %1446 = vmatpush.xpose.msra.mxu0 0.0
    %1447 = vmatpush.xpose.msra.mxu0 0.0
    %1448 = vmatpush.xpose.msra.mxu0 0.0
    %1449 = vmatpush.xpose.msra.mxu0 0.0
    %1450 = vmatpush.xpose.msra.mxu0 0.0
    %1451 = vmatpush.xpose.msra.mxu0 0.0
    %1452 = vmatpush.xpose.msra.mxu0 0.0
    %1453 = vmatpush.xpose.msra.mxu0 0.0
    %1454 = vmatpush.xpose.msra.mxu0 %v1437
    %1455 = vmatmul.f32.gmra.mxu0 %v1435
    %v1456 = vpop.f32.mrf.mxu0
    %v1457 = vadd.f32 0.0, %v1456
    %1458 = vdwg.mxu0
    %v1459 = vsel %vm291, %v1457, -inf
    %1460 = vmax.xlane.f32.xlu0 %v1459
    %v1461 = vpop.xlane.xlu0 %1460
    %v1462 = vsub.f32 %v1457, %v1461
    %v1463 = vmul.f32 %v1462, 1.442695
    %v1464 = vpow.pop %v1463
    %v1465 = vsel %vm291, %v1464, 0.0
    %1466 = vadd.xlane.f32.xlu0 %v1465
    %v1467 = vpop.xlane.xlu0 %1466
    %v1468 = vrcp.pop %v1467
    %v1469 = vmul.f32 %v1467, %v1468
    %v1470 = vsub.f32 1.0, %v1469
    %v1471 = vmul.f32 %v1468, %v1470
    %v1472 = vadd.f32 %v1468, %v1471
    %vm1473 = vweird.f32 %v1467
    %vm1474 = vweird.f32 %v1468
    %vm1475 = vmor %vm1473, %vm1474
    %v1476 = vsel %vm1475, %v1468, %v1472
    %v1477 = vand.u32 2147483647, %v1467
    %vm1478 = vcmp.eq.f32.partialorder %v1477, 8.507059e+37
    %v1479 = vand.u32 %v1467, 2147483648
    %v1480 = vor.u32 1.1754944e-38, %v1479
    %v1481 = vsel %vm1478, %v1480, %v1476
    %v1482 = vmul.f32 %v1464, %v1481
    %1483 = vrot.lane.b32.xlu0 %v1271, 48
    %v1484 = vpop.permute.xlu0 %1483
    %v1487 = vsel %vm291, %v1482, 0
    %1489 = vmatpush.msra.mxu0 0.0
    %1490 = vmatpush.msra.mxu0 0.0
    %1491 = vmatpush.msra.mxu0 0.0
    %1492 = vmatpush.msra.mxu0 0.0
    %1493 = vmatpush.msra.mxu0 0.0
    %1494 = vmatpush.msra.mxu0 0.0
    %1495 = vmatpush.msra.mxu0 0.0
    %1496 = vmatpush.msra.mxu0 0.0
    %1497 = vmatpush.msra.mxu0 0.0
    %1498 = vmatpush.msra.mxu0 0.0
    %1499 = vmatpush.msra.mxu0 0.0
    %1500 = vmatpush.msra.mxu0 0.0
    %1501 = vmatpush.msra.mxu0 0.0
    %1502 = vmatpush.msra.mxu0 0.0
    %1503 = vmatpush.msra.mxu0 0.0
    %1504 = vmatpush.msra.mxu0 %v1484
    %1505 = vmatmul.f32.gmra.mxu0 %v1487
    %v1506 = vpop.f32.mrf.mxu0
    %v1507 = vadd.f32 0.0, %v1506
    %1508 = vdwg.mxu0
    %1509 = vrot.lane.b32.xlu0 %v1271, 104
    %v1510 = vpop.permute.xlu0 %1509
    %1511 = vrot.lane.b32.xlu0 %v1271, 72
    %v1512 = vpop.permute.xlu0 %1511
    %v1513 = vsel %vm291, %v1510, 0
    %v1515 = vsel %vm291, %v1512, 0
    %1517 = vmatpush.xpose.msra.mxu0 0.0
    %1518 = vmatpush.xpose.msra.mxu0 0.0
    %1519 = vmatpush.xpose.msra.mxu0 0.0
    %1520 = vmatpush.xpose.msra.mxu0 0.0
    %1521 = vmatpush.xpose.msra.mxu0 0.0
    %1522 = vmatpush.xpose.msra.mxu0 0.0
    %1523 = vmatpush.xpose.msra.mxu0 0.0
    %1524 = vmatpush.xpose.msra.mxu0 0.0
    %1525 = vmatpush.xpose.msra.mxu0 0.0
    %1526 = vmatpush.xpose.msra.mxu0 0.0
    %1527 = vmatpush.xpose.msra.mxu0 0.0
    %1528 = vmatpush.xpose.msra.mxu0 0.0
    %1529 = vmatpush.xpose.msra.mxu0 0.0
    %1530 = vmatpush.xpose.msra.mxu0 0.0
    %1531 = vmatpush.xpose.msra.mxu0 0.0
    %1532 = vmatpush.xpose.msra.mxu0 %v1515
    %1533 = vmatmul.f32.gmra.mxu0 %v1513
    %v1534 = vpop.f32.mrf.mxu0
    %v1535 = vadd.f32 0.0, %v1534
    %1536 = vdwg.mxu0
    %v1537 = vsel %vm291, %v1535, -inf
    %1538 = vmax.xlane.f32.xlu0 %v1537
    %v1539 = vpop.xlane.xlu0 %1538
    %v1540 = vsub.f32 %v1535, %v1539
    %v1541 = vmul.f32 %v1540, 1.442695
    %v1542 = vpow.pop %v1541
    %v1543 = vsel %vm291, %v1542, 0.0
    %1544 = vadd.xlane.f32.xlu0 %v1543
    %v1545 = vpop.xlane.xlu0 %1544
    %v1546 = vrcp.pop %v1545
    %v1547 = vmul.f32 %v1545, %v1546
    %v1548 = vsub.f32 1.0, %v1547
    %v1549 = vmul.f32 %v1546, %v1548
    %v1550 = vadd.f32 %v1546, %v1549
    %vm1551 = vweird.f32 %v1545
    %vm1552 = vweird.f32 %v1546
    %vm1553 = vmor %vm1551, %vm1552
    %v1554 = vsel %vm1553, %v1546, %v1550
    %v1555 = vand.u32 2147483647, %v1545
    %vm1556 = vcmp.eq.f32.partialorder %v1555, 8.507059e+37
    %v1557 = vand.u32 %v1545, 2147483648
    %v1558 = vor.u32 1.1754944e-38, %v1557
    %v1559 = vsel %vm1556, %v1558, %v1554
    %v1560 = vmul.f32 %v1542, %v1559
    %1561 = vrot.lane.b32.xlu0 %v1271, 40
    %v1562 = vpop.permute.xlu0 %1561
    %v1565 = vsel %vm291, %v1560, 0
    %1567 = vmatpush.msra.mxu0 0.0
    %1568 = vmatpush.msra.mxu0 0.0
    %1569 = vmatpush.msra.mxu0 0.0
    %1570 = vmatpush.msra.mxu0 0.0
    %1571 = vmatpush.msra.mxu0 0.0
    %1572 = vmatpush.msra.mxu0 0.0
    %1573 = vmatpush.msra.mxu0 0.0
    %1574 = vmatpush.msra.mxu0 0.0
    %1575 = vmatpush.msra.mxu0 0.0
    %1576 = vmatpush.msra.mxu0 0.0
    %1577 = vmatpush.msra.mxu0 0.0
    %1578 = vmatpush.msra.mxu0 0.0
    %1579 = vmatpush.msra.mxu0 0.0
    %1580 = vmatpush.msra.mxu0 0.0
    %1581 = vmatpush.msra.mxu0 0.0
    %1582 = vmatpush.msra.mxu0 %v1562
    %1583 = vmatmul.f32.gmra.mxu0 %v1565
    %v1584 = vpop.f32.mrf.mxu0
    %v1585 = vadd.f32 0.0, %v1584
    %1586 = vdwg.mxu0
    %1588 = vrot.lane.b32.xlu0 %v1429, 8
    %v1589 = vpop.permute.xlu0 %1588
    %1592 = vrot.lane.b32.xlu0 %v1507, 16
    %v1593 = vpop.permute.xlu0 %1592
    %1596 = vrot.lane.b32.xlu0 %v1585, 24
    %v1597 = vpop.permute.xlu0 %1596
    %v1599 = vsel %vm291, %v1351, %v1589
    %v1600 = vsel %vm613, %v1599, %v1593
    %v1601 = vsel %vm615, %v1600, %v1597
    %1603 = vrot.lane.b32.xlu0 %v1274, 96
    %v1604 = vpop.permute.xlu0 %1603
    %v1605 = vsel %vm291, %v1274, 0
    %v1607 = vsel %vm291, %v1604, 0
    %1609 = vmatpush.xpose.msra.mxu0 0.0
    %1610 = vmatpush.xpose.msra.mxu0 0.0
    %1611 = vmatpush.xpose.msra.mxu0 0.0
    %1612 = vmatpush.xpose.msra.mxu0 0.0
    %1613 = vmatpush.xpose.msra.mxu0 0.0
    %1614 = vmatpush.xpose.msra.mxu0 0.0
    %1615 = vmatpush.xpose.msra.mxu0 0.0
    %1616 = vmatpush.xpose.msra.mxu0 0.0
    %1617 = vmatpush.xpose.msra.mxu0 0.0
    %1618 = vmatpush.xpose.msra.mxu0 0.0
    %1619 = vmatpush.xpose.msra.mxu0 0.0
    %1620 = vmatpush.xpose.msra.mxu0 0.0
    %1621 = vmatpush.xpose.msra.mxu0 0.0
    %1622 = vmatpush.xpose.msra.mxu0 0.0
    %1623 = vmatpush.xpose.msra.mxu0 0.0
    %1624 = vmatpush.xpose.msra.mxu0 %v1607
    %1625 = vmatmul.f32.gmra.mxu0 %v1605
    %v1626 = vpop.f32.mrf.mxu0
    %v1627 = vadd.f32 0.0, %v1626
    %1628 = vdwg.mxu0
    %v1629 = vsel %vm291, %v1627, -inf
    %1630 = vmax.xlane.f32.xlu0 %v1629
    %v1631 = vpop.xlane.xlu0 %1630
    %v1632 = vsub.f32 %v1627, %v1631
    %v1633 = vmul.f32 %v1632, 1.442695
    %v1634 = vpow.pop %v1633
    %v1635 = vsel %vm291, %v1634, 0.0
    %1636 = vadd.xlane.f32.xlu0 %v1635
    %v1637 = vpop.xlane.xlu0 %1636
    %v1638 = vrcp.pop %v1637
    %v1639 = vmul.f32 %v1637, %v1638
    %v1640 = vsub.f32 1.0, %v1639
    %v1641 = vmul.f32 %v1638, %v1640
    %v1642 = vadd.f32 %v1638, %v1641
    %vm1643 = vweird.f32 %v1637
    %vm1644 = vweird.f32 %v1638
    %vm1645 = vmor %vm1643, %vm1644
    %v1646 = vsel %vm1645, %v1638, %v1642
    %v1647 = vand.u32 2147483647, %v1637
    %vm1648 = vcmp.eq.f32.partialorder %v1647, 8.507059e+37
    %v1649 = vand.u32 %v1637, 2147483648
    %v1650 = vor.u32 1.1754944e-38, %v1649
    %v1651 = vsel %vm1648, %v1650, %v1646
    %v1652 = vmul.f32 %v1634, %v1651
    %1653 = vrot.lane.b32.xlu0 %v1274, 64
    %v1654 = vpop.permute.xlu0 %1653
    %v1657 = vsel %vm291, %v1652, 0
    %1659 = vmatpush.msra.mxu0 0.0
    %1660 = vmatpush.msra.mxu0 0.0
    %1661 = vmatpush.msra.mxu0 0.0
    %1662 = vmatpush.msra.mxu0 0.0
    %1663 = vmatpush.msra.mxu0 0.0
    %1664 = vmatpush.msra.mxu0 0.0
    %1665 = vmatpush.msra.mxu0 0.0
    %1666 = vmatpush.msra.mxu0 0.0
    %1667 = vmatpush.msra.mxu0 0.0
    %1668 = vmatpush.msra.mxu0 0.0
    %1669 = vmatpush.msra.mxu0 0.0
    %1670 = vmatpush.msra.mxu0 0.0
    %1671 = vmatpush.msra.mxu0 0.0
    %1672 = vmatpush.msra.mxu0 0.0
    %1673 = vmatpush.msra.mxu0 0.0
    %1674 = vmatpush.msra.mxu0 %v1654
    %1675 = vmatmul.f32.gmra.mxu0 %v1657
    %v1676 = vpop.f32.mrf.mxu0
    %v1677 = vadd.f32 0.0, %v1676
    %1678 = vdwg.mxu0
    %1679 = vrot.lane.b32.xlu0 %v1274, 120
    %v1680 = vpop.permute.xlu0 %1679
    %1681 = vrot.lane.b32.xlu0 %v1274, 88
    %v1682 = vpop.permute.xlu0 %1681
    %v1683 = vsel %vm291, %v1680, 0
    %v1685 = vsel %vm291, %v1682, 0
    %1687 = vmatpush.xpose.msra.mxu0 0.0
    %1688 = vmatpush.xpose.msra.mxu0 0.0
    %1689 = vmatpush.xpose.msra.mxu0 0.0
    %1690 = vmatpush.xpose.msra.mxu0 0.0
    %1691 = vmatpush.xpose.msra.mxu0 0.0
    %1692 = vmatpush.xpose.msra.mxu0 0.0
    %1693 = vmatpush.xpose.msra.mxu0 0.0
    %1694 = vmatpush.xpose.msra.mxu0 0.0
    %1695 = vmatpush.xpose.msra.mxu0 0.0
    %1696 = vmatpush.xpose.msra.mxu0 0.0
    %1697 = vmatpush.xpose.msra.mxu0 0.0
    %1698 = vmatpush.xpose.msra.mxu0 0.0
    %1699 = vmatpush.xpose.msra.mxu0 0.0
    %1700 = vmatpush.xpose.msra.mxu0 0.0
    %1701 = vmatpush.xpose.msra.mxu0 0.0
    %1702 = vmatpush.xpose.msra.mxu0 %v1685
    %1703 = vmatmul.f32.gmra.mxu0 %v1683
    %v1704 = vpop.f32.mrf.mxu0
    %v1705 = vadd.f32 0.0, %v1704
    %1706 = vdwg.mxu0
    %v1707 = vsel %vm291, %v1705, -inf
    %1708 = vmax.xlane.f32.xlu0 %v1707
    %v1709 = vpop.xlane.xlu0 %1708
    %v1710 = vsub.f32 %v1705, %v1709
    %v1711 = vmul.f32 %v1710, 1.442695
    %v1712 = vpow.pop %v1711
    %v1713 = vsel %vm291, %v1712, 0.0
    %1714 = vadd.xlane.f32.xlu0 %v1713
    %v1715 = vpop.xlane.xlu0 %1714
    %v1716 = vrcp.pop %v1715
    %v1717 = vmul.f32 %v1715, %v1716
    %v1718 = vsub.f32 1.0, %v1717
    %v1719 = vmul.f32 %v1716, %v1718
    %v1720 = vadd.f32 %v1716, %v1719
    %vm1721 = vweird.f32 %v1715
    %vm1722 = vweird.f32 %v1716
    %vm1723 = vmor %vm1721, %vm1722
    %v1724 = vsel %vm1723, %v1716, %v1720
    %v1725 = vand.u32 2147483647, %v1715
    %vm1726 = vcmp.eq.f32.partialorder %v1725, 8.507059e+37
    %v1727 = vand.u32 %v1715, 2147483648
    %v1728 = vor.u32 1.1754944e-38, %v1727
    %v1729 = vsel %vm1726, %v1728, %v1724
    %v1730 = vmul.f32 %v1712, %v1729
    %1731 = vrot.lane.b32.xlu0 %v1274, 56
    %v1732 = vpop.permute.xlu0 %1731
    %v1735 = vsel %vm291, %v1730, 0
    %1737 = vmatpush.msra.mxu0 0.0
    %1738 = vmatpush.msra.mxu0 0.0
    %1739 = vmatpush.msra.mxu0 0.0
    %1740 = vmatpush.msra.mxu0 0.0
    %1741 = vmatpush.msra.mxu0 0.0
    %1742 = vmatpush.msra.mxu0 0.0
    %1743 = vmatpush.msra.mxu0 0.0
    %1744 = vmatpush.msra.mxu0 0.0
    %1745 = vmatpush.msra.mxu0 0.0
    %1746 = vmatpush.msra.mxu0 0.0
    %1747 = vmatpush.msra.mxu0 0.0
    %1748 = vmatpush.msra.mxu0 0.0
    %1749 = vmatpush.msra.mxu0 0.0
    %1750 = vmatpush.msra.mxu0 0.0
    %1751 = vmatpush.msra.mxu0 0.0
    %1752 = vmatpush.msra.mxu0 %v1732
    %1753 = vmatmul.f32.gmra.mxu0 %v1735
    %v1754 = vpop.f32.mrf.mxu0
    %v1755 = vadd.f32 0.0, %v1754
    %1756 = vdwg.mxu0
    %1757 = vrot.lane.b32.xlu0 %v1274, 112
    %v1758 = vpop.permute.xlu0 %1757
    %1759 = vrot.lane.b32.xlu0 %v1274, 80
    %v1760 = vpop.permute.xlu0 %1759
    %v1761 = vsel %vm291, %v1758, 0
    %v1763 = vsel %vm291, %v1760, 0
    %1765 = vmatpush.xpose.msra.mxu0 0.0
    %1766 = vmatpush.xpose.msra.mxu0 0.0
    %1767 = vmatpush.xpose.msra.mxu0 0.0
    %1768 = vmatpush.xpose.msra.mxu0 0.0
    %1769 = vmatpush.xpose.msra.mxu0 0.0
    %1770 = vmatpush.xpose.msra.mxu0 0.0
    %1771 = vmatpush.xpose.msra.mxu0 0.0
    %1772 = vmatpush.xpose.msra.mxu0 0.0
    %1773 = vmatpush.xpose.msra.mxu0 0.0
    %1774 = vmatpush.xpose.msra.mxu0 0.0
    %1775 = vmatpush.xpose.msra.mxu0 0.0
    %1776 = vmatpush.xpose.msra.mxu0 0.0
    %1777 = vmatpush.xpose.msra.mxu0 0.0
    %1778 = vmatpush.xpose.msra.mxu0 0.0
    %1779 = vmatpush.xpose.msra.mxu0 0.0
    %1780 = vmatpush.xpose.msra.mxu0 %v1763
    %1781 = vmatmul.f32.gmra.mxu0 %v1761
    %v1782 = vpop.f32.mrf.mxu0
    %v1783 = vadd.f32 0.0, %v1782
    %1784 = vdwg.mxu0
    %v1785 = vsel %vm291, %v1783, -inf
    %1786 = vmax.xlane.f32.xlu0 %v1785
    %v1787 = vpop.xlane.xlu0 %1786
    %v1788 = vsub.f32 %v1783, %v1787
    %v1789 = vmul.f32 %v1788, 1.442695
    %v1790 = vpow.pop %v1789
    %v1791 = vsel %vm291, %v1790, 0.0
    %1792 = vadd.xlane.f32.xlu0 %v1791
    %v1793 = vpop.xlane.xlu0 %1792
    %v1794 = vrcp.pop %v1793
    %v1795 = vmul.f32 %v1793, %v1794
    %v1796 = vsub.f32 1.0, %v1795
    %v1797 = vmul.f32 %v1794, %v1796
    %v1798 = vadd.f32 %v1794, %v1797
    %vm1799 = vweird.f32 %v1793
    %vm1800 = vweird.f32 %v1794
    %vm1801 = vmor %vm1799, %vm1800
    %v1802 = vsel %vm1801, %v1794, %v1798
    %v1803 = vand.u32 2147483647, %v1793
    %vm1804 = vcmp.eq.f32.partialorder %v1803, 8.507059e+37
    %v1805 = vand.u32 %v1793, 2147483648
    %v1806 = vor.u32 1.1754944e-38, %v1805
    %v1807 = vsel %vm1804, %v1806, %v1802
    %v1808 = vmul.f32 %v1790, %v1807
    %1809 = vrot.lane.b32.xlu0 %v1274, 48
    %v1810 = vpop.permute.xlu0 %1809
    %v1813 = vsel %vm291, %v1808, 0
    %1815 = vmatpush.msra.mxu0 0.0
    %1816 = vmatpush.msra.mxu0 0.0
    %1817 = vmatpush.msra.mxu0 0.0
    %1818 = vmatpush.msra.mxu0 0.0
    %1819 = vmatpush.msra.mxu0 0.0
    %1820 = vmatpush.msra.mxu0 0.0
    %1821 = vmatpush.msra.mxu0 0.0
    %1822 = vmatpush.msra.mxu0 0.0
    %1823 = vmatpush.msra.mxu0 0.0
    %1824 = vmatpush.msra.mxu0 0.0
    %1825 = vmatpush.msra.mxu0 0.0
    %1826 = vmatpush.msra.mxu0 0.0
    %1827 = vmatpush.msra.mxu0 0.0
    %1828 = vmatpush.msra.mxu0 0.0
    %1829 = vmatpush.msra.mxu0 0.0
    %1830 = vmatpush.msra.mxu0 %v1810
    %1831 = vmatmul.f32.gmra.mxu0 %v1813
    %v1832 = vpop.f32.mrf.mxu0
    %v1833 = vadd.f32 0.0, %v1832
    %1834 = vdwg.mxu0
    %1835 = vrot.lane.b32.xlu0 %v1274, 104
    %v1836 = vpop.permute.xlu0 %1835
    %1837 = vrot.lane.b32.xlu0 %v1274, 72
    %v1838 = vpop.permute.xlu0 %1837
    %v1839 = vsel %vm291, %v1836, 0
    %v1841 = vsel %vm291, %v1838, 0
    %1843 = vmatpush.xpose.msra.mxu0 0.0
    %1844 = vmatpush.xpose.msra.mxu0 0.0
    %1845 = vmatpush.xpose.msra.mxu0 0.0
    %1846 = vmatpush.xpose.msra.mxu0 0.0
    %1847 = vmatpush.xpose.msra.mxu0 0.0
    %1848 = vmatpush.xpose.msra.mxu0 0.0
    %1849 = vmatpush.xpose.msra.mxu0 0.0
    %1850 = vmatpush.xpose.msra.mxu0 0.0
    %1851 = vmatpush.xpose.msra.mxu0 0.0
    %1852 = vmatpush.xpose.msra.mxu0 0.0
    %1853 = vmatpush.xpose.msra.mxu0 0.0
    %1854 = vmatpush.xpose.msra.mxu0 0.0
    %1855 = vmatpush.xpose.msra.mxu0 0.0
    %1856 = vmatpush.xpose.msra.mxu0 0.0
    %1857 = vmatpush.xpose.msra.mxu0 0.0
    %1858 = vmatpush.xpose.msra.mxu0 %v1841
    %1859 = vmatmul.f32.gmra.mxu0 %v1839
    %v1860 = vpop.f32.mrf.mxu0
    %v1861 = vadd.f32 0.0, %v1860
    %1862 = vdwg.mxu0
    %v1863 = vsel %vm291, %v1861, -inf
    %1864 = vmax.xlane.f32.xlu0 %v1863
    %v1865 = vpop.xlane.xlu0 %1864
    %v1866 = vsub.f32 %v1861, %v1865
    %v1867 = vmul.f32 %v1866, 1.442695
    %v1868 = vpow.pop %v1867
    %v1869 = vsel %vm291, %v1868, 0.0
    %1870 = vadd.xlane.f32.xlu0 %v1869
    %v1871 = vpop.xlane.xlu0 %1870
    %v1872 = vrcp.pop %v1871
    %v1873 = vmul.f32 %v1871, %v1872
    %v1874 = vsub.f32 1.0, %v1873
    %v1875 = vmul.f32 %v1872, %v1874
    %v1876 = vadd.f32 %v1872, %v1875
    %vm1877 = vweird.f32 %v1871
    %vm1878 = vweird.f32 %v1872
    %vm1879 = vmor %vm1877, %vm1878
    %v1880 = vsel %vm1879, %v1872, %v1876
    %v1881 = vand.u32 2147483647, %v1871
    %vm1882 = vcmp.eq.f32.partialorder %v1881, 8.507059e+37
    %v1883 = vand.u32 %v1871, 2147483648
    %v1884 = vor.u32 1.1754944e-38, %v1883
    %v1885 = vsel %vm1882, %v1884, %v1880
    %v1886 = vmul.f32 %v1868, %v1885
    %1887 = vrot.lane.b32.xlu0 %v1274, 40
    %v1888 = vpop.permute.xlu0 %1887
    %v1891 = vsel %vm291, %v1886, 0
    %1893 = vmatpush.msra.mxu0 0.0
    %1894 = vmatpush.msra.mxu0 0.0
    %1895 = vmatpush.msra.mxu0 0.0
    %1896 = vmatpush.msra.mxu0 0.0
    %1897 = vmatpush.msra.mxu0 0.0
    %1898 = vmatpush.msra.mxu0 0.0
    %1899 = vmatpush.msra.mxu0 0.0
    %1900 = vmatpush.msra.mxu0 0.0
    %1901 = vmatpush.msra.mxu0 0.0
    %1902 = vmatpush.msra.mxu0 0.0
    %1903 = vmatpush.msra.mxu0 0.0
    %1904 = vmatpush.msra.mxu0 0.0
    %1905 = vmatpush.msra.mxu0 0.0
    %1906 = vmatpush.msra.mxu0 0.0
    %1907 = vmatpush.msra.mxu0 0.0
    %1908 = vmatpush.msra.mxu0 %v1888
    %1909 = vmatmul.f32.gmra.mxu0 %v1891
    %v1910 = vpop.f32.mrf.mxu0
    %v1911 = vadd.f32 0.0, %v1910
    %1912 = vdwg.mxu0
    %1914 = vrot.lane.b32.xlu0 %v1755, 8
    %v1915 = vpop.permute.xlu0 %1914
    %1918 = vrot.lane.b32.xlu0 %v1833, 16
    %v1919 = vpop.permute.xlu0 %1918
    %1922 = vrot.lane.b32.xlu0 %v1911, 24
    %v1923 = vpop.permute.xlu0 %1922
    %v1925 = vsel %vm291, %v1677, %v1915
    %v1926 = vsel %vm613, %v1925, %v1919
    %v1927 = vsel %vm615, %v1926, %v1923
    %s1928 = scalar_lea.vmem %s4, 32
    %v1929 = vld [vmem:[%s1928] sm:$0xff]
    %v1930 = vld [vmem:[%s1928 + $0x8] sm:$0xff]
    %v1931 = vld [vmem:[%s1928 + $0x10] sm:$0xff]
    %v1932 = vld [vmem:[%s1928 + $0x18] sm:$0xff]
    %v1934 = vsel %vm197, %v1601, 0
    %v1937 = vsel %vm197, %v1927, 0
    %1939 = vmatpush.msra.mxu0 0.0
    %1940 = vmatpush.msra.mxu0 0.0
    %1941 = vmatpush.msra.mxu0 0.0
    %1942 = vmatpush.msra.mxu0 0.0
    %1943 = vmatpush.msra.mxu0 0.0
    %1944 = vmatpush.msra.mxu0 0.0
    %1945 = vmatpush.msra.mxu0 0.0
    %1946 = vmatpush.msra.mxu0 0.0
    %1947 = vmatpush.msra.mxu0 0.0
    %1948 = vmatpush.msra.mxu0 0.0
    %1949 = vmatpush.msra.mxu0 0.0
    %1950 = vmatpush.msra.mxu0 0.0
    %1951 = vmatpush.msra.mxu0 %v1932
    %1952 = vmatpush.msra.mxu0 %v1931
    %1953 = vmatpush.msra.mxu0 %v1930
    %1954 = vmatpush.msra.mxu0 %v1929
    %1955 = vmatmul.f32.gmra.mxu0 %v1934
    %v1956 = vpop.f32.mrf.mxu0
    %v1957 = vadd.f32 0.0, %v1956
    %1958 = vmatmul.f32.gmra.mxu0 %v1937
    %v1959 = vpop.f32.mrf.mxu0
    %v1960 = vadd.f32 0.0, %v1959
    %1961 = vdwg.mxu0
    %v1962 = vadd.f32 %v1186, %v1957
    %v1963 = vadd.f32 %v1187, %v1960
    %v1964 = vperm.slane %v1191, 2
    %v1965 = vadd.f32 %v1962, %v1964
    %v1966 = vadd.f32 %v1963, %v1964
    %v1967 = vsel %vm197, %v1965, 0.0
    %1968 = vadd.xlane.f32.xlu0 %v1967
    %v1969 = vpop.xlane.xlu0 %1968
    %v1970 = vsel %vm197, %v1966, 0.0
    %1971 = vadd.xlane.f32.xlu0 %v1970
    %v1972 = vpop.xlane.xlu0 %1971
    %v1973 = vmul.f32 %v1969, %v210
    %v1974 = vmul.f32 %v1972, %v210
    %v1975 = vsub.f32 %v1965, %v1973
    %v1976 = vsub.f32 %v1966, %v1974
    %v1977 = vmul.f32 %v1975, %v1975
    %v1978 = vmul.f32 %v1976, %v1976
    %v1979 = vsel %vm197, %v1977, 0.0
    %1980 = vadd.xlane.f32.xlu0 %v1979
    %v1981 = vpop.xlane.xlu0 %1980
    %v1982 = vsel %vm197, %v1978, 0.0
    %1983 = vadd.xlane.f32.xlu0 %v1982
    %v1984 = vpop.xlane.xlu0 %1983
    %v1985 = vmul.f32 %v1981, %v210
    %v1986 = vmul.f32 %v1984, %v210
    %v1987 = vadd.f32 %v1985, 1e-05
    %v1988 = vadd.f32 %v1986, 1e-05
    %v1989 = vrsqrt.pop %v1987
    %v1990 = vmul.f32 %v1989, %v1987
    %v1991 = vmul.f32 %v1990, %v1989
    %v1992 = vmul.f32 0.5, %v1991
    %v1993 = vsub.f32 1.5, %v1992
    %v1994 = vmul.f32 %v1989, %v1993
    %vm1995 = vweird.f32 %v1987
    %vm1996 = vweird.f32 %v1989
    %vm1997 = vmor %vm1995, %vm1996
    %v1998 = vsel %vm1997, %v1989, %v1994
    %v1999 = vrsqrt.pop %v1988
    %v2000 = vmul.f32 %v1999, %v1988
    %v2001 = vmul.f32 %v2000, %v1999
    %v2002 = vmul.f32 0.5, %v2001
    %v2003 = vsub.f32 1.5, %v2002
    %v2004 = vmul.f32 %v1999, %v2003
    %vm2005 = vweird.f32 %v1988
    %vm2006 = vweird.f32 %v1999
    %vm2007 = vmor %vm2005, %vm2006
    %v2008 = vsel %vm2007, %v1999, %v2004
    %v2009 = vmul.f32 %v1975, %v1998
    %v2010 = vmul.f32 %v1976, %v2008
    %v2011 = vperm.slane %v1191, 3
    %v2012 = vmul.f32 %v2009, %v2011
    %v2013 = vmul.f32 %v2010, %v2011
    %v2014 = vperm.slane %v1191, 4
    %v2015 = vadd.f32 %v2012, %v2014
    %v2016 = vadd.f32 %v2013, %v2014
    %s2017 = scalar_lea.vmem %s5, 32
    %v2018 = vld [vmem:[%s2017] sm:$0xff]
    %v2019 = vld [vmem:[%s2017 + $0x8] sm:$0xff]
    %v2020 = vld [vmem:[%s2017 + $0x10] sm:$0xff]
    %v2021 = vld [vmem:[%s2017 + $0x18] sm:$0xff]
    %v2022 = vperm.slane %v1191, 5
    %v2024 = vsel %vm197, %v2015, 0
    %v2027 = vsel %vm197, %v2016, 0
    %2029 = vmatpush.msra.mxu0 0.0
    %2030 = vmatpush.msra.mxu0 0.0
    %2031 = vmatpush.msra.mxu0 0.0
    %2032 = vmatpush.msra.mxu0 0.0
    %2033 = vmatpush.msra.mxu0 0.0
    %2034 = vmatpush.msra.mxu0 0.0
    %2035 = vmatpush.msra.mxu0 0.0
    %2036 = vmatpush.msra.mxu0 0.0
    %2037 = vmatpush.msra.mxu0 0.0
    %2038 = vmatpush.msra.mxu0 0.0
    %2039 = vmatpush.msra.mxu0 0.0
    %2040 = vmatpush.msra.mxu0 0.0
    %2041 = vmatpush.msra.mxu0 %v2021
    %2042 = vmatpush.msra.mxu0 %v2020
    %2043 = vmatpush.msra.mxu0 %v2019
    %2044 = vmatpush.msra.mxu0 %v2018
    %2045 = vmatmul.f32.gmra.mxu0 %v2024
    %v2046 = vpop.f32.mrf.mxu0
    %v2047 = vadd.f32 %v2022, %v2046
    %2048 = vmatmul.f32.gmra.mxu0 %v2027
    %v2049 = vpop.f32.mrf.mxu0
    %v2050 = vadd.f32 %v2022, %v2049
    %2051 = vdwg.mxu0
    %v2052 = vmul.f32 %v2047, 0.5
    %v2053 = vmul.f32 %v2050, 0.5
    %v2054 = vmul.f32 %v2047, 0.70710677
    %v2055 = vmul.f32 %v2050, 0.70710677
    %vm2056 = vcmp.lt.f32.partialorder %v2054, 0.0
    %vm2057 = vcmp.lt.f32.partialorder %v2055, 0.0
    %v2058 = vsel %vm2056, -1.0, 1.0
    %v2059 = vsel %vm2057, -1.0, 1.0
    %v2060 = vand.u32 2147483647, %v2054
    %v2061 = vand.u32 2147483647, %v2055
    %v2062 = vmul.f32 %v2060, 0.3275911
    %v2063 = vmul.f32 %v2061, 0.3275911
    %v2064 = vadd.f32 %v2062, 1.0
    %v2065 = vadd.f32 %v2063, 1.0
    %v2066 = vrcp.pop %v2064
    %v2067 = vmul.f32 %v2064, %v2066
    %v2068 = vsub.f32 1.0, %v2067
    %v2069 = vmul.f32 %v2066, %v2068
    %v2070 = vadd.f32 %v2066, %v2069
    %vm2071 = vweird.f32 %v2064
    %vm2072 = vweird.f32 %v2066
    %vm2073 = vmor %vm2071, %vm2072
    %v2074 = vsel %vm2073, %v2066, %v2070
    %v2075 = vand.u32 2147483647, %v2064
    %vm2076 = vcmp.eq.f32.partialorder %v2075, 8.507059e+37
    %v2077 = vand.u32 %v2064, 2147483648
    %v2078 = vor.u32 1.1754944e-38, %v2077
    %v2079 = vsel %vm2076, %v2078, %v2074
    %v2080 = vmul.f32 1.0, %v2079
    %v2081 = vrcp.pop %v2065
    %v2082 = vmul.f32 %v2065, %v2081
    %v2083 = vsub.f32 1.0, %v2082
    %v2084 = vmul.f32 %v2081, %v2083
    %v2085 = vadd.f32 %v2081, %v2084
    %vm2086 = vweird.f32 %v2065
    %vm2087 = vweird.f32 %v2081
    %vm2088 = vmor %vm2086, %vm2087
    %v2089 = vsel %vm2088, %v2081, %v2085
    %v2090 = vand.u32 2147483647, %v2065
    %vm2091 = vcmp.eq.f32.partialorder %v2090, 8.507059e+37
    %v2092 = vand.u32 %v2065, 2147483648
    %v2093 = vor.u32 1.1754944e-38, %v2092
    %v2094 = vsel %vm2091, %v2093, %v2089
    %v2095 = vmul.f32 1.0, %v2094
    %v2096 = vmul.f32 %v2080, 1.0614054
    %v2097 = vmul.f32 %v2095, 1.0614054
    %v2098 = vadd.f32 %v2096, -1.4531521
    %v2099 = vadd.f32 %v2097, -1.4531521
    %v2100 = vmul.f32 %v2098, %v2080
    %v2101 = vmul.f32 %v2099, %v2095
    %v2102 = vadd.f32 %v2100, 1.4214138
    %v2103 = vadd.f32 %v2101, 1.4214138
    %v2104 = vmul.f32 %v2102, %v2080
    %v2105 = vmul.f32 %v2103, %v2095
    %v2106 = vadd.f32 %v2104, -0.28449672
    %v2107 = vadd.f32 %v2105, -0.28449672
    %v2108 = vmul.f32 %v2106, %v2080
    %v2109 = vmul.f32 %v2107, %v2095
    %v2110 = vadd.f32 %v2108, 0.2548296
    %v2111 = vadd.f32 %v2109, 0.2548296
    %v2112 = vmul.f32 %v2110, %v2080
    %v2113 = vmul.f32 %v2111, %v2095
    %v2114 = vsub.f32 0.0, %v2060
    %v2115 = vsub.f32 0.0, %v2061
    %v2116 = vmul.f32 %v2114, %v2060
    %v2117 = vmul.f32 %v2115, %v2061
    %v2118 = vmul.f32 %v2116, 1.442695
    %v2119 = vpow.pop %v2118
    %v2120 = vmul.f32 %v2117, 1.442695
    %v2121 = vpow.pop %v2120
    %v2122 = vmul.f32 %v2112, %v2119
    %v2123 = vmul.f32 %v2113, %v2121
    %v2124 = vsub.f32 1.0, %v2122
    %v2125 = vsub.f32 1.0, %v2123
    %v2126 = vmul.f32 %v2058, %v2124
    %v2127 = vmul.f32 %v2059, %v2125
    %v2128 = vadd.f32 %v2126, 1.0
    %v2129 = vadd.f32 %v2127, 1.0
    %v2130 = vmul.f32 %v2052, %v2128
    %v2131 = vmul.f32 %v2053, %v2129
    %s2132 = scalar_lea.vmem %s6, 64
    %v2133 = vld [vmem:[%s2132] sm:$0xff]
    %v2134 = vld [vmem:[%s2132 + $0x8] sm:$0xff]
    %v2135 = vld [vmem:[%s2132 + $0x10] sm:$0xff]
    %v2136 = vld [vmem:[%s2132 + $0x18] sm:$0xff]
    %v2137 = vld [vmem:[%s2132 + $0x20] sm:$0xff]
    %v2138 = vld [vmem:[%s2132 + $0x28] sm:$0xff]
    %v2139 = vld [vmem:[%s2132 + $0x30] sm:$0xff]
    %v2140 = vld [vmem:[%s2132 + $0x38] sm:$0xff]
    %v2142 = vsel %vm1153, %v2130, 0
    %v2145 = vsel %vm1153, %v2131, 0
    %2147 = vmatpush.msra.mxu0 0.0
    %2148 = vmatpush.msra.mxu0 0.0
    %2149 = vmatpush.msra.mxu0 0.0
    %2150 = vmatpush.msra.mxu0 0.0
    %2151 = vmatpush.msra.mxu0 0.0
    %2152 = vmatpush.msra.mxu0 0.0
    %2153 = vmatpush.msra.mxu0 0.0
    %2154 = vmatpush.msra.mxu0 0.0
    %2155 = vmatpush.msra.mxu0 %v2140
    %2156 = vmatpush.msra.mxu0 %v2139
    %2157 = vmatpush.msra.mxu0 %v2138
    %2158 = vmatpush.msra.mxu0 %v2137
    %2159 = vmatpush.msra.mxu0 %v2136
    %2160 = vmatpush.msra.mxu0 %v2135
    %2161 = vmatpush.msra.mxu0 %v2134
    %2162 = vmatpush.msra.mxu0 %v2133
    %2163 = vmatmul.f32.gmra.mxu0 %v2142
    %v2164 = vpop.f32.mrf.mxu0
    %v2165 = vadd.f32 0.0, %v2164
    %2166 = vmatmul.f32.gmra.mxu0 %v2145
    %v2167 = vpop.f32.mrf.mxu0
    %v2168 = vadd.f32 0.0, %v2167
    %2169 = vdwg.mxu0
    %v2170 = vadd.f32 %v1965, %v2165
    %v2171 = vadd.f32 %v1966, %v2168
    %v2172 = vperm.slane %v1191, 6
    %v2173 = vadd.f32 %v2170, %v2172
    %v2174 = vadd.f32 %v2171, %v2172
    %s2175 = scalar_lea.vmem [#allocation2], 16
    %2176 = vst.msk [vmem:[%s2175] sm:$0xff] %vm197, %v2173
    %2177 = vst.msk [vmem:[%s2175 + $0x8] sm:$0xff] %vm197, %v2174
    %s2178 = scalar_lea.vmem %s7, 16
    %v2179 = vld [vmem:[%s2178] sm:$0xff]
    %v2180 = vsel %vm197, %v2173, 0.0
    %2181 = vadd.xlane.f32.xlu0 %v2180
    %v2182 = vpop.xlane.xlu0 %2181
    %v2183 = vsel %vm197, %v2174, 0.0
    %2184 = vadd.xlane.f32.xlu0 %v2183
    %v2185 = vpop.xlane.xlu0 %2184
    %v2186 = vmul.f32 %v2182, %v210
    %v2187 = vmul.f32 %v2185, %v210
    %v2188 = vsub.f32 %v2173, %v2186
    %v2189 = vsub.f32 %v2174, %v2187
    %v2190 = vmul.f32 %v2188, %v2188
    %v2191 = vmul.f32 %v2189, %v2189
    %v2192 = vsel %vm197, %v2190, 0.0
    %2193 = vadd.xlane.f32.xlu0 %v2192
    %v2194 = vpop.xlane.xlu0 %2193
    %v2195 = vsel %vm197, %v2191, 0.0
    %2196 = vadd.xlane.f32.xlu0 %v2195
    %v2197 = vpop.xlane.xlu0 %2196
    %v2198 = vmul.f32 %v2194, %v210
    %v2199 = vmul.f32 %v2197, %v210
    %v2200 = vadd.f32 %v2198, 1e-05
    %v2201 = vadd.f32 %v2199, 1e-05
    %v2202 = vrsqrt.pop %v2200
    %v2203 = vmul.f32 %v2202, %v2200
    %v2204 = vmul.f32 %v2203, %v2202
    %v2205 = vmul.f32 0.5, %v2204
    %v2206 = vsub.f32 1.5, %v2205
    %v2207 = vmul.f32 %v2202, %v2206
    %vm2208 = vweird.f32 %v2200
    %vm2209 = vweird.f32 %v2202
    %vm2210 = vmor %vm2208, %vm2209
    %v2211 = vsel %vm2210, %v2202, %v2207
    %v2212 = vrsqrt.pop %v2201
    %v2213 = vmul.f32 %v2212, %v2201
    %v2214 = vmul.f32 %v2213, %v2212
    %v2215 = vmul.f32 0.5, %v2214
    %v2216 = vsub.f32 1.5, %v2215
    %v2217 = vmul.f32 %v2212, %v2216
    %vm2218 = vweird.f32 %v2201
    %vm2219 = vweird.f32 %v2212
    %vm2220 = vmor %vm2218, %vm2219
    %v2221 = vsel %vm2220, %v2212, %v2217
    %v2222 = vmul.f32 %v2188, %v2211
    %v2223 = vmul.f32 %v2189, %v2221
    %v2224 = vperm.slane %v2179, 0
    %v2225 = vmul.f32 %v2222, %v2224
    %v2226 = vmul.f32 %v2223, %v2224
    %v2227 = vperm.slane %v2179, 1
    %v2228 = vadd.f32 %v2225, %v2227
    %v2229 = vadd.f32 %v2226, %v2227
    %s2230 = scalar_lea.vmem [#allocation2], 32
    %2231 = vst.msk [vmem:[%s2230] sm:$0xff] %vm197, %v2228
    %2232 = vst.msk [vmem:[%s2230 + $0x8] sm:$0xff] %vm197, %v2229
    // Predicated region
    $region34: #{tpu_custom_call.1} parent=1 // pred_check
      _
    $region35: #{tpu_custom_call.1} parent=1 // pred_check_branch
      %2234 = sbr.rel (0) target = $region37
    $region36: #{tpu_custom_call.1} parent=1 // pred_region
      %2236 = vsyncadd [#allocation3], 0
      %s2237 = sshll.u32 [#allocation2], 4
      %s2238 = int_to_ptr.vmem [resolvable:$true] %s2237
      %s2239 = sshll.u32 %s8, 4
      %s2240 = int_to_ptr.hbm [resolvable:$true] %s2239
      %2245 = dma.vmem_to_hbm [thread:$0]  %s2238, 768, %s2240, [#allocation3], 128, 128, 8
    $region37: #{tpu_custom_call.1} parent=1 // pred_fallthru
      _
    // Predicated region
    $region38: #{tpu_custom_call.1} parent=1 // pred_check
      _
    $region39: #{tpu_custom_call.1} parent=1 // pred_check_branch
      %2247 = sbr.rel (0) target = $region41
    $region40: #{tpu_custom_call.1} parent=1 // pred_region
      %2249 = dma.done [#allocation3], 768
    $region41: #{tpu_custom_call.1} parent=1 // pred_fallthru
      _
    %2250 = vsyncpa [#allocation3], 1

</llo_original>
